<compile_context>
chip_gen: v7x
topology: tpu7x:2x2x1
jax: 0.10.0
libtpu: 0.0.40
codegen_flags: <defaults>
</compile_context>

<pallas_src>
import functools

import numpy as np
import jax
import jax.numpy as jnp
from jax.experimental import pallas as pl
from jax.experimental.pallas import tpu as pltpu  # noqa: F401  (TPU backend assumed)

# ----------------------------- small config ---------------------------------
B = 2                                   # batch / num workers
OBS_C, OBS_H, OBS_W = 4, 16, 16         # observation_space.shape (len > 1 -> Conv2d branch)
EMBED_DIM = 32                          # config['transformer']['embed_dim'] (memory_layer_size)
HIDDEN = 32                             # config['hidden_layer_size']
NUM_HEADS = 4
HEAD_DIM = EMBED_DIM // NUM_HEADS
NUM_BLOCKS = 2                          # transformer blocks
MEM_LEN = 8                             # episodic memory window length
MAX_EPISODE_LEN = 16
NUM_ACTIONS = 25                        # action_space_shape = (25,) -> matches 25x25 action mask
HEAD_PAD = 128                          # lane-dense padded width of fused policy|value head output
LN_EPS = 1e-5
CONV1_K_PAD = 128                       # pad conv1 im2col K (=100) to a lane multiple


def _conv_out(n, k, s):
    return (n - k) // s + 1


OH1, OW1 = _conv_out(OBS_H, 5, 2), _conv_out(OBS_W, 5, 2)
OH2, OW2 = _conv_out(OH1, 3, 1), _conv_out(OW1, 3, 1)
OH3, OW3 = _conv_out(OH2, 3, 1), _conv_out(OW2, 3, 1)
CONV_OUT = 256 * OH3 * OW3              # in_features of lin_hidden


# ----------------------------- helpers ---------------------------------------
def _full_spec(shape):
    """BlockSpec covering the whole array (grid=(1,))."""
    n = len(shape)
    return pl.BlockSpec(shape, lambda i, _n=n: (0,) * _n)


# ----------------------------- conv matmul kernel ----------------------------
def _linear_kernel(x_ref, w_ref, b_ref, o_ref, *, relu):
    y = jnp.dot(x_ref[...], w_ref[...], preferred_element_type=jnp.float32) + b_ref[...]
    if relu:
        y = jnp.maximum(y, 0.0)
    o_ref[...] = y.astype(o_ref.dtype)


def pallas_linear(x, w, b, relu=False):
    """y = x @ w + b (optional ReLU).  x:(M,K)  w:(K,N)  b:(N,)."""
    M, K = x.shape
    N = w.shape[1]
    return pl.pallas_call(
        functools.partial(_linear_kernel, relu=relu),
        out_shape=jax.ShapeDtypeStruct((M, N), jnp.float32),
        grid=(1,),
        in_specs=[pl.BlockSpec((M, K), lambda i: (0, 0)),
                  pl.BlockSpec((K, N), lambda i: (0, 0)),
                  pl.BlockSpec((1, N), lambda i: (0, 0))],
        out_specs=pl.BlockSpec((M, N), lambda i: (0, 0)),
    )(x, w, b.reshape(1, N))


def conv2d_relu(x_nhwc, w_mat, b, kh, kw, stride, pad_k_to=None):
    """NHWC conv: im2col patches built in plain JAX, matmul+bias+ReLU in Pallas."""
    Bn, H, W, C = x_nhwc.shape
    OH = (H - kh) // stride + 1
    OW = (W - kw) // stride + 1
    cols = []
    for i in range(kh):
        for j in range(kw):
            patch = jax.lax.slice(
                x_nhwc,
                (0, i, j, 0),
                (Bn, i + (OH - 1) * stride + 1, j + (OW - 1) * stride + 1, C),
                (1, stride, stride, 1))
            cols.append(patch)
    patches = jnp.concatenate(cols, axis=-1).reshape(Bn * OH * OW, kh * kw * C)
    if pad_k_to is not None and pad_k_to > patches.shape[1]:
        patches = jnp.pad(patches, ((0, 0), (0, pad_k_to - patches.shape[1])))
    Cout = w_mat.shape[1]
    y = pallas_linear(patches, w_mat, b, relu=True)
    return y.reshape(Bn, OH, OW, Cout)


# ----------------------------- fused trunk kernel -----------------------------
def _trunk_kernel(conv_ref, lhw_ref, lhb_ref, mem_ref, mask_ref,
                  wq_ref, bq_ref, wkv_ref, bkv_ref, wo_ref, bo_ref,
                  wf_ref, bf_ref, ln1g_ref, ln1b_ref, ln2g_ref, ln2b_ref,
                  seg_ref, segT_ref, wpv_ref, bpv_ref, whead_ref, bhead_ref,
                  out_ref, memout_ref,
                  *, num_blocks, num_heads, scale, eps):
    f32 = jnp.float32

    def layernorm(x, g, b):
        mu = jnp.mean(x, axis=-1, keepdims=True)
        xc = x - mu
        var = jnp.mean(xc * xc, axis=-1, keepdims=True)
        return xc * jax.lax.rsqrt(var + eps) * g + b

    # lin_hidden + ReLU :  (B, CONV_OUT) @ (CONV_OUT, E)
    h = jnp.dot(conv_ref[...], lhw_ref[...], preferred_element_type=f32) + lhb_ref[...]
    h = jnp.maximum(h, 0.0)                                   # (B, E)
    Bn, E = h.shape
    mask = mask_ref[...]                                      # (B, M)
    M = mask.shape[1]
    seg = seg_ref[...]                                        # (E, H)  0/1 head-segment matrix
    segT = segT_ref[...]                                      # (H, E)

    # TODO(synk): Transformer class source not shipped with the module; implemented as a
    # standard post-LN episodic-memory block stack (MHA over memory window + FFN, no GTrXL gate).
    for i in range(num_blocks):                               # static unroll over blocks
        memout_ref[i, :, :] = h                               # episodic memory out = pre-block h
        mem_i = mem_ref[i]                                    # (B*M, E), PE already added

        # fused projections: q from h, k|v from memory in one matmul
        q = jnp.dot(h, wq_ref[i], preferred_element_type=f32) + bq_ref[i]            # (B, E)
        kv = jnp.dot(mem_i, wkv_ref[i], preferred_element_type=f32) + bkv_ref[i]     # (B*M, 2E)
        k3 = kv[:, :E].reshape(Bn, M, E)                      # (B, M, E)
        v3 = kv[:, E:].reshape(Bn, M, E)                      # (B, M, E)

        # all-head scores via segment matmul:
        # scores[b,m,h] = scale * sum_{e in head h} q[b,e] * k[b,m,e]
        qk = q[:, None, :] * k3                               # (B, M, E)
        scores = jnp.dot(qk.reshape(Bn * M, E), seg,
                         preferred_element_type=f32).reshape(Bn, M, num_heads) * scale
        scores = jnp.where(mask[:, :, None] > 0.0, scores, -1e30)
        smax = jnp.max(scores, axis=1, keepdims=True)         # (B, 1, H)
        p = jnp.exp(scores - smax)                            # (B, M, H)
        denom = jnp.sum(p, axis=1, keepdims=True)             # (B, 1, H)
        attn = p * pl.reciprocal(denom, approx=True)          # (B, M, H)

        # context: broadcast head weights back onto E lanes, reduce over memory axis
        attn_e = jnp.dot(attn.reshape(Bn * M, num_heads), segT,
                         preferred_element_type=f32).reshape(Bn, M, E)
        ctx = jnp.sum(attn_e * v3, axis=1)                    # (B, E)

        attn_out = jnp.dot(ctx, wo_ref[i], preferred_element_type=f32) + bo_ref[i]
        h1 = layernorm(h + attn_out, ln1g_ref[i], ln1b_ref[i])
        ff = jnp.maximum(jnp.dot(h1, wf_ref[i], preferred_element_type=f32) + bf_ref[i], 0.0)
        h = layernorm(h1 + ff, ln2g_ref[i], ln2b_ref[i])

    # fused heads: [lin_policy | lin_value] -> ReLU -> [policy_branch | value] (lane-padded)
    hpv = jnp.maximum(jnp.dot(h, wpv_ref[...], preferred_element_type=f32) + bpv_ref[...], 0.0)
    out = jnp.dot(hpv, whead_ref[...], preferred_element_type=f32) + bhead_ref[...]
    out_ref[...] = out.astype(out_ref.dtype)


def trunk_forward(params, conv_flat, mem_pe_t, mask_f32):
    Bn = conv_flat.shape[0]
    E = EMBED_DIM
    scale = 1.0 / float(np.sqrt(E))
    inputs = [conv_flat,
              params['lin_hidden_w'], params['lin_hidden_b'],
              mem_pe_t, mask_f32,
              params['wq'], params['bq'], params['wkv'], params['bkv'],
              params['wo'], params['bo'], params['wf'], params['bf'],
              params['ln1_g'], params['ln1_b'], params['ln2_g'], params['ln2_b'],
              params['seg'], params['segT'],
              params['w_pv'], params['b_pv'], params['w_head'], params['b_head']]
    out_head, memout = pl.pallas_call(
        functools.partial(_trunk_kernel, num_blocks=NUM_BLOCKS,
                          num_heads=NUM_HEADS, scale=scale, eps=LN_EPS),
        out_shape=(jax.ShapeDtypeStruct((Bn, HEAD_PAD), jnp.float32),
                   jax.ShapeDtypeStruct((NUM_BLOCKS, Bn, E), jnp.float32)),
        grid=(1,),
        in_specs=[_full_spec(a.shape) for a in inputs],
        out_specs=(_full_spec((Bn, HEAD_PAD)), _full_spec((NUM_BLOCKS, Bn, E))),
    )(*inputs)
    return out_head, memout


# ----------------------------- parameter init --------------------------------
def orthogonal(key, shape, gain=1.0):
    """PyTorch-style orthogonal_: flatten to (shape[0], prod(rest)), QR, scale."""
    rows = shape[0]
    cols = int(np.prod(shape[1:])) if len(shape) > 1 else 1
    big, small = max(rows, cols), min(rows, cols)
    a = jax.random.normal(key, (big, small), jnp.float32)
    q, r = jnp.linalg.qr(a)
    q = q * jnp.sign(jnp.diagonal(r))
    w = q.T if rows < cols else q
    return (gain * w).reshape(shape).astype(jnp.float32)


def sinusoidal_pe(max_len, dim):
    pos = np.arange(max_len)[:, None].astype(np.float32)
    i = np.arange(dim)[None, :].astype(np.float32)
    angle = pos / np.power(10000.0, (2.0 * (i // 2)) / dim)
    pe = np.zeros((max_len, dim), np.float32)
    pe[:, 0::2] = np.sin(angle[:, 0::2])
    pe[:, 1::2] = np.cos(angle[:, 1::2])
    return jnp.asarray(pe)


def init_params(key):
    ks = iter(jax.random.split(key, 64))
    g2 = float(np.sqrt(2.0))
    E = EMBED_DIM
    p = {}

    def conv_mat(k, cout, cin, ksz, gain, pad_rows_to=None):
        # torch layout (Cout, Cin, KH, KW) -> im2col matmul layout (KH*KW*Cin, Cout)
        w = orthogonal(k, (cout, cin, ksz, ksz), gain)
        m = jnp.transpose(w, (2, 3, 1, 0)).reshape(ksz * ksz * cin, cout)
        if pad_rows_to is not None and pad_rows_to > m.shape[0]:
            m = jnp.pad(m, ((0, pad_rows_to - m.shape[0]), (0, 0)))
        return m

    p['conv1_w'] = conv_mat(next(ks), 128, OBS_C, 5, g2, pad_rows_to=CONV1_K_PAD)
    p['conv1_b'] = jnp.zeros((128,), jnp.float32)
    p['conv2_w'] = conv_mat(next(ks), 256, 128, 3, g2)
    p['conv2_b'] = jnp.zeros((256,), jnp.float32)
    p['conv3_w'] = conv_mat(next(ks), 256, 256, 3, g2)
    p['conv3_b'] = jnp.zeros((256,), jnp.float32)

    p['lin_hidden_w'] = orthogonal(next(ks), (E, CONV_OUT), g2).T       # (CONV_OUT, E)
    p['lin_hidden_b'] = jnp.zeros((1, E), jnp.float32)

    p['pos_enc'] = sinusoidal_pe(MAX_EPISODE_LEN, E)

    wq, wkv, wo, wf = [], [], [], []
    for _ in range(NUM_BLOCKS):
        wq.append(orthogonal(next(ks), (E, E), 1.0).T)
        wk = orthogonal(next(ks), (E, E), 1.0).T
        wv = orthogonal(next(ks), (E, E), 1.0).T
        wkv.append(jnp.concatenate([wk, wv], axis=1))                   # fused Wk|Wv
        wo.append(orthogonal(next(ks), (E, E), 1.0).T)
        wf.append(orthogonal(next(ks), (E, E), g2).T)
    p['wq'] = jnp.stack(wq);   p['bq'] = jnp.zeros((NUM_BLOCKS, 1, E), jnp.float32)
    p['wkv'] = jnp.stack(wkv); p['bkv'] = jnp.zeros((NUM_BLOCKS, 1, 2 * E), jnp.float32)
    p['wo'] = jnp.stack(wo);   p['bo'] = jnp.zeros((NUM_BLOCKS, 1, E), jnp.float32)
    p['wf'] = jnp.stack(wf);   p['bf'] = jnp.zeros((NUM_BLOCKS, 1, E), jnp.float32)
    p['ln1_g'] = jnp.ones((NUM_BLOCKS, 1, E), jnp.float32)
    p['ln1_b'] = jnp.zeros((NUM_BLOCKS, 1, E), jnp.float32)
    p['ln2_g'] = jnp.ones((NUM_BLOCKS, 1, E), jnp.float32)
    p['ln2_b'] = jnp.zeros((NUM_BLOCKS, 1, E), jnp.float32)

    # fused heads
    lin_policy_w = orthogonal(next(ks), (HIDDEN, E), g2).T              # (E, HIDDEN)
    lin_value_w = orthogonal(next(ks), (HIDDEN, E), g2).T               # (E, HIDDEN)
    p['w_pv'] = jnp.concatenate([lin_policy_w, lin_value_w], axis=1)    # (E, 2*HIDDEN)
    p['b_pv'] = jnp.zeros((1, 2 * HIDDEN), jnp.float32)

    branch_w = orthogonal(next(ks), (NUM_ACTIONS, HIDDEN), float(np.sqrt(0.01))).T  # (HIDDEN, 25)
    value_w = orthogonal(next(ks), (1, HIDDEN), 1.0).T                  # (HIDDEN, 1)
    w_head = jnp.zeros((2 * HIDDEN, HEAD_PAD), jnp.float32)
    w_head = w_head.at[:HIDDEN, :NUM_ACTIONS].set(branch_w)             # logits from h_policy
    w_head = w_head.at[HIDDEN:, NUM_ACTIONS:NUM_ACTIONS + 1].set(value_w)  # value from h_value
    p['w_head'] = w_head
    p['b_head'] = jnp.zeros((1, HEAD_PAD), jnp.float32)

    # 0/1 head-segment matrix for the all-head attention matmuls
    seg = np.zeros((E, NUM_HEADS), np.float32)
    for hh in range(NUM_HEADS):
        seg[hh * HEAD_DIM:(hh + 1) * HEAD_DIM, hh] = 1.0
    p['seg'] = jnp.asarray(seg)
    p['segT'] = jnp.asarray(seg.T)
    return p


# ----------------------------- action mask (plain-JAX glue) -------------------
def generate_action_mask(obs):
    # TODO(synk): reference indexes obs[i, :625].view(25,25) which only type-checks for flat
    # observations; here we take the first 625 elements of each worker's flattened observation.
    n = NUM_ACTIONS
    flat = obs.reshape(obs.shape[0], -1)[:, :n * n]
    mat = flat.reshape(-1, n, n)
    diag = jnp.diagonal(mat, axis1=1, axis2=2)                        # (B, n)
    rows_to_check = (diag == 1.0) | (diag == 3.0)                     # (B, n)
    off_diag = ~jnp.eye(n, dtype=bool)[None, :, :]
    valid = rows_to_check[:, :, None] & (mat != 0.0) & off_diag       # (B, row, col)
    return jnp.any(valid, axis=1).astype(jnp.float32)                 # (B, n)


# ----------------------------- full forward -----------------------------------
def actor_critic_forward(params, obs, memory, memory_mask, memory_indices):
    Bn = obs.shape[0]
    x = jnp.transpose(obs, (0, 2, 3, 1)).astype(jnp.float32)          # NCHW -> NHWC
    x = conv2d_relu(x, params['conv1_w'], params['conv1_b'], 5, 5, 2, pad_k_to=CONV1_K_PAD)
    x = conv2d_relu(x, params['conv2_w'], params['conv2_b'], 3, 3, 1)
    x = conv2d_relu(x, params['conv3_w'], params['conv3_b'], 3, 3, 1)
    conv_flat = jnp.transpose(x, (0, 3, 1, 2)).reshape(Bn, -1)        # torch NCHW flatten order

    # positional-encoding gather + broadcast over blocks (plain-JAX glue)
    M = memory.shape[1]
    pe = params['pos_enc'][memory_indices]                            # (B, M, E)
    mem_pe = memory + pe[:, :, None, :]                               # (B, M, NB, E)
    mem_pe_t = jnp.transpose(mem_pe, (2, 0, 1, 3)).reshape(NUM_BLOCKS, Bn * M, EMBED_DIM)

    out_head, memout = trunk_forward(params, conv_flat, mem_pe_t,
                                     memory_mask.astype(jnp.float32))
    memory_out = jnp.transpose(memout, (1, 0, 2))                     # (B, NB, E)

    logits_raw = out_head[:, :NUM_ACTIONS]                            # lanes 0:25
    value = out_head[:, NUM_ACTIONS]                                  # lane 25
    action_mask = generate_action_mask(obs)
    logits = [logits_raw + jnp.log(action_mask)]
    # torch.distributions.Categorical(logits=...) is represented by the masked logits.
    return logits, value, memory_out


# ----------------------------- main -------------------------------------------
if __name__ == "__main__":
    key = jax.random.PRNGKey(0)
    k_obs_a, k_obs_b, k_mem, k_par = jax.random.split(key, 4)

    # Observation: first 625 elements integer-valued (0..3) so the action mask is non-trivial.
    obs_head = jax.random.randint(k_obs_a, (B, NUM_ACTIONS * NUM_ACTIONS), 0, 4).astype(jnp.float32)
    rest = OBS_C * OBS_H * OBS_W - NUM_ACTIONS * NUM_ACTIONS
    obs_tail = jax.random.normal(k_obs_b, (B, rest), jnp.float32)
    obs = jnp.concatenate([obs_head, obs_tail], axis=1).reshape(B, OBS_C, OBS_H, OBS_W)

    memory = jax.random.normal(k_mem, (B, MEM_LEN, NUM_BLOCKS, EMBED_DIM), jnp.float32)
    lengths = (jnp.arange(B) * 3 + 5).reshape(B, 1)                    # [5, 8]
    memory_mask = (jnp.arange(MEM_LEN)[None, :] < lengths).astype(jnp.float32)
    memory_indices = jnp.tile(jnp.arange(MEM_LEN, dtype=jnp.int32)[None, :], (B, 1))

    params = init_params(k_par)

    fwd = jax.jit(actor_critic_forward)
    logits, value, memory_out = fwd(params, obs, memory, memory_mask, memory_indices)
    jax.block_until_ready((logits, value, memory_out))

    assert logits[0].shape == (B, NUM_ACTIONS)
    assert value.shape == (B,)
    assert memory_out.shape == (B, NUM_BLOCKS, EMBED_DIM)
    print("KERNEL_OK")
</pallas_src>

<mosaic_0001>
module attributes {stable_mosaic.version = 11 : i64} {
  func.func @_linear_kernel(%arg0: i32, %arg1: memref<72x128xf32, #tpu.memory_space<vmem>>, %arg2: memref<128x128xf32, #tpu.memory_space<vmem>>, %arg3: memref<1x128xf32, #tpu.memory_space<vmem>>, %arg4: memref<72x128xf32, #tpu.memory_space<vmem>>) attributes {dimension_semantics = [#tpu.dimension_semantics<arbitrary>], iteration_bounds = array<i64: 1>, scalar_prefetch = 0 : i64, scratch_operands = 0 : i64, tpu.core_type = #tpu.core_type<tc>, window_params = [{pipeline_mode = #tpu.pipeline_mode<synchronous>, transform_indices = @transform_0, window_bounds = array<i64: 72, 128>}, {pipeline_mode = #tpu.pipeline_mode<synchronous>, transform_indices = @transform_1, window_bounds = array<i64: 128, 128>}, {pipeline_mode = #tpu.pipeline_mode<synchronous>, transform_indices = @transform_2, window_bounds = array<i64: 1, 128>}, {pipeline_mode = #tpu.pipeline_mode<synchronous>, transform_indices = @transform_3, window_bounds = array<i64: 72, 128>}]} {
    %c0 = arith.constant 0 : index
    %c0_0 = arith.constant 0 : index
    %0 = vector.load %arg1[%c0, %c0_0] : memref<72x128xf32, #tpu.memory_space<vmem>>, vector<72x128xf32>
    %c0_1 = arith.constant 0 : index
    %c0_2 = arith.constant 0 : index
    %1 = vector.load %arg2[%c0_1, %c0_2] : memref<128x128xf32, #tpu.memory_space<vmem>>, vector<128x128xf32>
    %cst = arith.constant dense<0.000000e+00> : vector<72x128xf32>
    %2 = tpu.matmul %0, %1, %cst {dimension_numbers = #tpu.dot_dimension_numbers<[1], [0], [0], [1], [0, 0, 1, 1], [], []>} : vector<72x128xf32>, vector<128x128xf32>, vector<72x128xf32> -> vector<72x128xf32>
    %c0_3 = arith.constant 0 : index
    %c0_4 = arith.constant 0 : index
    %3 = vector.load %arg3[%c0_3, %c0_4] : memref<1x128xf32, #tpu.memory_space<vmem>>, vector<1x128xf32>
    %4 = vector.broadcast %3 : vector<1x128xf32> to vector<72x128xf32>
    %5 = arith.addf %2, %4 : vector<72x128xf32>
    %cst_5 = arith.constant 0.000000e+00 : f32
    %6 = vector.broadcast %cst_5 : f32 to vector<72x128xf32>
    %7 = arith.maximumf %5, %6 : vector<72x128xf32>
    %c0_6 = arith.constant 0 : index
    %c0_7 = arith.constant 0 : index
    %8 = vector.load %arg4[%c0_6, %c0_7] : memref<72x128xf32, #tpu.memory_space<vmem>>, vector<72x128xf32>
    tpu.vector_store %arg4[%c0_6, %c0_7], %7 {strides = array<i32>} : memref<72x128xf32, #tpu.memory_space<vmem>>, vector<72x128xf32>,
    return
  }
  func.func @transform_0(%arg0: i32) -> (i32, i32) {
    %c0_i32 = arith.constant 0 : i32
    %c0_i32_0 = arith.constant 0 : i32
    %c0_i32_1 = arith.constant 0 : i32
    return %c0_i32, %c0_i32_0 : i32, i32
  }
  func.func @transform_1(%arg0: i32) -> (i32, i32) {
    %c0_i32 = arith.constant 0 : i32
    %c0_i32_0 = arith.constant 0 : i32
    %c0_i32_1 = arith.constant 0 : i32
    return %c0_i32, %c0_i32_0 : i32, i32
  }
  func.func @transform_2(%arg0: i32) -> (i32, i32) {
    %c0_i32 = arith.constant 0 : i32
    %c0_i32_0 = arith.constant 0 : i32
    %c0_i32_1 = arith.constant 0 : i32
    return %c0_i32, %c0_i32_0 : i32, i32
  }
  func.func @transform_3(%arg0: i32) -> (i32, i32) {
    %c0_i32 = arith.constant 0 : i32
    %c0_i32_0 = arith.constant 0 : i32
    %c0_i32_1 = arith.constant 0 : i32
    return %c0_i32, %c0_i32_0 : i32, i32
  }
}

module attributes {stable_mosaic.version = 11 : i64} {
  func.func @_linear_kernel(%arg0: i32, %arg1: memref<32x1152xf32, #tpu.memory_space<vmem>>, %arg2: memref<1152x256xf32, #tpu.memory_space<vmem>>, %arg3: memref<1x256xf32, #tpu.memory_space<vmem>>, %arg4: memref<32x256xf32, #tpu.memory_space<vmem>>) attributes {dimension_semantics = [#tpu.dimension_semantics<arbitrary>], iteration_bounds = array<i64: 1>, scalar_prefetch = 0 : i64, scratch_operands = 0 : i64, tpu.core_type = #tpu.core_type<tc>, window_params = [{pipeline_mode = #tpu.pipeline_mode<synchronous>, transform_indices = @transform_0, window_bounds = array<i64: 32, 1152>}, {pipeline_mode = #tpu.pipeline_mode<synchronous>, transform_indices = @transform_1, window_bounds = array<i64: 1152, 256>}, {pipeline_mode = #tpu.pipeline_mode<synchronous>, transform_indices = @transform_2, window_bounds = array<i64: 1, 256>}, {pipeline_mode = #tpu.pipeline_mode<synchronous>, transform_indices = @transform_3, window_bounds = array<i64: 32, 256>}]} {
    %c0 = arith.constant 0 : index
    %c0_0 = arith.constant 0 : index
    %0 = vector.load %arg1[%c0, %c0_0] : memref<32x1152xf32, #tpu.memory_space<vmem>>, vector<32x1152xf32>
    %c0_1 = arith.constant 0 : index
    %c0_2 = arith.constant 0 : index
    %1 = vector.load %arg2[%c0_1, %c0_2] : memref<1152x256xf32, #tpu.memory_space<vmem>>, vector<1152x256xf32>
    %cst = arith.constant dense<0.000000e+00> : vector<32x256xf32>
    %2 = tpu.matmul %0, %1, %cst {dimension_numbers = #tpu.dot_dimension_numbers<[1], [0], [0], [1], [0, 0, 1, 1], [], []>} : vector<32x1152xf32>, vector<1152x256xf32>, vector<32x256xf32> -> vector<32x256xf32>
    %c0_3 = arith.constant 0 : index
    %c0_4 = arith.constant 0 : index
    %3 = vector.load %arg3[%c0_3, %c0_4] : memref<1x256xf32, #tpu.memory_space<vmem>>, vector<1x256xf32>
    %4 = vector.broadcast %3 : vector<1x256xf32> to vector<32x256xf32>
    %5 = arith.addf %2, %4 : vector<32x256xf32>
    %cst_5 = arith.constant 0.000000e+00 : f32
    %6 = vector.broadcast %cst_5 : f32 to vector<32x256xf32>
    %7 = arith.maximumf %5, %6 : vector<32x256xf32>
    %c0_6 = arith.constant 0 : index
    %c0_7 = arith.constant 0 : index
    %8 = vector.load %arg4[%c0_6, %c0_7] : memref<32x256xf32, #tpu.memory_space<vmem>>, vector<32x256xf32>
    tpu.vector_store %arg4[%c0_6, %c0_7], %7 {strides = array<i32>} : memref<32x256xf32, #tpu.memory_space<vmem>>, vector<32x256xf32>,
    return
  }
  func.func @transform_0(%arg0: i32) -> (i32, i32) {
    %c0_i32 = arith.constant 0 : i32
    %c0_i32_0 = arith.constant 0 : i32
    %c0_i32_1 = arith.constant 0 : i32
    return %c0_i32, %c0_i32_0 : i32, i32
  }
  func.func @transform_1(%arg0: i32) -> (i32, i32) {
    %c0_i32 = arith.constant 0 : i32
    %c0_i32_0 = arith.constant 0 : i32
    %c0_i32_1 = arith.constant 0 : i32
    return %c0_i32, %c0_i32_0 : i32, i32
  }
  func.func @transform_2(%arg0: i32) -> (i32, i32) {
    %c0_i32 = arith.constant 0 : i32
    %c0_i32_0 = arith.constant 0 : i32
    %c0_i32_1 = arith.constant 0 : i32
    return %c0_i32, %c0_i32_0 : i32, i32
  }
  func.func @transform_3(%arg0: i32) -> (i32, i32) {
    %c0_i32 = arith.constant 0 : i32
    %c0_i32_0 = arith.constant 0 : i32
    %c0_i32_1 = arith.constant 0 : i32
    return %c0_i32, %c0_i32_0 : i32, i32
  }
}

module attributes {stable_mosaic.version = 11 : i64} {
  func.func @_linear_kernel(%arg0: i32, %arg1: memref<8x2304xf32, #tpu.memory_space<vmem>>, %arg2: memref<2304x256xf32, #tpu.memory_space<vmem>>, %arg3: memref<1x256xf32, #tpu.memory_space<vmem>>, %arg4: memref<8x256xf32, #tpu.memory_space<vmem>>) attributes {dimension_semantics = [#tpu.dimension_semantics<arbitrary>], iteration_bounds = array<i64: 1>, scalar_prefetch = 0 : i64, scratch_operands = 0 : i64, tpu.core_type = #tpu.core_type<tc>, window_params = [{pipeline_mode = #tpu.pipeline_mode<synchronous>, transform_indices = @transform_0, window_bounds = array<i64: 8, 2304>}, {pipeline_mode = #tpu.pipeline_mode<synchronous>, transform_indices = @transform_1, window_bounds = array<i64: 2304, 256>}, {pipeline_mode = #tpu.pipeline_mode<synchronous>, transform_indices = @transform_2, window_bounds = array<i64: 1, 256>}, {pipeline_mode = #tpu.pipeline_mode<synchronous>, transform_indices = @transform_3, window_bounds = array<i64: 8, 256>}]} {
    %c0 = arith.constant 0 : index
    %c0_0 = arith.constant 0 : index
    %0 = vector.load %arg1[%c0, %c0_0] : memref<8x2304xf32, #tpu.memory_space<vmem>>, vector<8x2304xf32>
    %c0_1 = arith.constant 0 : index
    %c0_2 = arith.constant 0 : index
    %1 = vector.load %arg2[%c0_1, %c0_2] : memref<2304x256xf32, #tpu.memory_space<vmem>>, vector<2304x256xf32>
    %cst = arith.constant dense<0.000000e+00> : vector<8x256xf32>
    %2 = tpu.matmul %0, %1, %cst {dimension_numbers = #tpu.dot_dimension_numbers<[1], [0], [0], [1], [0, 0, 1, 1], [], []>} : vector<8x2304xf32>, vector<2304x256xf32>, vector<8x256xf32> -> vector<8x256xf32>
    %c0_3 = arith.constant 0 : index
    %c0_4 = arith.constant 0 : index
    %3 = vector.load %arg3[%c0_3, %c0_4] : memref<1x256xf32, #tpu.memory_space<vmem>>, vector<1x256xf32>
    %4 = vector.broadcast %3 : vector<1x256xf32> to vector<8x256xf32>
    %5 = arith.addf %2, %4 : vector<8x256xf32>
    %cst_5 = arith.constant 0.000000e+00 : f32
    %6 = vector.broadcast %cst_5 : f32 to vector<8x256xf32>
    %7 = arith.maximumf %5, %6 : vector<8x256xf32>
    %c0_6 = arith.constant 0 : index
    %c0_7 = arith.constant 0 : index
    %8 = vector.load %arg4[%c0_6, %c0_7] : memref<8x256xf32, #tpu.memory_space<vmem>>, vector<8x256xf32>
    tpu.vector_store %arg4[%c0_6, %c0_7], %7 {strides = array<i32>} : memref<8x256xf32, #tpu.memory_space<vmem>>, vector<8x256xf32>,
    return
  }
  func.func @transform_0(%arg0: i32) -> (i32, i32) {
    %c0_i32 = arith.constant 0 : i32
    %c0_i32_0 = arith.constant 0 : i32
    %c0_i32_1 = arith.constant 0 : i32
    return %c0_i32, %c0_i32_0 : i32, i32
  }
  func.func @transform_1(%arg0: i32) -> (i32, i32) {
    %c0_i32 = arith.constant 0 : i32
    %c0_i32_0 = arith.constant 0 : i32
    %c0_i32_1 = arith.constant 0 : i32
    return %c0_i32, %c0_i32_0 : i32, i32
  }
  func.func @transform_2(%arg0: i32) -> (i32, i32) {
    %c0_i32 = arith.constant 0 : i32
    %c0_i32_0 = arith.constant 0 : i32
    %c0_i32_1 = arith.constant 0 : i32
    return %c0_i32, %c0_i32_0 : i32, i32
  }
  func.func @transform_3(%arg0: i32) -> (i32, i32) {
    %c0_i32 = arith.constant 0 : i32
    %c0_i32_0 = arith.constant 0 : i32
    %c0_i32_1 = arith.constant 0 : i32
    return %c0_i32, %c0_i32_0 : i32, i32
  }
}

module attributes {stable_mosaic.version = 11 : i64} {
  func.func @_trunk_kernel(%arg0: i32, %arg1: memref<2x1024xf32, #tpu.memory_space<vmem>>, %arg2: memref<1024x32xf32, #tpu.memory_space<vmem>>, %arg3: memref<1x32xf32, #tpu.memory_space<vmem>>, %arg4: memref<2x16x32xf32, #tpu.memory_space<vmem>>, %arg5: memref<2x8xf32, #tpu.memory_space<vmem>>, %arg6: memref<2x32x32xf32, #tpu.memory_space<vmem>>, %arg7: memref<2x1x32xf32, #tpu.memory_space<vmem>>, %arg8: memref<2x32x64xf32, #tpu.memory_space<vmem>>, %arg9: memref<2x1x64xf32, #tpu.memory_space<vmem>>, %arg10: memref<2x32x32xf32, #tpu.memory_space<vmem>>, %arg11: memref<2x1x32xf32, #tpu.memory_space<vmem>>, %arg12: memref<2x32x32xf32, #tpu.memory_space<vmem>>, %arg13: memref<2x1x32xf32, #tpu.memory_space<vmem>>, %arg14: memref<2x1x32xf32, #tpu.memory_space<vmem>>, %arg15: memref<2x1x32xf32, #tpu.memory_space<vmem>>, %arg16: memref<2x1x32xf32, #tpu.memory_space<vmem>>, %arg17: memref<2x1x32xf32, #tpu.memory_space<vmem>>, %arg18: memref<32x4xf32, #tpu.memory_space<vmem>>, %arg19: memref<4x32xf32, #tpu.memory_space<vmem>>, %arg20: memref<32x64xf32, #tpu.memory_space<vmem>>, %arg21: memref<1x64xf32, #tpu.memory_space<vmem>>, %arg22: memref<64x128xf32, #tpu.memory_space<vmem>>, %arg23: memref<1x128xf32, #tpu.memory_space<vmem>>, %arg24: memref<2x128xf32, #tpu.memory_space<vmem>>, %arg25: memref<2x2x32xf32, #tpu.memory_space<vmem>>) attributes {dimension_semantics = [#tpu.dimension_semantics<arbitrary>], iteration_bounds = array<i64: 1>, scalar_prefetch = 0 : i64, scratch_operands = 0 : i64, tpu.core_type = #tpu.core_type<tc>, window_params = [{pipeline_mode = #tpu.pipeline_mode<synchronous>, transform_indices = @transform_0, window_bounds = array<i64: 2, 1024>}, {pipeline_mode = #tpu.pipeline_mode<synchronous>, transform_indices = @transform_1, window_bounds = array<i64: 1024, 32>}, {pipeline_mode = #tpu.pipeline_mode<synchronous>, transform_indices = @transform_2, window_bounds = array<i64: 1, 32>}, {pipeline_mode = #tpu.pipeline_mode<synchronous>, transform_indices = @transform_3, window_bounds = array<i64: 2, 16, 32>}, {pipeline_mode = #tpu.pipeline_mode<synchronous>, transform_indices = @transform_4, window_bounds = array<i64: 2, 8>}, {pipeline_mode = #tpu.pipeline_mode<synchronous>, transform_indices = @transform_5, window_bounds = array<i64: 2, 32, 32>}, {pipeline_mode = #tpu.pipeline_mode<synchronous>, transform_indices = @transform_6, window_bounds = array<i64: 2, 1, 32>}, {pipeline_mode = #tpu.pipeline_mode<synchronous>, transform_indices = @transform_7, window_bounds = array<i64: 2, 32, 64>}, {pipeline_mode = #tpu.pipeline_mode<synchronous>, transform_indices = @transform_8, window_bounds = array<i64: 2, 1, 64>}, {pipeline_mode = #tpu.pipeline_mode<synchronous>, transform_indices = @transform_9, window_bounds = array<i64: 2, 32, 32>}, {pipeline_mode = #tpu.pipeline_mode<synchronous>, transform_indices = @transform_10, window_bounds = array<i64: 2, 1, 32>}, {pipeline_mode = #tpu.pipeline_mode<synchronous>, transform_indices = @transform_11, window_bounds = array<i64: 2, 32, 32>}, {pipeline_mode = #tpu.pipeline_mode<synchronous>, transform_indices = @transform_12, window_bounds = array<i64: 2, 1, 32>}, {pipeline_mode = #tpu.pipeline_mode<synchronous>, transform_indices = @transform_13, window_bounds = array<i64: 2, 1, 32>}, {pipeline_mode = #tpu.pipeline_mode<synchronous>, transform_indices = @transform_14, window_bounds = array<i64: 2, 1, 32>}, {pipeline_mode = #tpu.pipeline_mode<synchronous>, transform_indices = @transform_15, window_bounds = array<i64: 2, 1, 32>}, {pipeline_mode = #tpu.pipeline_mode<synchronous>, transform_indices = @transform_16, window_bounds = array<i64: 2, 1, 32>}, {pipeline_mode = #tpu.pipeline_mode<synchronous>, transform_indices = @transform_17, window_bounds = array<i64: 32, 4>}, {pipeline_mode = #tpu.pipeline_mode<synchronous>, transform_indices = @transform_18, window_bounds = array<i64: 4, 32>}, {pipeline_mode = #tpu.pipeline_mode<synchronous>, transform_indices = @transform_19, window_bounds = array<i64: 32, 64>}, {pipeline_mode = #tpu.pipeline_mode<synchronous>, transform_indices = @transform_20, window_bounds = array<i64: 1, 64>}, {pipeline_mode = #tpu.pipeline_mode<synchronous>, transform_indices = @transform_21, window_bounds = array<i64: 64, 128>}, {pipeline_mode = #tpu.pipeline_mode<synchronous>, transform_indices = @transform_22, window_bounds = array<i64: 1, 128>}, {pipeline_mode = #tpu.pipeline_mode<synchronous>, transform_indices = @transform_23, window_bounds = array<i64: 2, 128>}, {pipeline_mode = #tpu.pipeline_mode<synchronous>, transform_indices = @transform_24, window_bounds = array<i64: 2, 2, 32>}]} {
    %c0 = arith.constant 0 : index
    %c0_0 = arith.constant 0 : index
    %0 = vector.load %arg1[%c0, %c0_0] : memref<2x1024xf32, #tpu.memory_space<vmem>>, vector<2x1024xf32>
    %c0_1 = arith.constant 0 : index
    %c0_2 = arith.constant 0 : index
    %1 = vector.load %arg2[%c0_1, %c0_2] : memref<1024x32xf32, #tpu.memory_space<vmem>>, vector<1024x32xf32>
    %cst = arith.constant dense<0.000000e+00> : vector<2x32xf32>
    %2 = tpu.matmul %0, %1, %cst {dimension_numbers = #tpu.dot_dimension_numbers<[1], [0], [0], [1], [0, 0, 1, 1], [], []>} : vector<2x1024xf32>, vector<1024x32xf32>, vector<2x32xf32> -> vector<2x32xf32>
    %c0_3 = arith.constant 0 : index
    %c0_4 = arith.constant 0 : index
    %3 = vector.load %arg3[%c0_3, %c0_4] : memref<1x32xf32, #tpu.memory_space<vmem>>, vector<1x32xf32>
    %4 = vector.broadcast %3 : vector<1x32xf32> to vector<2x32xf32>
    %5 = arith.addf %2, %4 : vector<2x32xf32>
    %cst_5 = arith.constant 0.000000e+00 : f32
    %6 = vector.broadcast %cst_5 : f32 to vector<2x32xf32>
    %7 = arith.maximumf %5, %6 : vector<2x32xf32>
    %c0_6 = arith.constant 0 : index
    %c0_7 = arith.constant 0 : index
    %8 = vector.load %arg5[%c0_6, %c0_7] : memref<2x8xf32, #tpu.memory_space<vmem>>, vector<2x8xf32>
    %c0_8 = arith.constant 0 : index
    %c0_9 = arith.constant 0 : index
    %9 = vector.load %arg18[%c0_8, %c0_9] : memref<32x4xf32, #tpu.memory_space<vmem>>, vector<32x4xf32>
    %c0_10 = arith.constant 0 : index
    %c0_11 = arith.constant 0 : index
    %10 = vector.load %arg19[%c0_10, %c0_11] : memref<4x32xf32, #tpu.memory_space<vmem>>, vector<4x32xf32>
    %c0_12 = arith.constant 0 : index
    %c0_13 = arith.constant 0 : index
    %c0_14 = arith.constant 0 : index
    %11 = vector.load %arg25[%c0_12, %c0_13, %c0_14] : memref<2x2x32xf32, #tpu.memory_space<vmem>>, vector<1x2x32xf32>
    %12 = vector.shape_cast %11 : vector<1x2x32xf32> to vector<2x32xf32>
    %13 = vector.shape_cast %7 : vector<2x32xf32> to vector<1x2x32xf32>
    tpu.vector_store %arg25[%c0_12, %c0_13, %c0_14], %13 {strides = array<i32>} : memref<2x2x32xf32, #tpu.memory_space<vmem>>, vector<1x2x32xf32>,
    %c0_15 = arith.constant 0 : index
    %c0_16 = arith.constant 0 : index
    %c0_17 = arith.constant 0 : index
    %14 = vector.load %arg4[%c0_15, %c0_16, %c0_17] : memref<2x16x32xf32, #tpu.memory_space<vmem>>, vector<1x16x32xf32>
    %15 = vector.shape_cast %14 : vector<1x16x32xf32> to vector<16x32xf32>
    %c0_18 = arith.constant 0 : index
    %c0_19 = arith.constant 0 : index
    %c0_20 = arith.constant 0 : index
    %16 = vector.load %arg6[%c0_18, %c0_19, %c0_20] : memref<2x32x32xf32, #tpu.memory_space<vmem>>, vector<1x32x32xf32>
    %17 = vector.shape_cast %16 : vector<1x32x32xf32> to vector<32x32xf32>
    %cst_21 = arith.constant dense<0.000000e+00> : vector<2x32xf32>
    %18 = tpu.matmul %7, %17, %cst_21 {dimension_numbers = #tpu.dot_dimension_numbers<[1], [0], [0], [1], [0, 0, 1, 1], [], []>} : vector<2x32xf32>, vector<32x32xf32>, vector<2x32xf32> -> vector<2x32xf32>
    %c0_22 = arith.constant 0 : index
    %c0_23 = arith.constant 0 : index
    %c0_24 = arith.constant 0 : index
    %19 = vector.load %arg7[%c0_22, %c0_23, %c0_24] : memref<2x1x32xf32, #tpu.memory_space<vmem>>, vector<1x1x32xf32>
    %20 = vector.shape_cast %19 : vector<1x1x32xf32> to vector<1x32xf32>
    %21 = vector.broadcast %20 : vector<1x32xf32> to vector<2x32xf32>
    %22 = arith.addf %18, %21 : vector<2x32xf32>
    %c0_25 = arith.constant 0 : index
    %c0_26 = arith.constant 0 : index
    %c0_27 = arith.constant 0 : index
    %23 = vector.load %arg8[%c0_25, %c0_26, %c0_27] : memref<2x32x64xf32, #tpu.memory_space<vmem>>, vector<1x32x64xf32>
    %24 = vector.shape_cast %23 : vector<1x32x64xf32> to vector<32x64xf32>
    %cst_28 = arith.constant dense<0.000000e+00> : vector<16x64xf32>
    %25 = tpu.matmul %15, %24, %cst_28 {dimension_numbers = #tpu.dot_dimension_numbers<[1], [0], [0], [1], [0, 0, 1, 1], [], []>} : vector<16x32xf32>, vector<32x64xf32>, vector<16x64xf32> -> vector<16x64xf32>
    %c0_29 = arith.constant 0 : index
    %c0_30 = arith.constant 0 : index
    %c0_31 = arith.constant 0 : index
    %26 = vector.load %arg9[%c0_29, %c0_30, %c0_31] : memref<2x1x64xf32, #tpu.memory_space<vmem>>, vector<1x1x64xf32>
    %27 = vector.shape_cast %26 : vector<1x1x64xf32> to vector<1x64xf32>
    %28 = vector.broadcast %27 : vector<1x64xf32> to vector<16x64xf32>
    %29 = arith.addf %25, %28 : vector<16x64xf32>
    %30 = vector.extract_strided_slice %29 {offsets = [0, 0], sizes = [16, 32], strides = [1, 1]} : vector<16x64xf32> to vector<16x32xf32>
    %31 = vector.shape_cast %30 : vector<16x32xf32> to vector<2x8x32xf32>
    %32 = vector.extract_strided_slice %29 {offsets = [0, 32], sizes = [16, 32], strides = [1, 1]} : vector<16x64xf32> to vector<16x32xf32>
    %33 = vector.shape_cast %32 : vector<16x32xf32> to vector<2x8x32xf32>
    %34 = vector.shape_cast %22 : vector<2x32xf32> to vector<2x1x32xf32>
    %35 = vector.broadcast %34 : vector<2x1x32xf32> to vector<2x8x32xf32>
    %36 = arith.mulf %35, %31 : vector<2x8x32xf32>
    %37 = vector.shape_cast %36 : vector<2x8x32xf32> to vector<16x32xf32>
    %cst_32 = arith.constant dense<0.000000e+00> : vector<16x4xf32>
    %38 = tpu.matmul %37, %9, %cst_32 {dimension_numbers = #tpu.dot_dimension_numbers<[1], [0], [0], [1], [0, 0, 1, 1], [], []>} : vector<16x32xf32>, vector<32x4xf32>, vector<16x4xf32> -> vector<16x4xf32>
    %39 = vector.shape_cast %38 : vector<16x4xf32> to vector<2x8x4xf32>
    %cst_33 = arith.constant 0.176776692 : f32
    %40 = vector.broadcast %cst_33 : f32 to vector<2x8x4xf32>
    %41 = arith.mulf %39, %40 : vector<2x8x4xf32>
    %42 = vector.shape_cast %8 : vector<2x8xf32> to vector<2x8x1xf32>
    %cst_34 = arith.constant 0.000000e+00 : f32
    %43 = vector.broadcast %cst_34 : f32 to vector<2x8x1xf32>
    %44 = arith.cmpf ogt, %42, %43 : vector<2x8x1xf32>
    %cst_35 = arith.constant -1.000000e+30 : f32
    %45 = vector.shape_cast %44 : vector<2x8x1xi1> to vector<2x8x1xi1>
    %46 = vector.broadcast %45 : vector<2x8x1xi1> to vector<2x8x4xi1>
    %47 = vector.broadcast %cst_35 : f32 to vector<2x8x4xf32>
    %48 = arith.select %46, %41, %47 : vector<2x8x4xi1>, vector<2x8x4xf32>
    %cst_36 = arith.constant dense<0xFF800000> : vector<2x4xf32>
    %49 = vector.multi_reduction <maximumf>, %48, %cst_36 [1] : vector<2x8x4xf32> to vector<2x4xf32>
    %50 = vector.shape_cast %49 : vector<2x4xf32> to vector<2x1x4xf32>
    %51 = vector.broadcast %50 : vector<2x1x4xf32> to vector<2x8x4xf32>
    %52 = arith.subf %48, %51 : vector<2x8x4xf32>
    %53 = math.exp %52 : vector<2x8x4xf32>
    %cst_37 = arith.constant dense<0.000000e+00> : vector<2x4xf32>
    %54 = vector.multi_reduction <add>, %53, %cst_37 [1] : vector<2x8x4xf32> to vector<2x4xf32>
    %55 = vector.shape_cast %54 : vector<2x4xf32> to vector<2x1x4xf32>
    %56 = tpu.reciprocal %55 {approx = true} : vector<2x1x4xf32> -> vector<2x1x4xf32>
    %57 = vector.broadcast %56 : vector<2x1x4xf32> to vector<2x8x4xf32>
    %58 = arith.mulf %53, %57 : vector<2x8x4xf32>
    %59 = vector.shape_cast %58 : vector<2x8x4xf32> to vector<16x4xf32>
    %cst_38 = arith.constant dense<0.000000e+00> : vector<16x32xf32>
    %60 = tpu.matmul %59, %10, %cst_38 {dimension_numbers = #tpu.dot_dimension_numbers<[1], [0], [0], [1], [0, 0, 1, 1], [], []>} : vector<16x4xf32>, vector<4x32xf32>, vector<16x32xf32> -> vector<16x32xf32>
    %61 = vector.shape_cast %60 : vector<16x32xf32> to vector<2x8x32xf32>
    %62 = arith.mulf %61, %33 : vector<2x8x32xf32>
    %cst_39 = arith.constant dense<0.000000e+00> : vector<2x32xf32>
    %63 = vector.multi_reduction <add>, %62, %cst_39 [1] : vector<2x8x32xf32> to vector<2x32xf32>
    %c0_40 = arith.constant 0 : index
    %c0_41 = arith.constant 0 : index
    %c0_42 = arith.constant 0 : index
    %64 = vector.load %arg10[%c0_40, %c0_41, %c0_42] : memref<2x32x32xf32, #tpu.memory_space<vmem>>, vector<1x32x32xf32>
    %65 = vector.shape_cast %64 : vector<1x32x32xf32> to vector<32x32xf32>
    %cst_43 = arith.constant dense<0.000000e+00> : vector<2x32xf32>
    %66 = tpu.matmul %63, %65, %cst_43 {dimension_numbers = #tpu.dot_dimension_numbers<[1], [0], [0], [1], [0, 0, 1, 1], [], []>} : vector<2x32xf32>, vector<32x32xf32>, vector<2x32xf32> -> vector<2x32xf32>
    %c0_44 = arith.constant 0 : index
    %c0_45 = arith.constant 0 : index
    %c0_46 = arith.constant 0 : index
    %67 = vector.load %arg11[%c0_44, %c0_45, %c0_46] : memref<2x1x32xf32, #tpu.memory_space<vmem>>, vector<1x1x32xf32>
    %68 = vector.shape_cast %67 : vector<1x1x32xf32> to vector<1x32xf32>
    %69 = vector.broadcast %68 : vector<1x32xf32> to vector<2x32xf32>
    %70 = arith.addf %66, %69 : vector<2x32xf32>
    %71 = arith.addf %7, %70 : vector<2x32xf32>
    %c0_47 = arith.constant 0 : index
    %c0_48 = arith.constant 0 : index
    %c0_49 = arith.constant 0 : index
    %72 = vector.load %arg14[%c0_47, %c0_48, %c0_49] : memref<2x1x32xf32, #tpu.memory_space<vmem>>, vector<1x1x32xf32>
    %73 = vector.shape_cast %72 : vector<1x1x32xf32> to vector<1x32xf32>
    %c0_50 = arith.constant 0 : index
    %c0_51 = arith.constant 0 : index
    %c0_52 = arith.constant 0 : index
    %74 = vector.load %arg15[%c0_50, %c0_51, %c0_52] : memref<2x1x32xf32, #tpu.memory_space<vmem>>, vector<1x1x32xf32>
    %75 = vector.shape_cast %74 : vector<1x1x32xf32> to vector<1x32xf32>
    %cst_53 = arith.constant dense<0.000000e+00> : vector<2xf32>
    %76 = vector.multi_reduction <add>, %71, %cst_53 [1] : vector<2x32xf32> to vector<2xf32>
    %77 = vector.shape_cast %76 : vector<2xf32> to vector<2x1xf32>
    %cst_54 = arith.constant 3.200000e+01 : f32
    %78 = vector.broadcast %cst_54 : f32 to vector<2x1xf32>
    %79 = arith.divf %77, %78 : vector<2x1xf32>
    %80 = vector.broadcast %79 : vector<2x1xf32> to vector<2x32xf32>
    %81 = arith.subf %71, %80 : vector<2x32xf32>
    %82 = arith.mulf %81, %81 : vector<2x32xf32>
    %cst_55 = arith.constant dense<0.000000e+00> : vector<2xf32>
    %83 = vector.multi_reduction <add>, %82, %cst_55 [1] : vector<2x32xf32> to vector<2xf32>
    %84 = vector.shape_cast %83 : vector<2xf32> to vector<2x1xf32>
    %cst_56 = arith.constant 3.200000e+01 : f32
    %85 = vector.broadcast %cst_56 : f32 to vector<2x1xf32>
    %86 = arith.divf %84, %85 : vector<2x1xf32>
    %cst_57 = arith.constant 9.99999974E-6 : f32
    %87 = vector.broadcast %cst_57 : f32 to vector<2x1xf32>
    %88 = arith.addf %86, %87 : vector<2x1xf32>
    %89 = math.rsqrt %88 : vector<2x1xf32>
    %90 = vector.broadcast %89 : vector<2x1xf32> to vector<2x32xf32>
    %91 = arith.mulf %81, %90 : vector<2x32xf32>
    %92 = vector.broadcast %73 : vector<1x32xf32> to vector<2x32xf32>
    %93 = arith.mulf %91, %92 : vector<2x32xf32>
    %94 = vector.broadcast %75 : vector<1x32xf32> to vector<2x32xf32>
    %95 = arith.addf %93, %94 : vector<2x32xf32>
    %c0_58 = arith.constant 0 : index
    %c0_59 = arith.constant 0 : index
    %c0_60 = arith.constant 0 : index
    %96 = vector.load %arg12[%c0_58, %c0_59, %c0_60] : memref<2x32x32xf32, #tpu.memory_space<vmem>>, vector<1x32x32xf32>
    %97 = vector.shape_cast %96 : vector<1x32x32xf32> to vector<32x32xf32>
    %cst_61 = arith.constant dense<0.000000e+00> : vector<2x32xf32>
    %98 = tpu.matmul %95, %97, %cst_61 {dimension_numbers = #tpu.dot_dimension_numbers<[1], [0], [0], [1], [0, 0, 1, 1], [], []>} : vector<2x32xf32>, vector<32x32xf32>, vector<2x32xf32> -> vector<2x32xf32>
    %c0_62 = arith.constant 0 : index
    %c0_63 = arith.constant 0 : index
    %c0_64 = arith.constant 0 : index
    %99 = vector.load %arg13[%c0_62, %c0_63, %c0_64] : memref<2x1x32xf32, #tpu.memory_space<vmem>>, vector<1x1x32xf32>
    %100 = vector.shape_cast %99 : vector<1x1x32xf32> to vector<1x32xf32>
    %101 = vector.broadcast %100 : vector<1x32xf32> to vector<2x32xf32>
    %102 = arith.addf %98, %101 : vector<2x32xf32>
    %cst_65 = arith.constant 0.000000e+00 : f32
    %103 = vector.broadcast %cst_65 : f32 to vector<2x32xf32>
    %104 = arith.maximumf %102, %103 : vector<2x32xf32>
    %105 = arith.addf %95, %104 : vector<2x32xf32>
    %c0_66 = arith.constant 0 : index
    %c0_67 = arith.constant 0 : index
    %c0_68 = arith.constant 0 : index
    %106 = vector.load %arg16[%c0_66, %c0_67, %c0_68] : memref<2x1x32xf32, #tpu.memory_space<vmem>>, vector<1x1x32xf32>
    %107 = vector.shape_cast %106 : vector<1x1x32xf32> to vector<1x32xf32>
    %c0_69 = arith.constant 0 : index
    %c0_70 = arith.constant 0 : index
    %c0_71 = arith.constant 0 : index
    %108 = vector.load %arg17[%c0_69, %c0_70, %c0_71] : memref<2x1x32xf32, #tpu.memory_space<vmem>>, vector<1x1x32xf32>
    %109 = vector.shape_cast %108 : vector<1x1x32xf32> to vector<1x32xf32>
    %cst_72 = arith.constant dense<0.000000e+00> : vector<2xf32>
    %110 = vector.multi_reduction <add>, %105, %cst_72 [1] : vector<2x32xf32> to vector<2xf32>
    %111 = vector.shape_cast %110 : vector<2xf32> to vector<2x1xf32>
    %cst_73 = arith.constant 3.200000e+01 : f32
    %112 = vector.broadcast %cst_73 : f32 to vector<2x1xf32>
    %113 = arith.divf %111, %112 : vector<2x1xf32>
    %114 = vector.broadcast %113 : vector<2x1xf32> to vector<2x32xf32>
    %115 = arith.subf %105, %114 : vector<2x32xf32>
    %116 = arith.mulf %115, %115 : vector<2x32xf32>
    %cst_74 = arith.constant dense<0.000000e+00> : vector<2xf32>
    %117 = vector.multi_reduction <add>, %116, %cst_74 [1] : vector<2x32xf32> to vector<2xf32>
    %118 = vector.shape_cast %117 : vector<2xf32> to vector<2x1xf32>
    %cst_75 = arith.constant 3.200000e+01 : f32
    %119 = vector.broadcast %cst_75 : f32 to vector<2x1xf32>
    %120 = arith.divf %118, %119 : vector<2x1xf32>
    %cst_76 = arith.constant 9.99999974E-6 : f32
    %121 = vector.broadcast %cst_76 : f32 to vector<2x1xf32>
    %122 = arith.addf %120, %121 : vector<2x1xf32>
    %123 = math.rsqrt %122 : vector<2x1xf32>
    %124 = vector.broadcast %123 : vector<2x1xf32> to vector<2x32xf32>
    %125 = arith.mulf %115, %124 : vector<2x32xf32>
    %126 = vector.broadcast %107 : vector<1x32xf32> to vector<2x32xf32>
    %127 = arith.mulf %125, %126 : vector<2x32xf32>
    %128 = vector.broadcast %109 : vector<1x32xf32> to vector<2x32xf32>
    %129 = arith.addf %127, %128 : vector<2x32xf32>
    %c1 = arith.constant 1 : index
    %c0_77 = arith.constant 0 : index
    %c0_78 = arith.constant 0 : index
    %130 = vector.load %arg25[%c1, %c0_77, %c0_78] : memref<2x2x32xf32, #tpu.memory_space<vmem>>, vector<1x2x32xf32>
    %131 = vector.shape_cast %130 : vector<1x2x32xf32> to vector<2x32xf32>
    %132 = vector.shape_cast %129 : vector<2x32xf32> to vector<1x2x32xf32>
    tpu.vector_store %arg25[%c1, %c0_77, %c0_78], %132 {strides = array<i32>} : memref<2x2x32xf32, #tpu.memory_space<vmem>>, vector<1x2x32xf32>,
    %c1_79 = arith.constant 1 : index
    %c0_80 = arith.constant 0 : index
    %c0_81 = arith.constant 0 : index
    %133 = vector.load %arg4[%c1_79, %c0_80, %c0_81] : memref<2x16x32xf32, #tpu.memory_space<vmem>>, vector<1x16x32xf32>
    %134 = vector.shape_cast %133 : vector<1x16x32xf32> to vector<16x32xf32>
    %c1_82 = arith.constant 1 : index
    %c0_83 = arith.constant 0 : index
    %c0_84 = arith.constant 0 : index
    %135 = vector.load %arg6[%c1_82, %c0_83, %c0_84] : memref<2x32x32xf32, #tpu.memory_space<vmem>>, vector<1x32x32xf32>
    %136 = vector.shape_cast %135 : vector<1x32x32xf32> to vector<32x32xf32>
    %cst_85 = arith.constant dense<0.000000e+00> : vector<2x32xf32>
    %137 = tpu.matmul %129, %136, %cst_85 {dimension_numbers = #tpu.dot_dimension_numbers<[1], [0], [0], [1], [0, 0, 1, 1], [], []>} : vector<2x32xf32>, vector<32x32xf32>, vector<2x32xf32> -> vector<2x32xf32>
    %c1_86 = arith.constant 1 : index
    %c0_87 = arith.constant 0 : index
    %c0_88 = arith.constant 0 : index
    %138 = vector.load %arg7[%c1_86, %c0_87, %c0_88] : memref<2x1x32xf32, #tpu.memory_space<vmem>>, vector<1x1x32xf32>
    %139 = vector.shape_cast %138 : vector<1x1x32xf32> to vector<1x32xf32>
    %140 = vector.broadcast %139 : vector<1x32xf32> to vector<2x32xf32>
    %141 = arith.addf %137, %140 : vector<2x32xf32>
    %c1_89 = arith.constant 1 : index
    %c0_90 = arith.constant 0 : index
    %c0_91 = arith.constant 0 : index
    %142 = vector.load %arg8[%c1_89, %c0_90, %c0_91] : memref<2x32x64xf32, #tpu.memory_space<vmem>>, vector<1x32x64xf32>
    %143 = vector.shape_cast %142 : vector<1x32x64xf32> to vector<32x64xf32>
    %cst_92 = arith.constant dense<0.000000e+00> : vector<16x64xf32>
    %144 = tpu.matmul %134, %143, %cst_92 {dimension_numbers = #tpu.dot_dimension_numbers<[1], [0], [0], [1], [0, 0, 1, 1], [], []>} : vector<16x32xf32>, vector<32x64xf32>, vector<16x64xf32> -> vector<16x64xf32>
    %c1_93 = arith.constant 1 : index
    %c0_94 = arith.constant 0 : index
    %c0_95 = arith.constant 0 : index
    %145 = vector.load %arg9[%c1_93, %c0_94, %c0_95] : memref<2x1x64xf32, #tpu.memory_space<vmem>>, vector<1x1x64xf32>
    %146 = vector.shape_cast %145 : vector<1x1x64xf32> to vector<1x64xf32>
    %147 = vector.broadcast %146 : vector<1x64xf32> to vector<16x64xf32>
    %148 = arith.addf %144, %147 : vector<16x64xf32>
    %149 = vector.extract_strided_slice %148 {offsets = [0, 0], sizes = [16, 32], strides = [1, 1]} : vector<16x64xf32> to vector<16x32xf32>
    %150 = vector.shape_cast %149 : vector<16x32xf32> to vector<2x8x32xf32>
    %151 = vector.extract_strided_slice %148 {offsets = [0, 32], sizes = [16, 32], strides = [1, 1]} : vector<16x64xf32> to vector<16x32xf32>
    %152 = vector.shape_cast %151 : vector<16x32xf32> to vector<2x8x32xf32>
    %153 = vector.shape_cast %141 : vector<2x32xf32> to vector<2x1x32xf32>
    %154 = vector.broadcast %153 : vector<2x1x32xf32> to vector<2x8x32xf32>
    %155 = arith.mulf %154, %150 : vector<2x8x32xf32>
    %156 = vector.shape_cast %155 : vector<2x8x32xf32> to vector<16x32xf32>
    %cst_96 = arith.constant dense<0.000000e+00> : vector<16x4xf32>
    %157 = tpu.matmul %156, %9, %cst_96 {dimension_numbers = #tpu.dot_dimension_numbers<[1], [0], [0], [1], [0, 0, 1, 1], [], []>} : vector<16x32xf32>, vector<32x4xf32>, vector<16x4xf32> -> vector<16x4xf32>
    %158 = vector.shape_cast %157 : vector<16x4xf32> to vector<2x8x4xf32>
    %cst_97 = arith.constant 0.176776692 : f32
    %159 = vector.broadcast %cst_97 : f32 to vector<2x8x4xf32>
    %160 = arith.mulf %158, %159 : vector<2x8x4xf32>
    %161 = vector.shape_cast %8 : vector<2x8xf32> to vector<2x8x1xf32>
    %cst_98 = arith.constant 0.000000e+00 : f32
    %162 = vector.broadcast %cst_98 : f32 to vector<2x8x1xf32>
    %163 = arith.cmpf ogt, %161, %162 : vector<2x8x1xf32>
    %cst_99 = arith.constant -1.000000e+30 : f32
    %164 = vector.shape_cast %163 : vector<2x8x1xi1> to vector<2x8x1xi1>
    %165 = vector.broadcast %164 : vector<2x8x1xi1> to vector<2x8x4xi1>
    %166 = vector.broadcast %cst_99 : f32 to vector<2x8x4xf32>
    %167 = arith.select %165, %160, %166 : vector<2x8x4xi1>, vector<2x8x4xf32>
    %cst_100 = arith.constant dense<0xFF800000> : vector<2x4xf32>
    %168 = vector.multi_reduction <maximumf>, %167, %cst_100 [1] : vector<2x8x4xf32> to vector<2x4xf32>
    %169 = vector.shape_cast %168 : vector<2x4xf32> to vector<2x1x4xf32>
    %170 = vector.broadcast %169 : vector<2x1x4xf32> to vector<2x8x4xf32>
    %171 = arith.subf %167, %170 : vector<2x8x4xf32>
    %172 = math.exp %171 : vector<2x8x4xf32>
    %cst_101 = arith.constant dense<0.000000e+00> : vector<2x4xf32>
    %173 = vector.multi_reduction <add>, %172, %cst_101 [1] : vector<2x8x4xf32> to vector<2x4xf32>
    %174 = vector.shape_cast %173 : vector<2x4xf32> to vector<2x1x4xf32>
    %175 = tpu.reciprocal %174 {approx = true} : vector<2x1x4xf32> -> vector<2x1x4xf32>
    %176 = vector.broadcast %175 : vector<2x1x4xf32> to vector<2x8x4xf32>
    %177 = arith.mulf %172, %176 : vector<2x8x4xf32>
    %178 = vector.shape_cast %177 : vector<2x8x4xf32> to vector<16x4xf32>
    %cst_102 = arith.constant dense<0.000000e+00> : vector<16x32xf32>
    %179 = tpu.matmul %178, %10, %cst_102 {dimension_numbers = #tpu.dot_dimension_numbers<[1], [0], [0], [1], [0, 0, 1, 1], [], []>} : vector<16x4xf32>, vector<4x32xf32>, vector<16x32xf32> -> vector<16x32xf32>
    %180 = vector.shape_cast %179 : vector<16x32xf32> to vector<2x8x32xf32>
    %181 = arith.mulf %180, %152 : vector<2x8x32xf32>
    %cst_103 = arith.constant dense<0.000000e+00> : vector<2x32xf32>
    %182 = vector.multi_reduction <add>, %181, %cst_103 [1] : vector<2x8x32xf32> to vector<2x32xf32>
    %c1_104 = arith.constant 1 : index
    %c0_105 = arith.constant 0 : index
    %c0_106 = arith.constant 0 : index
    %183 = vector.load %arg10[%c1_104, %c0_105, %c0_106] : memref<2x32x32xf32, #tpu.memory_space<vmem>>, vector<1x32x32xf32>
    %184 = vector.shape_cast %183 : vector<1x32x32xf32> to vector<32x32xf32>
    %cst_107 = arith.constant dense<0.000000e+00> : vector<2x32xf32>
    %185 = tpu.matmul %182, %184, %cst_107 {dimension_numbers = #tpu.dot_dimension_numbers<[1], [0], [0], [1], [0, 0, 1, 1], [], []>} : vector<2x32xf32>, vector<32x32xf32>, vector<2x32xf32> -> vector<2x32xf32>
    %c1_108 = arith.constant 1 : index
    %c0_109 = arith.constant 0 : index
    %c0_110 = arith.constant 0 : index
    %186 = vector.load %arg11[%c1_108, %c0_109, %c0_110] : memref<2x1x32xf32, #tpu.memory_space<vmem>>, vector<1x1x32xf32>
    %187 = vector.shape_cast %186 : vector<1x1x32xf32> to vector<1x32xf32>
    %188 = vector.broadcast %187 : vector<1x32xf32> to vector<2x32xf32>
    %189 = arith.addf %185, %188 : vector<2x32xf32>
    %190 = arith.addf %129, %189 : vector<2x32xf32>
    %c1_111 = arith.constant 1 : index
    %c0_112 = arith.constant 0 : index
    %c0_113 = arith.constant 0 : index
    %191 = vector.load %arg14[%c1_111, %c0_112, %c0_113] : memref<2x1x32xf32, #tpu.memory_space<vmem>>, vector<1x1x32xf32>
    %192 = vector.shape_cast %191 : vector<1x1x32xf32> to vector<1x32xf32>
    %c1_114 = arith.constant 1 : index
    %c0_115 = arith.constant 0 : index
    %c0_116 = arith.constant 0 : index
    %193 = vector.load %arg15[%c1_114, %c0_115, %c0_116] : memref<2x1x32xf32, #tpu.memory_space<vmem>>, vector<1x1x32xf32>
    %194 = vector.shape_cast %193 : vector<1x1x32xf32> to vector<1x32xf32>
    %cst_117 = arith.constant dense<0.000000e+00> : vector<2xf32>
    %195 = vector.multi_reduction <add>, %190, %cst_117 [1] : vector<2x32xf32> to vector<2xf32>
    %196 = vector.shape_cast %195 : vector<2xf32> to vector<2x1xf32>
    %cst_118 = arith.constant 3.200000e+01 : f32
    %197 = vector.broadcast %cst_118 : f32 to vector<2x1xf32>
    %198 = arith.divf %196, %197 : vector<2x1xf32>
    %199 = vector.broadcast %198 : vector<2x1xf32> to vector<2x32xf32>
    %200 = arith.subf %190, %199 : vector<2x32xf32>
    %201 = arith.mulf %200, %200 : vector<2x32xf32>
    %cst_119 = arith.constant dense<0.000000e+00> : vector<2xf32>
    %202 = vector.multi_reduction <add>, %201, %cst_119 [1] : vector<2x32xf32> to vector<2xf32>
    %203 = vector.shape_cast %202 : vector<2xf32> to vector<2x1xf32>
    %cst_120 = arith.constant 3.200000e+01 : f32
    %204 = vector.broadcast %cst_120 : f32 to vector<2x1xf32>
    %205 = arith.divf %203, %204 : vector<2x1xf32>
    %cst_121 = arith.constant 9.99999974E-6 : f32
    %206 = vector.broadcast %cst_121 : f32 to vector<2x1xf32>
    %207 = arith.addf %205, %206 : vector<2x1xf32>
    %208 = math.rsqrt %207 : vector<2x1xf32>
    %209 = vector.broadcast %208 : vector<2x1xf32> to vector<2x32xf32>
    %210 = arith.mulf %200, %209 : vector<2x32xf32>
    %211 = vector.broadcast %192 : vector<1x32xf32> to vector<2x32xf32>
    %212 = arith.mulf %210, %211 : vector<2x32xf32>
    %213 = vector.broadcast %194 : vector<1x32xf32> to vector<2x32xf32>
    %214 = arith.addf %212, %213 : vector<2x32xf32>
    %c1_122 = arith.constant 1 : index
    %c0_123 = arith.constant 0 : index
    %c0_124 = arith.constant 0 : index
    %215 = vector.load %arg12[%c1_122, %c0_123, %c0_124] : memref<2x32x32xf32, #tpu.memory_space<vmem>>, vector<1x32x32xf32>
    %216 = vector.shape_cast %215 : vector<1x32x32xf32> to vector<32x32xf32>
    %cst_125 = arith.constant dense<0.000000e+00> : vector<2x32xf32>
    %217 = tpu.matmul %214, %216, %cst_125 {dimension_numbers = #tpu.dot_dimension_numbers<[1], [0], [0], [1], [0, 0, 1, 1], [], []>} : vector<2x32xf32>, vector<32x32xf32>, vector<2x32xf32> -> vector<2x32xf32>
    %c1_126 = arith.constant 1 : index
    %c0_127 = arith.constant 0 : index
    %c0_128 = arith.constant 0 : index
    %218 = vector.load %arg13[%c1_126, %c0_127, %c0_128] : memref<2x1x32xf32, #tpu.memory_space<vmem>>, vector<1x1x32xf32>
    %219 = vector.shape_cast %218 : vector<1x1x32xf32> to vector<1x32xf32>
    %220 = vector.broadcast %219 : vector<1x32xf32> to vector<2x32xf32>
    %221 = arith.addf %217, %220 : vector<2x32xf32>
    %cst_129 = arith.constant 0.000000e+00 : f32
    %222 = vector.broadcast %cst_129 : f32 to vector<2x32xf32>
    %223 = arith.maximumf %221, %222 : vector<2x32xf32>
    %224 = arith.addf %214, %223 : vector<2x32xf32>
    %c1_130 = arith.constant 1 : index
    %c0_131 = arith.constant 0 : index
    %c0_132 = arith.constant 0 : index
    %225 = vector.load %arg16[%c1_130, %c0_131, %c0_132] : memref<2x1x32xf32, #tpu.memory_space<vmem>>, vector<1x1x32xf32>
    %226 = vector.shape_cast %225 : vector<1x1x32xf32> to vector<1x32xf32>
    %c1_133 = arith.constant 1 : index
    %c0_134 = arith.constant 0 : index
    %c0_135 = arith.constant 0 : index
    %227 = vector.load %arg17[%c1_133, %c0_134, %c0_135] : memref<2x1x32xf32, #tpu.memory_space<vmem>>, vector<1x1x32xf32>
    %228 = vector.shape_cast %227 : vector<1x1x32xf32> to vector<1x32xf32>
    %cst_136 = arith.constant dense<0.000000e+00> : vector<2xf32>
    %229 = vector.multi_reduction <add>, %224, %cst_136 [1] : vector<2x32xf32> to vector<2xf32>
    %230 = vector.shape_cast %229 : vector<2xf32> to vector<2x1xf32>
    %cst_137 = arith.constant 3.200000e+01 : f32
    %231 = vector.broadcast %cst_137 : f32 to vector<2x1xf32>
    %232 = arith.divf %230, %231 : vector<2x1xf32>
    %233 = vector.broadcast %232 : vector<2x1xf32> to vector<2x32xf32>
    %234 = arith.subf %224, %233 : vector<2x32xf32>
    %235 = arith.mulf %234, %234 : vector<2x32xf32>
    %cst_138 = arith.constant dense<0.000000e+00> : vector<2xf32>
    %236 = vector.multi_reduction <add>, %235, %cst_138 [1] : vector<2x32xf32> to vector<2xf32>
    %237 = vector.shape_cast %236 : vector<2xf32> to vector<2x1xf32>
    %cst_139 = arith.constant 3.200000e+01 : f32
    %238 = vector.broadcast %cst_139 : f32 to vector<2x1xf32>
    %239 = arith.divf %237, %238 : vector<2x1xf32>
    %cst_140 = arith.constant 9.99999974E-6 : f32
    %240 = vector.broadcast %cst_140 : f32 to vector<2x1xf32>
    %241 = arith.addf %239, %240 : vector<2x1xf32>
    %242 = math.rsqrt %241 : vector<2x1xf32>
    %243 = vector.broadcast %242 : vector<2x1xf32> to vector<2x32xf32>
    %244 = arith.mulf %234, %243 : vector<2x32xf32>
    %245 = vector.broadcast %226 : vector<1x32xf32> to vector<2x32xf32>
    %246 = arith.mulf %244, %245 : vector<2x32xf32>
    %247 = vector.broadcast %228 : vector<1x32xf32> to vector<2x32xf32>
    %248 = arith.addf %246, %247 : vector<2x32xf32>
    %c0_141 = arith.constant 0 : index
    %c0_142 = arith.constant 0 : index
    %249 = vector.load %arg20[%c0_141, %c0_142] : memref<32x64xf32, #tpu.memory_space<vmem>>, vector<32x64xf32>
    %cst_143 = arith.constant dense<0.000000e+00> : vector<2x64xf32>
    %250 = tpu.matmul %248, %249, %cst_143 {dimension_numbers = #tpu.dot_dimension_numbers<[1], [0], [0], [1], [0, 0, 1, 1], [], []>} : vector<2x32xf32>, vector<32x64xf32>, vector<2x64xf32> -> vector<2x64xf32>
    %c0_144 = arith.constant 0 : index
    %c0_145 = arith.constant 0 : index
    %251 = vector.load %arg21[%c0_144, %c0_145] : memref<1x64xf32, #tpu.memory_space<vmem>>, vector<1x64xf32>
    %252 = vector.broadcast %251 : vector<1x64xf32> to vector<2x64xf32>
    %253 = arith.addf %250, %252 : vector<2x64xf32>
    %cst_146 = arith.constant 0.000000e+00 : f32
    %254 = vector.broadcast %cst_146 : f32 to vector<2x64xf32>
    %255 = arith.maximumf %253, %254 : vector<2x64xf32>
    %c0_147 = arith.constant 0 : index
    %c0_148 = arith.constant 0 : index
    %256 = vector.load %arg22[%c0_147, %c0_148] : memref<64x128xf32, #tpu.memory_space<vmem>>, vector<64x128xf32>
    %cst_149 = arith.constant dense<0.000000e+00> : vector<2x128xf32>
    %257 = tpu.matmul %255, %256, %cst_149 {dimension_numbers = #tpu.dot_dimension_numbers<[1], [0], [0], [1], [0, 0, 1, 1], [], []>} : vector<2x64xf32>, vector<64x128xf32>, vector<2x128xf32> -> vector<2x128xf32>
    %c0_150 = arith.constant 0 : index
    %c0_151 = arith.constant 0 : index
    %258 = vector.load %arg23[%c0_150, %c0_151] : memref<1x128xf32, #tpu.memory_space<vmem>>, vector<1x128xf32>
    %259 = vector.broadcast %258 : vector<1x128xf32> to vector<2x128xf32>
    %260 = arith.addf %257, %259 : vector<2x128xf32>
    %c0_152 = arith.constant 0 : index
    %c0_153 = arith.constant 0 : index
    %261 = vector.load %arg24[%c0_152, %c0_153] : memref<2x128xf32, #tpu.memory_space<vmem>>, vector<2x128xf32>
    tpu.vector_store %arg24[%c0_152, %c0_153], %260 {strides = array<i32>} : memref<2x128xf32, #tpu.memory_space<vmem>>, vector<2x128xf32>,
    return
  }
  func.func @transform_0(%arg0: i32) -> (i32, i32) {
    %c0_i32 = arith.constant 0 : i32
    %c0_i32_0 = arith.constant 0 : i32
    %c0_i32_1 = arith.constant 0 : i32
    return %c0_i32, %c0_i32_0 : i32, i32
  }
  func.func @transform_1(%arg0: i32) -> (i32, i32) {
    %c0_i32 = arith.constant 0 : i32
    %c0_i32_0 = arith.constant 0 : i32
    %c0_i32_1 = arith.constant 0 : i32
    return %c0_i32, %c0_i32_0 : i32, i32
  }
  func.func @transform_2(%arg0: i32) -> (i32, i32) {
    %c0_i32 = arith.constant 0 : i32
    %c0_i32_0 = arith.constant 0 : i32
    %c0_i32_1 = arith.constant 0 : i32
    return %c0_i32, %c0_i32_0 : i32, i32
  }
  func.func @transform_3(%arg0: i32) -> (i32, i32, i32) {
    %c0_i32 = arith.constant 0 : i32
    %c0_i32_0 = arith.constant 0 : i32
    %c0_i32_1 = arith.constant 0 : i32
    %c0_i32_2 = arith.constant 0 : i32
    return %c0_i32, %c0_i32_0, %c0_i32_1 : i32, i32, i32
  }
  func.func @transform_4(%arg0: i32) -> (i32, i32) {
    %c0_i32 = arith.constant 0 : i32
    %c0_i32_0 = arith.constant 0 : i32
    %c0_i32_1 = arith.constant 0 : i32
    return %c0_i32, %c0_i32_0 : i32, i32
  }
  func.func @transform_5(%arg0: i32) -> (i32, i32, i32) {
    %c0_i32 = arith.constant 0 : i32
    %c0_i32_0 = arith.constant 0 : i32
    %c0_i32_1 = arith.constant 0 : i32
    %c0_i32_2 = arith.constant 0 : i32
    return %c0_i32, %c0_i32_0, %c0_i32_1 : i32, i32, i32
  }
  func.func @transform_6(%arg0: i32) -> (i32, i32, i32) {
    %c0_i32 = arith.constant 0 : i32
    %c0_i32_0 = arith.constant 0 : i32
    %c0_i32_1 = arith.constant 0 : i32
    %c0_i32_2 = arith.constant 0 : i32
    return %c0_i32, %c0_i32_0, %c0_i32_1 : i32, i32, i32
  }
  func.func @transform_7(%arg0: i32) -> (i32, i32, i32) {
    %c0_i32 = arith.constant 0 : i32
    %c0_i32_0 = arith.constant 0 : i32
    %c0_i32_1 = arith.constant 0 : i32
    %c0_i32_2 = arith.constant 0 : i32
    return %c0_i32, %c0_i32_0, %c0_i32_1 : i32, i32, i32
  }
  func.func @transform_8(%arg0: i32) -> (i32, i32, i32) {
    %c0_i32 = arith.constant 0 : i32
    %c0_i32_0 = arith.constant 0 : i32
    %c0_i32_1 = arith.constant 0 : i32
    %c0_i32_2 = arith.constant 0 : i32
    return %c0_i32, %c0_i32_0, %c0_i32_1 : i32, i32, i32
  }
  func.func @transform_9(%arg0: i32) -> (i32, i32, i32) {
    %c0_i32 = arith.constant 0 : i32
    %c0_i32_0 = arith.constant 0 : i32
    %c0_i32_1 = arith.constant 0 : i32
    %c0_i32_2 = arith.constant 0 : i32
    return %c0_i32, %c0_i32_0, %c0_i32_1 : i32, i32, i32
  }
  func.func @transform_10(%arg0: i32) -> (i32, i32, i32) {
    %c0_i32 = arith.constant 0 : i32
    %c0_i32_0 = arith.constant 0 : i32
    %c0_i32_1 = arith.constant 0 : i32
    %c0_i32_2 = arith.constant 0 : i32
    return %c0_i32, %c0_i32_0, %c0_i32_1 : i32, i32, i32
  }
  func.func @transform_11(%arg0: i32) -> (i32, i32, i32) {
    %c0_i32 = arith.constant 0 : i32
    %c0_i32_0 = arith.constant 0 : i32
    %c0_i32_1 = arith.constant 0 : i32
    %c0_i32_2 = arith.constant 0 : i32
    return %c0_i32, %c0_i32_0, %c0_i32_1 : i32, i32, i32
  }
  func.func @transform_12(%arg0: i32) -> (i32, i32, i32) {
    %c0_i32 = arith.constant 0 : i32
    %c0_i32_0 = arith.constant 0 : i32
    %c0_i32_1 = arith.constant 0 : i32
    %c0_i32_2 = arith.constant 0 : i32
    return %c0_i32, %c0_i32_0, %c0_i32_1 : i32, i32, i32
  }
  func.func @transform_13(%arg0: i32) -> (i32, i32, i32) {
    %c0_i32 = arith.constant 0 : i32
    %c0_i32_0 = arith.constant 0 : i32
    %c0_i32_1 = arith.constant 0 : i32
    %c0_i32_2 = arith.constant 0 : i32
    return %c0_i32, %c0_i32_0, %c0_i32_1 : i32, i32, i32
  }
  func.func @transform_14(%arg0: i32) -> (i32, i32, i32) {
    %c0_i32 = arith.constant 0 : i32
    %c0_i32_0 = arith.constant 0 : i32
    %c0_i32_1 = arith.constant 0 : i32
    %c0_i32_2 = arith.constant 0 : i32
    return %c0_i32, %c0_i32_0, %c0_i32_1 : i32, i32, i32
  }
  func.func @transform_15(%arg0: i32) -> (i32, i32, i32) {
    %c0_i32 = arith.constant 0 : i32
    %c0_i32_0 = arith.constant 0 : i32
    %c0_i32_1 = arith.constant 0 : i32
    %c0_i32_2 = arith.constant 0 : i32
    return %c0_i32, %c0_i32_0, %c0_i32_1 : i32, i32, i32
  }
  func.func @transform_16(%arg0: i32) -> (i32, i32, i32) {
    %c0_i32 = arith.constant 0 : i32
    %c0_i32_0 = arith.constant 0 : i32
    %c0_i32_1 = arith.constant 0 : i32
    %c0_i32_2 = arith.constant 0 : i32
    return %c0_i32, %c0_i32_0, %c0_i32_1 : i32, i32, i32
  }
  func.func @transform_17(%arg0: i32) -> (i32, i32) {
    %c0_i32 = arith.constant 0 : i32
    %c0_i32_0 = arith.constant 0 : i32
    %c0_i32_1 = arith.constant 0 : i32
    return %c0_i32, %c0_i32_0 : i32, i32
  }
  func.func @transform_18(%arg0: i32) -> (i32, i32) {
    %c0_i32 = arith.constant 0 : i32
    %c0_i32_0 = arith.constant 0 : i32
    %c0_i32_1 = arith.constant 0 : i32
    return %c0_i32, %c0_i32_0 : i32, i32
  }
  func.func @transform_19(%arg0: i32) -> (i32, i32) {
    %c0_i32 = arith.constant 0 : i32
    %c0_i32_0 = arith.constant 0 : i32
    %c0_i32_1 = arith.constant 0 : i32
    return %c0_i32, %c0_i32_0 : i32, i32
  }
  func.func @transform_20(%arg0: i32) -> (i32, i32) {
    %c0_i32 = arith.constant 0 : i32
    %c0_i32_0 = arith.constant 0 : i32
    %c0_i32_1 = arith.constant 0 : i32
    return %c0_i32, %c0_i32_0 : i32, i32
  }
  func.func @transform_21(%arg0: i32) -> (i32, i32) {
    %c0_i32 = arith.constant 0 : i32
    %c0_i32_0 = arith.constant 0 : i32
    %c0_i32_1 = arith.constant 0 : i32
    return %c0_i32, %c0_i32_0 : i32, i32
  }
  func.func @transform_22(%arg0: i32) -> (i32, i32) {
    %c0_i32 = arith.constant 0 : i32
    %c0_i32_0 = arith.constant 0 : i32
    %c0_i32_1 = arith.constant 0 : i32
    return %c0_i32, %c0_i32_0 : i32, i32
  }
  func.func @transform_23(%arg0: i32) -> (i32, i32) {
    %c0_i32 = arith.constant 0 : i32
    %c0_i32_0 = arith.constant 0 : i32
    %c0_i32_1 = arith.constant 0 : i32
    return %c0_i32, %c0_i32_0 : i32, i32
  }
  func.func @transform_24(%arg0: i32) -> (i32, i32, i32) {
    %c0_i32 = arith.constant 0 : i32
    %c0_i32_0 = arith.constant 0 : i32
    %c0_i32_1 = arith.constant 0 : i32
    %c0_i32_2 = arith.constant 0 : i32
    return %c0_i32, %c0_i32_0, %c0_i32_1 : i32, i32, i32
  }
}

</mosaic_0001>

<llo_original>
// kernel: actor_critic_forward.4
$region0: #{actor_critic_forward.4}
  #allocation0 [shape = 'u32[]', space=smem, size = 0x4, offset = 0x4, fixed_abs, tag = 'smem constant byte address 0x4 - core index']
  #allocation1 [shape = 'u32[144,128]{1,0:T(1,128)}', space=vmem, size = 0x12000, scoped, tag = 'internal scratch']
  %s0 = inlined_call_operand.vmem [shape: f32[72,128], index: 0, kind: input, shape index: {}]
  %s1 = inlined_call_operand.vmem [shape: f32[128,128], index: 1, kind: input, shape index: {}]
  %s2 = inlined_call_operand.vmem [shape: f32[1,128], index: 2, kind: input, shape index: {}]
  %s3 = inlined_call_operand.vmem [shape: f32[72,128], index: 3, kind: output, shape index: {}]
  %s4 = sld [smem:[#allocation0]]
  $region22: #{actor_critic_forward.4} parent=0
    _
  %s6 = ssub.s32 1, %s4
  %s7 = scalar_select 0, %s6, %s4
  // Predicated region
  $region2: #{actor_critic_forward.4} parent=0 // pred_check
    _
  $region3: #{actor_critic_forward.4} parent=0 // pred_check_branch
    %9 = sbr.rel (0) target = $region5
  $region4: #{actor_critic_forward.4} parent=0 // pred_region
    _
  $region5: #{actor_critic_forward.4} parent=0 // pred_fallthru
    _
  // Predicated region
  $region6: #{actor_critic_forward.4} parent=0 // pred_check
    _
  $region7: #{actor_critic_forward.4} parent=0 // pred_check_branch
    %11 = sbr.rel (0) target = $region9
  $region8: #{actor_critic_forward.4} parent=0 // pred_region
    _
  $region9: #{actor_critic_forward.4} parent=0 // pred_fallthru
    _
  // Predicated region
  $region10: #{actor_critic_forward.4} parent=0 // pred_check
    _
  $region11: #{actor_critic_forward.4} parent=0 // pred_check_branch
    %13 = sbr.rel (0) target = $region13
  $region12: #{actor_critic_forward.4} parent=0 // pred_region
    _
  $region13: #{actor_critic_forward.4} parent=0 // pred_fallthru
    _
  %v14 = vld [vmem:[%s0] sm:$0xff]
  %v15 = vld [vmem:[%s0 + $0x8] sm:$0xff]
  %v16 = vld [vmem:[%s0 + $0x10] sm:$0xff]
  %v17 = vld [vmem:[%s0 + $0x18] sm:$0xff]
  %v18 = vld [vmem:[%s0 + $0x20] sm:$0xff]
  %v19 = vld [vmem:[%s0 + $0x28] sm:$0xff]
  %v20 = vld [vmem:[%s0 + $0x30] sm:$0xff]
  %v21 = vld [vmem:[%s0 + $0x38] sm:$0xff]
  %v22 = vld [vmem:[%s0 + $0x40] sm:$0xff]
  %v23 = vld [vmem:[%s1] sm:$0xff]
  %v24 = vld [vmem:[%s1 + $0x8] sm:$0xff]
  %v25 = vld [vmem:[%s1 + $0x10] sm:$0xff]
  %v26 = vld [vmem:[%s1 + $0x18] sm:$0xff]
  %v27 = vld [vmem:[%s1 + $0x20] sm:$0xff]
  %v28 = vld [vmem:[%s1 + $0x28] sm:$0xff]
  %v29 = vld [vmem:[%s1 + $0x30] sm:$0xff]
  %v30 = vld [vmem:[%s1 + $0x38] sm:$0xff]
  %v31 = vld [vmem:[%s1 + $0x40] sm:$0xff]
  %v32 = vld [vmem:[%s1 + $0x48] sm:$0xff]
  %v33 = vld [vmem:[%s1 + $0x50] sm:$0xff]
  %v34 = vld [vmem:[%s1 + $0x58] sm:$0xff]
  %v35 = vld [vmem:[%s1 + $0x60] sm:$0xff]
  %v36 = vld [vmem:[%s1 + $0x68] sm:$0xff]
  %v37 = vld [vmem:[%s1 + $0x70] sm:$0xff]
  %v38 = vld [vmem:[%s1 + $0x78] sm:$0xff]
  %v39 = vld [vmem:[%s2] sm:$0x1]
  %v41 = vlaneseq
  %v42 = vshrl.u32 %v41, 7
  %v43 = vsub.s32 0, %v42
  %v44 = vrot.slane %v39, %v43
  %46 = vmatprep.subr.mxu0 0.0
  %47 = vmatpush1.msra.mxu0 %v23
  %48 = vmatprep.subr.mxu0 0.0
  %49 = vmatpush1.msra.mxu0 %v24
  %50 = vmatprep.subr.mxu0 0.0
  %51 = vmatpush1.msra.mxu0 %v25
  %52 = vmatprep.subr.mxu0 0.0
  %53 = vmatpush1.msra.mxu0 %v26
  %54 = vmatprep.subr.mxu0 0.0
  %55 = vmatpush1.msra.mxu0 %v27
  %56 = vmatprep.subr.mxu0 0.0
  %57 = vmatpush1.msra.mxu0 %v28
  %58 = vmatprep.subr.mxu0 0.0
  %59 = vmatpush1.msra.mxu0 %v29
  %60 = vmatprep.subr.mxu0 0.0
  %61 = vmatpush1.msra.mxu0 %v30
  %62 = vmatprep.subr.mxu0 0.0
  %63 = vmatpush1.msra.mxu0 %v31
  %64 = vmatprep.subr.mxu0 0.0
  %65 = vmatpush1.msra.mxu0 %v32
  %66 = vmatprep.subr.mxu0 0.0
  %67 = vmatpush1.msra.mxu0 %v33
  %68 = vmatprep.subr.mxu0 0.0
  %69 = vmatpush1.msra.mxu0 %v34
  %70 = vmatprep.subr.mxu0 0.0
  %71 = vmatpush1.msra.mxu0 %v35
  %72 = vmatprep.subr.mxu0 0.0
  %73 = vmatpush1.msra.mxu0 %v36
  %74 = vmatprep.subr.mxu0 0.0
  %75 = vmatpush1.msra.mxu0 %v37
  %76 = vmatprep.subr.mxu0 0.0
  %77 = vmatpush1.msra.mxu0 %v38
  %78 = vmatprep.subr.mxu0 0.0
  %79 = vmatpush1.msra.mxu0 0.0
  %80 = vmatprep.subr.mxu0 0.0
  %81 = vmatpush1.msra.mxu0 0.0
  %82 = vmatprep.subr.mxu0 0.0
  %83 = vmatpush1.msra.mxu0 0.0
  %84 = vmatprep.subr.mxu0 0.0
  %85 = vmatpush1.msra.mxu0 0.0
  %86 = vmatprep.subr.mxu0 0.0
  %87 = vmatpush1.msra.mxu0 0.0
  %88 = vmatprep.subr.mxu0 0.0
  %89 = vmatpush1.msra.mxu0 0.0
  %90 = vmatprep.subr.mxu0 0.0
  %91 = vmatpush1.msra.mxu0 0.0
  %92 = vmatprep.subr.mxu0 0.0
  %93 = vmatpush1.msra.mxu0 0.0
  %94 = vmatprep.subr.mxu0 0.0
  %95 = vmatpush1.msra.mxu0 0.0
  %96 = vmatprep.subr.mxu0 0.0
  %97 = vmatpush1.msra.mxu0 0.0
  %98 = vmatprep.subr.mxu0 0.0
  %99 = vmatpush1.msra.mxu0 0.0
  %100 = vmatprep.subr.mxu0 0.0
  %101 = vmatpush1.msra.mxu0 0.0
  %102 = vmatprep.subr.mxu0 0.0
  %103 = vmatpush1.msra.mxu0 0.0
  %104 = vmatprep.subr.mxu0 0.0
  %105 = vmatpush1.msra.mxu0 0.0
  %106 = vmatprep.subr.mxu0 0.0
  %107 = vmatpush1.msra.mxu0 0.0
  %108 = vmatprep.subr.mxu0 0.0
  %109 = vmatpush1.msra.mxu0 0.0
  %110 = vmatprep.mubr.f32.mxu0 0.0
  %111 = vmatmul.mubr.f32.gmra.mrb[0].mxu0 %v14
  %v112 = vpop.f32.mrb[0].mxu0
  %v113 = vadd.f32 %v44, %v112
  %v114 = vpop.f32.mrb[0].mxu0
  %115 = vmatprep.mubr.f32.mxu0 0.0
  %116 = vmatmul.mubr.f32.gmra.mrb[0].mxu0 %v15
  %v117 = vpop.f32.mrb[0].mxu0
  %v118 = vadd.f32 %v44, %v117
  %v119 = vpop.f32.mrb[0].mxu0
  %120 = vmatprep.mubr.f32.mxu0 0.0
  %121 = vmatmul.mubr.f32.gmra.mrb[0].mxu0 %v16
  %v122 = vpop.f32.mrb[0].mxu0
  %v123 = vadd.f32 %v44, %v122
  %v124 = vpop.f32.mrb[0].mxu0
  %125 = vmatprep.mubr.f32.mxu0 0.0
  %126 = vmatmul.mubr.f32.gmra.mrb[0].mxu0 %v17
  %v127 = vpop.f32.mrb[0].mxu0
  %v128 = vadd.f32 %v44, %v127
  %v129 = vpop.f32.mrb[0].mxu0
  %130 = vmatprep.mubr.f32.mxu0 0.0
  %131 = vmatmul.mubr.f32.gmra.mrb[0].mxu0 %v18
  %v132 = vpop.f32.mrb[0].mxu0
  %v133 = vadd.f32 %v44, %v132
  %v134 = vpop.f32.mrb[0].mxu0
  %135 = vmatprep.mubr.f32.mxu0 0.0
  %136 = vmatmul.mubr.f32.gmra.mrb[0].mxu0 %v19
  %v137 = vpop.f32.mrb[0].mxu0
  %v138 = vadd.f32 %v44, %v137
  %v139 = vpop.f32.mrb[0].mxu0
  %140 = vmatprep.mubr.f32.mxu0 0.0
  %141 = vmatmul.mubr.f32.gmra.mrb[0].mxu0 %v20
  %v142 = vpop.f32.mrb[0].mxu0
  %v143 = vadd.f32 %v44, %v142
  %v144 = vpop.f32.mrb[0].mxu0
  %145 = vmatprep.mubr.f32.mxu0 0.0
  %146 = vmatmul.mubr.f32.gmra.mrb[0].mxu0 %v21
  %v147 = vpop.f32.mrb[0].mxu0
  %v148 = vadd.f32 %v44, %v147
  %v149 = vpop.f32.mrb[0].mxu0
  %150 = vmatprep.mubr.f32.mxu0 0.0
  %151 = vmatmul.mubr.f32.gmra.mrb[0].mxu0 %v22
  %v152 = vpop.f32.mrb[0].mxu0
  %v153 = vadd.f32 %v44, %v152
  %v154 = vpop.f32.mrb[0].mxu0
  %155 = vdwg.mxu0
  %v156 = vmax.f32 %v113, 0.0
  %v157 = vmax.f32 %v118, 0.0
  %v158 = vmax.f32 %v123, 0.0
  %v159 = vmax.f32 %v128, 0.0
  %v160 = vmax.f32 %v133, 0.0
  %v161 = vmax.f32 %v138, 0.0
  %v162 = vmax.f32 %v143, 0.0
  %v163 = vmax.f32 %v148, 0.0
  %v164 = vmax.f32 %v153, 0.0
  %165 = vst [vmem:[%s3] sm:$0xff] %v156
  %166 = vst [vmem:[%s3 + $0x8] sm:$0xff] %v157
  %167 = vst [vmem:[%s3 + $0x10] sm:$0xff] %v158
  %168 = vst [vmem:[%s3 + $0x18] sm:$0xff] %v159
  %169 = vst [vmem:[%s3 + $0x20] sm:$0xff] %v160
  %170 = vst [vmem:[%s3 + $0x28] sm:$0xff] %v161
  %171 = vst [vmem:[%s3 + $0x30] sm:$0xff] %v162
  %172 = vst [vmem:[%s3 + $0x38] sm:$0xff] %v163
  %173 = vst [vmem:[%s3 + $0x40] sm:$0xff] %v164
  // Predicated region
  $region14: #{actor_critic_forward.4} parent=0 // pred_check
    _
  $region15: #{actor_critic_forward.4} parent=0 // pred_check_branch
    %175 = sbr.rel (0) target = $region17
  $region16: #{actor_critic_forward.4} parent=0 // pred_region
    _
  $region17: #{actor_critic_forward.4} parent=0 // pred_fallthru
    _
  // Predicated region
  $region18: #{actor_critic_forward.4} parent=0 // pred_check
    _
  $region19: #{actor_critic_forward.4} parent=0 // pred_check_branch
    %177 = sbr.rel (0) target = $region21
  $region20: #{actor_critic_forward.4} parent=0 // pred_region
    _
  $region21: #{actor_critic_forward.4} parent=0 // pred_fallthru
    _

// kernel: actor_critic_forward.5
$region0: #{actor_critic_forward.5}
  #allocation0 [shape = 'u32[]', space=smem, size = 0x4, offset = 0x4, fixed_abs, tag = 'smem constant byte address 0x4 - core index']
  #allocation1 [shape = 'u32[144,128]{1,0:T(1,128)}', space=vmem, size = 0x12000, scoped, tag = 'internal scratch']
  %s0 = inlined_call_operand.vmem [shape: f32[32,1152], index: 0, kind: input, shape index: {}]
  %s1 = inlined_call_operand.vmem [shape: f32[1152,256], index: 1, kind: input, shape index: {}]
  %s2 = inlined_call_operand.vmem [shape: f32[1,256], index: 2, kind: input, shape index: {}]
  %s3 = inlined_call_operand.vmem [shape: f32[32,256], index: 3, kind: output, shape index: {}]
  %s4 = sld [smem:[#allocation0]]
  $region22: #{actor_critic_forward.5} parent=0
    _
  %s6 = ssub.s32 1, %s4
  %s7 = scalar_select 0, %s6, %s4
  // Predicated region
  $region2: #{actor_critic_forward.5} parent=0 // pred_check
    _
  $region3: #{actor_critic_forward.5} parent=0 // pred_check_branch
    %9 = sbr.rel (0) target = $region5
  $region4: #{actor_critic_forward.5} parent=0 // pred_region
    _
  $region5: #{actor_critic_forward.5} parent=0 // pred_fallthru
    _
  // Predicated region
  $region6: #{actor_critic_forward.5} parent=0 // pred_check
    _
  $region7: #{actor_critic_forward.5} parent=0 // pred_check_branch
    %11 = sbr.rel (0) target = $region9
  $region8: #{actor_critic_forward.5} parent=0 // pred_region
    _
  $region9: #{actor_critic_forward.5} parent=0 // pred_fallthru
    _
  // Predicated region
  $region10: #{actor_critic_forward.5} parent=0 // pred_check
    _
  $region11: #{actor_critic_forward.5} parent=0 // pred_check_branch
    %13 = sbr.rel (0) target = $region13
  $region12: #{actor_critic_forward.5} parent=0 // pred_region
    _
  $region13: #{actor_critic_forward.5} parent=0 // pred_fallthru
    _
  %v14 = vld [vmem:[%s0] sm:$0xff]
  %v15 = vld [vmem:[%s0 + $0x8] sm:$0xff]
  %v16 = vld [vmem:[%s0 + $0x10] sm:$0xff]
  %v17 = vld [vmem:[%s0 + $0x18] sm:$0xff]
  %v18 = vld [vmem:[%s0 + $0x20] sm:$0xff]
  %v19 = vld [vmem:[%s0 + $0x28] sm:$0xff]
  %v20 = vld [vmem:[%s0 + $0x30] sm:$0xff]
  %v21 = vld [vmem:[%s0 + $0x38] sm:$0xff]
  %v22 = vld [vmem:[%s0 + $0x40] sm:$0xff]
  %v23 = vld [vmem:[%s0 + $0x48] sm:$0xff]
  %v24 = vld [vmem:[%s0 + $0x50] sm:$0xff]
  %v25 = vld [vmem:[%s0 + $0x58] sm:$0xff]
  %v26 = vld [vmem:[%s0 + $0x60] sm:$0xff]
  %v27 = vld [vmem:[%s0 + $0x68] sm:$0xff]
  %v28 = vld [vmem:[%s0 + $0x70] sm:$0xff]
  %v29 = vld [vmem:[%s0 + $0x78] sm:$0xff]
  %v30 = vld [vmem:[%s0 + $0x80] sm:$0xff]
  %v31 = vld [vmem:[%s0 + $0x88] sm:$0xff]
  %v32 = vld [vmem:[%s0 + $0x90] sm:$0xff]
  %v33 = vld [vmem:[%s0 + $0x98] sm:$0xff]
  %v34 = vld [vmem:[%s0 + $0xa0] sm:$0xff]
  %v35 = vld [vmem:[%s0 + $0xa8] sm:$0xff]
  %v36 = vld [vmem:[%s0 + $0xb0] sm:$0xff]
  %v37 = vld [vmem:[%s0 + $0xb8] sm:$0xff]
  %v38 = vld [vmem:[%s0 + $0xc0] sm:$0xff]
  %v39 = vld [vmem:[%s0 + $0xc8] sm:$0xff]
  %v40 = vld [vmem:[%s0 + $0xd0] sm:$0xff]
  %v41 = vld [vmem:[%s0 + $0xd8] sm:$0xff]
  %v42 = vld [vmem:[%s0 + $0xe0] sm:$0xff]
  %v43 = vld [vmem:[%s0 + $0xe8] sm:$0xff]
  %v44 = vld [vmem:[%s0 + $0xf0] sm:$0xff]
  %v45 = vld [vmem:[%s0 + $0xf8] sm:$0xff]
  %v46 = vld [vmem:[%s0 + $0x100] sm:$0xff]
  %v47 = vld [vmem:[%s0 + $0x108] sm:$0xff]
  %v48 = vld [vmem:[%s0 + $0x110] sm:$0xff]
  %v49 = vld [vmem:[%s0 + $0x118] sm:$0xff]
  %v50 = vld [vmem:[%s1] sm:$0xff]
  %v51 = vld [vmem:[%s1 + $0x8] sm:$0xff]
  %v52 = vld [vmem:[%s1 + $0x10] sm:$0xff]
  %v53 = vld [vmem:[%s1 + $0x18] sm:$0xff]
  %v54 = vld [vmem:[%s1 + $0x20] sm:$0xff]
  %v55 = vld [vmem:[%s1 + $0x28] sm:$0xff]
  %v56 = vld [vmem:[%s1 + $0x30] sm:$0xff]
  %v57 = vld [vmem:[%s1 + $0x38] sm:$0xff]
  %v58 = vld [vmem:[%s1 + $0x40] sm:$0xff]
  %v59 = vld [vmem:[%s1 + $0x48] sm:$0xff]
  %v60 = vld [vmem:[%s1 + $0x50] sm:$0xff]
  %v61 = vld [vmem:[%s1 + $0x58] sm:$0xff]
  %v62 = vld [vmem:[%s1 + $0x60] sm:$0xff]
  %v63 = vld [vmem:[%s1 + $0x68] sm:$0xff]
  %v64 = vld [vmem:[%s1 + $0x70] sm:$0xff]
  %v65 = vld [vmem:[%s1 + $0x78] sm:$0xff]
  %v66 = vld [vmem:[%s1 + $0x80] sm:$0xff]
  %v67 = vld [vmem:[%s1 + $0x88] sm:$0xff]
  %v68 = vld [vmem:[%s1 + $0x90] sm:$0xff]
  %v69 = vld [vmem:[%s1 + $0x98] sm:$0xff]
  %v70 = vld [vmem:[%s1 + $0xa0] sm:$0xff]
  %v71 = vld [vmem:[%s1 + $0xa8] sm:$0xff]
  %v72 = vld [vmem:[%s1 + $0xb0] sm:$0xff]
  %v73 = vld [vmem:[%s1 + $0xb8] sm:$0xff]
  %v74 = vld [vmem:[%s1 + $0xc0] sm:$0xff]
  %v75 = vld [vmem:[%s1 + $0xc8] sm:$0xff]
  %v76 = vld [vmem:[%s1 + $0xd0] sm:$0xff]
  %v77 = vld [vmem:[%s1 + $0xd8] sm:$0xff]
  %v78 = vld [vmem:[%s1 + $0xe0] sm:$0xff]
  %v79 = vld [vmem:[%s1 + $0xe8] sm:$0xff]
  %v80 = vld [vmem:[%s1 + $0xf0] sm:$0xff]
  %v81 = vld [vmem:[%s1 + $0xf8] sm:$0xff]
  %v82 = vld [vmem:[%s1 + $0x100] sm:$0xff]
  %v83 = vld [vmem:[%s1 + $0x108] sm:$0xff]
  %v84 = vld [vmem:[%s1 + $0x110] sm:$0xff]
  %v85 = vld [vmem:[%s1 + $0x118] sm:$0xff]
  %v86 = vld [vmem:[%s1 + $0x120] sm:$0xff]
  %v87 = vld [vmem:[%s1 + $0x128] sm:$0xff]
  %v88 = vld [vmem:[%s1 + $0x130] sm:$0xff]
  %v89 = vld [vmem:[%s1 + $0x138] sm:$0xff]
  %v90 = vld [vmem:[%s1 + $0x140] sm:$0xff]
  %v91 = vld [vmem:[%s1 + $0x148] sm:$0xff]
  %v92 = vld [vmem:[%s1 + $0x150] sm:$0xff]
  %v93 = vld [vmem:[%s1 + $0x158] sm:$0xff]
  %v94 = vld [vmem:[%s1 + $0x160] sm:$0xff]
  %v95 = vld [vmem:[%s1 + $0x168] sm:$0xff]
  %v96 = vld [vmem:[%s1 + $0x170] sm:$0xff]
  %v97 = vld [vmem:[%s1 + $0x178] sm:$0xff]
  %v98 = vld [vmem:[%s1 + $0x180] sm:$0xff]
  %v99 = vld [vmem:[%s1 + $0x188] sm:$0xff]
  %v100 = vld [vmem:[%s1 + $0x190] sm:$0xff]
  %v101 = vld [vmem:[%s1 + $0x198] sm:$0xff]
  %v102 = vld [vmem:[%s1 + $0x1a0] sm:$0xff]
  %v103 = vld [vmem:[%s1 + $0x1a8] sm:$0xff]
  %v104 = vld [vmem:[%s1 + $0x1b0] sm:$0xff]
  %v105 = vld [vmem:[%s1 + $0x1b8] sm:$0xff]
  %v106 = vld [vmem:[%s1 + $0x1c0] sm:$0xff]
  %v107 = vld [vmem:[%s1 + $0x1c8] sm:$0xff]
  %v108 = vld [vmem:[%s1 + $0x1d0] sm:$0xff]
  %v109 = vld [vmem:[%s1 + $0x1d8] sm:$0xff]
  %v110 = vld [vmem:[%s1 + $0x1e0] sm:$0xff]
  %v111 = vld [vmem:[%s1 + $0x1e8] sm:$0xff]
  %v112 = vld [vmem:[%s1 + $0x1f0] sm:$0xff]
  %v113 = vld [vmem:[%s1 + $0x1f8] sm:$0xff]
  %v114 = vld [vmem:[%s1 + $0x200] sm:$0xff]
  %v115 = vld [vmem:[%s1 + $0x208] sm:$0xff]
  %v116 = vld [vmem:[%s1 + $0x210] sm:$0xff]
  %v117 = vld [vmem:[%s1 + $0x218] sm:$0xff]
  %v118 = vld [vmem:[%s1 + $0x220] sm:$0xff]
  %v119 = vld [vmem:[%s1 + $0x228] sm:$0xff]
  %v120 = vld [vmem:[%s1 + $0x230] sm:$0xff]
  %v121 = vld [vmem:[%s1 + $0x238] sm:$0xff]
  %v122 = vld [vmem:[%s1 + $0x240] sm:$0xff]
  %v123 = vld [vmem:[%s1 + $0x248] sm:$0xff]
  %v124 = vld [vmem:[%s1 + $0x250] sm:$0xff]
  %v125 = vld [vmem:[%s1 + $0x258] sm:$0xff]
  %v126 = vld [vmem:[%s1 + $0x260] sm:$0xff]
  %v127 = vld [vmem:[%s1 + $0x268] sm:$0xff]
  %v128 = vld [vmem:[%s1 + $0x270] sm:$0xff]
  %v129 = vld [vmem:[%s1 + $0x278] sm:$0xff]
  %v130 = vld [vmem:[%s1 + $0x280] sm:$0xff]
  %v131 = vld [vmem:[%s1 + $0x288] sm:$0xff]
  %v132 = vld [vmem:[%s1 + $0x290] sm:$0xff]
  %v133 = vld [vmem:[%s1 + $0x298] sm:$0xff]
  %v134 = vld [vmem:[%s1 + $0x2a0] sm:$0xff]
  %v135 = vld [vmem:[%s1 + $0x2a8] sm:$0xff]
  %v136 = vld [vmem:[%s1 + $0x2b0] sm:$0xff]
  %v137 = vld [vmem:[%s1 + $0x2b8] sm:$0xff]
  %v138 = vld [vmem:[%s1 + $0x2c0] sm:$0xff]
  %v139 = vld [vmem:[%s1 + $0x2c8] sm:$0xff]
  %v140 = vld [vmem:[%s1 + $0x2d0] sm:$0xff]
  %v141 = vld [vmem:[%s1 + $0x2d8] sm:$0xff]
  %v142 = vld [vmem:[%s1 + $0x2e0] sm:$0xff]
  %v143 = vld [vmem:[%s1 + $0x2e8] sm:$0xff]
  %v144 = vld [vmem:[%s1 + $0x2f0] sm:$0xff]
  %v145 = vld [vmem:[%s1 + $0x2f8] sm:$0xff]
  %v146 = vld [vmem:[%s1 + $0x300] sm:$0xff]
  %v147 = vld [vmem:[%s1 + $0x308] sm:$0xff]
  %v148 = vld [vmem:[%s1 + $0x310] sm:$0xff]
  %v149 = vld [vmem:[%s1 + $0x318] sm:$0xff]
  %v150 = vld [vmem:[%s1 + $0x320] sm:$0xff]
  %v151 = vld [vmem:[%s1 + $0x328] sm:$0xff]
  %v152 = vld [vmem:[%s1 + $0x330] sm:$0xff]
  %v153 = vld [vmem:[%s1 + $0x338] sm:$0xff]
  %v154 = vld [vmem:[%s1 + $0x340] sm:$0xff]
  %v155 = vld [vmem:[%s1 + $0x348] sm:$0xff]
  %v156 = vld [vmem:[%s1 + $0x350] sm:$0xff]
  %v157 = vld [vmem:[%s1 + $0x358] sm:$0xff]
  %v158 = vld [vmem:[%s1 + $0x360] sm:$0xff]
  %v159 = vld [vmem:[%s1 + $0x368] sm:$0xff]
  %v160 = vld [vmem:[%s1 + $0x370] sm:$0xff]
  %v161 = vld [vmem:[%s1 + $0x378] sm:$0xff]
  %v162 = vld [vmem:[%s1 + $0x380] sm:$0xff]
  %v163 = vld [vmem:[%s1 + $0x388] sm:$0xff]
  %v164 = vld [vmem:[%s1 + $0x390] sm:$0xff]
  %v165 = vld [vmem:[%s1 + $0x398] sm:$0xff]
  %v166 = vld [vmem:[%s1 + $0x3a0] sm:$0xff]
  %v167 = vld [vmem:[%s1 + $0x3a8] sm:$0xff]
  %v168 = vld [vmem:[%s1 + $0x3b0] sm:$0xff]
  %v169 = vld [vmem:[%s1 + $0x3b8] sm:$0xff]
  %v170 = vld [vmem:[%s1 + $0x3c0] sm:$0xff]
  %v171 = vld [vmem:[%s1 + $0x3c8] sm:$0xff]
  %v172 = vld [vmem:[%s1 + $0x3d0] sm:$0xff]
  %v173 = vld [vmem:[%s1 + $0x3d8] sm:$0xff]
  %v174 = vld [vmem:[%s1 + $0x3e0] sm:$0xff]
  %v175 = vld [vmem:[%s1 + $0x3e8] sm:$0xff]
  %v176 = vld [vmem:[%s1 + $0x3f0] sm:$0xff]
  %v177 = vld [vmem:[%s1 + $0x3f8] sm:$0xff]
  %v178 = vld [vmem:[%s1 + $0x400] sm:$0xff]
  %v179 = vld [vmem:[%s1 + $0x408] sm:$0xff]
  %v180 = vld [vmem:[%s1 + $0x410] sm:$0xff]
  %v181 = vld [vmem:[%s1 + $0x418] sm:$0xff]
  %v182 = vld [vmem:[%s1 + $0x420] sm:$0xff]
  %v183 = vld [vmem:[%s1 + $0x428] sm:$0xff]
  %v184 = vld [vmem:[%s1 + $0x430] sm:$0xff]
  %v185 = vld [vmem:[%s1 + $0x438] sm:$0xff]
  %v186 = vld [vmem:[%s1 + $0x440] sm:$0xff]
  %v187 = vld [vmem:[%s1 + $0x448] sm:$0xff]
  %v188 = vld [vmem:[%s1 + $0x450] sm:$0xff]
  %v189 = vld [vmem:[%s1 + $0x458] sm:$0xff]
  %v190 = vld [vmem:[%s1 + $0x460] sm:$0xff]
  %v191 = vld [vmem:[%s1 + $0x468] sm:$0xff]
  %v192 = vld [vmem:[%s1 + $0x470] sm:$0xff]
  %v193 = vld [vmem:[%s1 + $0x478] sm:$0xff]
  %v194 = vld [vmem:[%s1 + $0x480] sm:$0xff]
  %v195 = vld [vmem:[%s1 + $0x488] sm:$0xff]
  %v196 = vld [vmem:[%s1 + $0x490] sm:$0xff]
  %v197 = vld [vmem:[%s1 + $0x498] sm:$0xff]
  %v198 = vld [vmem:[%s1 + $0x4a0] sm:$0xff]
  %v199 = vld [vmem:[%s1 + $0x4a8] sm:$0xff]
  %v200 = vld [vmem:[%s1 + $0x4b0] sm:$0xff]
  %v201 = vld [vmem:[%s1 + $0x4b8] sm:$0xff]
  %v202 = vld [vmem:[%s1 + $0x4c0] sm:$0xff]
  %v203 = vld [vmem:[%s1 + $0x4c8] sm:$0xff]
  %v204 = vld [vmem:[%s1 + $0x4d0] sm:$0xff]
  %v205 = vld [vmem:[%s1 + $0x4d8] sm:$0xff]
  %v206 = vld [vmem:[%s1 + $0x4e0] sm:$0xff]
  %v207 = vld [vmem:[%s1 + $0x4e8] sm:$0xff]
  %v208 = vld [vmem:[%s1 + $0x4f0] sm:$0xff]
  %v209 = vld [vmem:[%s1 + $0x4f8] sm:$0xff]
  %v210 = vld [vmem:[%s1 + $0x500] sm:$0xff]
  %v211 = vld [vmem:[%s1 + $0x508] sm:$0xff]
  %v212 = vld [vmem:[%s1 + $0x510] sm:$0xff]
  %v213 = vld [vmem:[%s1 + $0x518] sm:$0xff]
  %v214 = vld [vmem:[%s1 + $0x520] sm:$0xff]
  %v215 = vld [vmem:[%s1 + $0x528] sm:$0xff]
  %v216 = vld [vmem:[%s1 + $0x530] sm:$0xff]
  %v217 = vld [vmem:[%s1 + $0x538] sm:$0xff]
  %v218 = vld [vmem:[%s1 + $0x540] sm:$0xff]
  %v219 = vld [vmem:[%s1 + $0x548] sm:$0xff]
  %v220 = vld [vmem:[%s1 + $0x550] sm:$0xff]
  %v221 = vld [vmem:[%s1 + $0x558] sm:$0xff]
  %v222 = vld [vmem:[%s1 + $0x560] sm:$0xff]
  %v223 = vld [vmem:[%s1 + $0x568] sm:$0xff]
  %v224 = vld [vmem:[%s1 + $0x570] sm:$0xff]
  %v225 = vld [vmem:[%s1 + $0x578] sm:$0xff]
  %v226 = vld [vmem:[%s1 + $0x580] sm:$0xff]
  %v227 = vld [vmem:[%s1 + $0x588] sm:$0xff]
  %v228 = vld [vmem:[%s1 + $0x590] sm:$0xff]
  %v229 = vld [vmem:[%s1 + $0x598] sm:$0xff]
  %v230 = vld [vmem:[%s1 + $0x5a0] sm:$0xff]
  %v231 = vld [vmem:[%s1 + $0x5a8] sm:$0xff]
  %v232 = vld [vmem:[%s1 + $0x5b0] sm:$0xff]
  %v233 = vld [vmem:[%s1 + $0x5b8] sm:$0xff]
  %v234 = vld [vmem:[%s1 + $0x5c0] sm:$0xff]
  %v235 = vld [vmem:[%s1 + $0x5c8] sm:$0xff]
  %v236 = vld [vmem:[%s1 + $0x5d0] sm:$0xff]
  %v237 = vld [vmem:[%s1 + $0x5d8] sm:$0xff]
  %v238 = vld [vmem:[%s1 + $0x5e0] sm:$0xff]
  %v239 = vld [vmem:[%s1 + $0x5e8] sm:$0xff]
  %v240 = vld [vmem:[%s1 + $0x5f0] sm:$0xff]
  %v241 = vld [vmem:[%s1 + $0x5f8] sm:$0xff]
  %v242 = vld [vmem:[%s1 + $0x600] sm:$0xff]
  %v243 = vld [vmem:[%s1 + $0x608] sm:$0xff]
  %v244 = vld [vmem:[%s1 + $0x610] sm:$0xff]
  %v245 = vld [vmem:[%s1 + $0x618] sm:$0xff]
  %v246 = vld [vmem:[%s1 + $0x620] sm:$0xff]
  %v247 = vld [vmem:[%s1 + $0x628] sm:$0xff]
  %v248 = vld [vmem:[%s1 + $0x630] sm:$0xff]
  %v249 = vld [vmem:[%s1 + $0x638] sm:$0xff]
  %v250 = vld [vmem:[%s1 + $0x640] sm:$0xff]
  %v251 = vld [vmem:[%s1 + $0x648] sm:$0xff]
  %v252 = vld [vmem:[%s1 + $0x650] sm:$0xff]
  %v253 = vld [vmem:[%s1 + $0x658] sm:$0xff]
  %v254 = vld [vmem:[%s1 + $0x660] sm:$0xff]
  %v255 = vld [vmem:[%s1 + $0x668] sm:$0xff]
  %v256 = vld [vmem:[%s1 + $0x670] sm:$0xff]
  %v257 = vld [vmem:[%s1 + $0x678] sm:$0xff]
  %v258 = vld [vmem:[%s1 + $0x680] sm:$0xff]
  %v259 = vld [vmem:[%s1 + $0x688] sm:$0xff]
  %v260 = vld [vmem:[%s1 + $0x690] sm:$0xff]
  %v261 = vld [vmem:[%s1 + $0x698] sm:$0xff]
  %v262 = vld [vmem:[%s1 + $0x6a0] sm:$0xff]
  %v263 = vld [vmem:[%s1 + $0x6a8] sm:$0xff]
  %v264 = vld [vmem:[%s1 + $0x6b0] sm:$0xff]
  %v265 = vld [vmem:[%s1 + $0x6b8] sm:$0xff]
  %v266 = vld [vmem:[%s1 + $0x6c0] sm:$0xff]
  %v267 = vld [vmem:[%s1 + $0x6c8] sm:$0xff]
  %v268 = vld [vmem:[%s1 + $0x6d0] sm:$0xff]
  %v269 = vld [vmem:[%s1 + $0x6d8] sm:$0xff]
  %v270 = vld [vmem:[%s1 + $0x6e0] sm:$0xff]
  %v271 = vld [vmem:[%s1 + $0x6e8] sm:$0xff]
  %v272 = vld [vmem:[%s1 + $0x6f0] sm:$0xff]
  %v273 = vld [vmem:[%s1 + $0x6f8] sm:$0xff]
  %v274 = vld [vmem:[%s1 + $0x700] sm:$0xff]
  %v275 = vld [vmem:[%s1 + $0x708] sm:$0xff]
  %v276 = vld [vmem:[%s1 + $0x710] sm:$0xff]
  %v277 = vld [vmem:[%s1 + $0x718] sm:$0xff]
  %v278 = vld [vmem:[%s1 + $0x720] sm:$0xff]
  %v279 = vld [vmem:[%s1 + $0x728] sm:$0xff]
  %v280 = vld [vmem:[%s1 + $0x730] sm:$0xff]
  %v281 = vld [vmem:[%s1 + $0x738] sm:$0xff]
  %v282 = vld [vmem:[%s1 + $0x740] sm:$0xff]
  %v283 = vld [vmem:[%s1 + $0x748] sm:$0xff]
  %v284 = vld [vmem:[%s1 + $0x750] sm:$0xff]
  %v285 = vld [vmem:[%s1 + $0x758] sm:$0xff]
  %v286 = vld [vmem:[%s1 + $0x760] sm:$0xff]
  %v287 = vld [vmem:[%s1 + $0x768] sm:$0xff]
  %v288 = vld [vmem:[%s1 + $0x770] sm:$0xff]
  %v289 = vld [vmem:[%s1 + $0x778] sm:$0xff]
  %v290 = vld [vmem:[%s1 + $0x780] sm:$0xff]
  %v291 = vld [vmem:[%s1 + $0x788] sm:$0xff]
  %v292 = vld [vmem:[%s1 + $0x790] sm:$0xff]
  %v293 = vld [vmem:[%s1 + $0x798] sm:$0xff]
  %v294 = vld [vmem:[%s1 + $0x7a0] sm:$0xff]
  %v295 = vld [vmem:[%s1 + $0x7a8] sm:$0xff]
  %v296 = vld [vmem:[%s1 + $0x7b0] sm:$0xff]
  %v297 = vld [vmem:[%s1 + $0x7b8] sm:$0xff]
  %v298 = vld [vmem:[%s1 + $0x7c0] sm:$0xff]
  %v299 = vld [vmem:[%s1 + $0x7c8] sm:$0xff]
  %v300 = vld [vmem:[%s1 + $0x7d0] sm:$0xff]
  %v301 = vld [vmem:[%s1 + $0x7d8] sm:$0xff]
  %v302 = vld [vmem:[%s1 + $0x7e0] sm:$0xff]
  %v303 = vld [vmem:[%s1 + $0x7e8] sm:$0xff]
  %v304 = vld [vmem:[%s1 + $0x7f0] sm:$0xff]
  %v305 = vld [vmem:[%s1 + $0x7f8] sm:$0xff]
  %v306 = vld [vmem:[%s1 + $0x800] sm:$0xff]
  %v307 = vld [vmem:[%s1 + $0x808] sm:$0xff]
  %v308 = vld [vmem:[%s1 + $0x810] sm:$0xff]
  %v309 = vld [vmem:[%s1 + $0x818] sm:$0xff]
  %v310 = vld [vmem:[%s1 + $0x820] sm:$0xff]
  %v311 = vld [vmem:[%s1 + $0x828] sm:$0xff]
  %v312 = vld [vmem:[%s1 + $0x830] sm:$0xff]
  %v313 = vld [vmem:[%s1 + $0x838] sm:$0xff]
  %v314 = vld [vmem:[%s1 + $0x840] sm:$0xff]
  %v315 = vld [vmem:[%s1 + $0x848] sm:$0xff]
  %v316 = vld [vmem:[%s1 + $0x850] sm:$0xff]
  %v317 = vld [vmem:[%s1 + $0x858] sm:$0xff]
  %v318 = vld [vmem:[%s1 + $0x860] sm:$0xff]
  %v319 = vld [vmem:[%s1 + $0x868] sm:$0xff]
  %v320 = vld [vmem:[%s1 + $0x870] sm:$0xff]
  %v321 = vld [vmem:[%s1 + $0x878] sm:$0xff]
  %v322 = vld [vmem:[%s1 + $0x880] sm:$0xff]
  %v323 = vld [vmem:[%s1 + $0x888] sm:$0xff]
  %v324 = vld [vmem:[%s1 + $0x890] sm:$0xff]
  %v325 = vld [vmem:[%s1 + $0x898] sm:$0xff]
  %v326 = vld [vmem:[%s1 + $0x8a0] sm:$0xff]
  %v327 = vld [vmem:[%s1 + $0x8a8] sm:$0xff]
  %v328 = vld [vmem:[%s1 + $0x8b0] sm:$0xff]
  %v329 = vld [vmem:[%s1 + $0x8b8] sm:$0xff]
  %v330 = vld [vmem:[%s1 + $0x8c0] sm:$0xff]
  %v331 = vld [vmem:[%s1 + $0x8c8] sm:$0xff]
  %v332 = vld [vmem:[%s1 + $0x8d0] sm:$0xff]
  %v333 = vld [vmem:[%s1 + $0x8d8] sm:$0xff]
  %v334 = vld [vmem:[%s1 + $0x8e0] sm:$0xff]
  %v335 = vld [vmem:[%s1 + $0x8e8] sm:$0xff]
  %v336 = vld [vmem:[%s1 + $0x8f0] sm:$0xff]
  %v337 = vld [vmem:[%s1 + $0x8f8] sm:$0xff]
  %v338 = vld [vmem:[%s2] sm:$0x3]
  %v340 = vlaneseq
  %v341 = vshrl.u32 %v340, 7
  %v342 = vsub.s32 0, %v341
  %v343 = vrot.slane %v338, %v342
  %v344 = vlaneseq
  %v345 = vshrl.u32 %v344, 7
  %v346 = vsub.s32 1, %v345
  %v347 = vrot.slane %v338, %v346
  %350 = vmatprep.subr.mxu0 %v51
  %351 = vmatpush1.msra.mxu0 %v50
  %352 = vmatprep.subr.mxu0 %v53
  %353 = vmatpush1.msra.mxu0 %v52
  %354 = vmatprep.subr.mxu0 %v55
  %355 = vmatpush1.msra.mxu0 %v54
  %356 = vmatprep.subr.mxu0 %v57
  %357 = vmatpush1.msra.mxu0 %v56
  %358 = vmatprep.subr.mxu0 %v59
  %359 = vmatpush1.msra.mxu0 %v58
  %360 = vmatprep.subr.mxu0 %v61
  %361 = vmatpush1.msra.mxu0 %v60
  %362 = vmatprep.subr.mxu0 %v63
  %363 = vmatpush1.msra.mxu0 %v62
  %364 = vmatprep.subr.mxu0 %v65
  %365 = vmatpush1.msra.mxu0 %v64
  %366 = vmatprep.subr.mxu0 %v67
  %367 = vmatpush1.msra.mxu0 %v66
  %368 = vmatprep.subr.mxu0 %v69
  %369 = vmatpush1.msra.mxu0 %v68
  %370 = vmatprep.subr.mxu0 %v71
  %371 = vmatpush1.msra.mxu0 %v70
  %372 = vmatprep.subr.mxu0 %v73
  %373 = vmatpush1.msra.mxu0 %v72
  %374 = vmatprep.subr.mxu0 %v75
  %375 = vmatpush1.msra.mxu0 %v74
  %376 = vmatprep.subr.mxu0 %v77
  %377 = vmatpush1.msra.mxu0 %v76
  %378 = vmatprep.subr.mxu0 %v79
  %379 = vmatpush1.msra.mxu0 %v78
  %380 = vmatprep.subr.mxu0 %v81
  %381 = vmatpush1.msra.mxu0 %v80
  %382 = vmatprep.subr.mxu0 %v83
  %383 = vmatpush1.msra.mxu0 %v82
  %384 = vmatprep.subr.mxu0 %v85
  %385 = vmatpush1.msra.mxu0 %v84
  %386 = vmatprep.subr.mxu0 %v87
  %387 = vmatpush1.msra.mxu0 %v86
  %388 = vmatprep.subr.mxu0 %v89
  %389 = vmatpush1.msra.mxu0 %v88
  %390 = vmatprep.subr.mxu0 %v91
  %391 = vmatpush1.msra.mxu0 %v90
  %392 = vmatprep.subr.mxu0 %v93
  %393 = vmatpush1.msra.mxu0 %v92
  %394 = vmatprep.subr.mxu0 %v95
  %395 = vmatpush1.msra.mxu0 %v94
  %396 = vmatprep.subr.mxu0 %v97
  %397 = vmatpush1.msra.mxu0 %v96
  %398 = vmatprep.subr.mxu0 %v99
  %399 = vmatpush1.msra.mxu0 %v98
  %400 = vmatprep.subr.mxu0 %v101
  %401 = vmatpush1.msra.mxu0 %v100
  %402 = vmatprep.subr.mxu0 %v103
  %403 = vmatpush1.msra.mxu0 %v102
  %404 = vmatprep.subr.mxu0 %v105
  %405 = vmatpush1.msra.mxu0 %v104
  %406 = vmatprep.subr.mxu0 %v107
  %407 = vmatpush1.msra.mxu0 %v106
  %408 = vmatprep.subr.mxu0 %v109
  %409 = vmatpush1.msra.mxu0 %v108
  %410 = vmatprep.subr.mxu0 %v111
  %411 = vmatpush1.msra.mxu0 %v110
  %412 = vmatprep.subr.mxu0 %v113
  %413 = vmatpush1.msra.mxu0 %v112
  %414 = vmatprep.mubr.f32.mxu0 %v15
  %415 = vmatmul.mubr.f32.gmra.mrb[0].mxu0 %v14
  %v416 = vpop.f32.mrb[0].mxu0
  %v417 = vadd.f32 %v343, %v416
  %v418 = vpop.f32.mrb[0].mxu0
  %v419 = vadd.f32 %v347, %v418
  %420 = vmatprep.mubr.f32.mxu0 %v24
  %421 = vmatmul.mubr.f32.gmra.mrb[0].mxu0 %v23
  %v422 = vpop.f32.mrb[0].mxu0
  %v423 = vadd.f32 %v343, %v422
  %v424 = vpop.f32.mrb[0].mxu0
  %v425 = vadd.f32 %v347, %v424
  %426 = vmatprep.mubr.f32.mxu0 %v33
  %427 = vmatmul.mubr.f32.gmra.mrb[0].mxu0 %v32
  %v428 = vpop.f32.mrb[0].mxu0
  %v429 = vadd.f32 %v343, %v428
  %v430 = vpop.f32.mrb[0].mxu0
  %v431 = vadd.f32 %v347, %v430
  %432 = vmatprep.mubr.f32.mxu0 %v42
  %433 = vmatmul.mubr.f32.gmra.mrb[0].mxu0 %v41
  %v434 = vpop.f32.mrb[0].mxu0
  %v435 = vadd.f32 %v343, %v434
  %v436 = vpop.f32.mrb[0].mxu0
  %v437 = vadd.f32 %v347, %v436
  %438 = vdwg.mxu0
  %439 = vmatprep.subr.mxu0 %v115
  %440 = vmatpush1.msra.mxu0 %v114
  %441 = vmatprep.subr.mxu0 %v117
  %442 = vmatpush1.msra.mxu0 %v116
  %443 = vmatprep.subr.mxu0 %v119
  %444 = vmatpush1.msra.mxu0 %v118
  %445 = vmatprep.subr.mxu0 %v121
  %446 = vmatpush1.msra.mxu0 %v120
  %447 = vmatprep.subr.mxu0 %v123
  %448 = vmatpush1.msra.mxu0 %v122
  %449 = vmatprep.subr.mxu0 %v125
  %450 = vmatpush1.msra.mxu0 %v124
  %451 = vmatprep.subr.mxu0 %v127
  %452 = vmatpush1.msra.mxu0 %v126
  %453 = vmatprep.subr.mxu0 %v129
  %454 = vmatpush1.msra.mxu0 %v128
  %455 = vmatprep.subr.mxu0 %v131
  %456 = vmatpush1.msra.mxu0 %v130
  %457 = vmatprep.subr.mxu0 %v133
  %458 = vmatpush1.msra.mxu0 %v132
  %459 = vmatprep.subr.mxu0 %v135
  %460 = vmatpush1.msra.mxu0 %v134
  %461 = vmatprep.subr.mxu0 %v137
  %462 = vmatpush1.msra.mxu0 %v136
  %463 = vmatprep.subr.mxu0 %v139
  %464 = vmatpush1.msra.mxu0 %v138
  %465 = vmatprep.subr.mxu0 %v141
  %466 = vmatpush1.msra.mxu0 %v140
  %467 = vmatprep.subr.mxu0 %v143
  %468 = vmatpush1.msra.mxu0 %v142
  %469 = vmatprep.subr.mxu0 %v145
  %470 = vmatpush1.msra.mxu0 %v144
  %471 = vmatprep.subr.mxu0 %v147
  %472 = vmatpush1.msra.mxu0 %v146
  %473 = vmatprep.subr.mxu0 %v149
  %474 = vmatpush1.msra.mxu0 %v148
  %475 = vmatprep.subr.mxu0 %v151
  %476 = vmatpush1.msra.mxu0 %v150
  %477 = vmatprep.subr.mxu0 %v153
  %478 = vmatpush1.msra.mxu0 %v152
  %479 = vmatprep.subr.mxu0 %v155
  %480 = vmatpush1.msra.mxu0 %v154
  %481 = vmatprep.subr.mxu0 %v157
  %482 = vmatpush1.msra.mxu0 %v156
  %483 = vmatprep.subr.mxu0 %v159
  %484 = vmatpush1.msra.mxu0 %v158
  %485 = vmatprep.subr.mxu0 %v161
  %486 = vmatpush1.msra.mxu0 %v160
  %487 = vmatprep.subr.mxu0 %v163
  %488 = vmatpush1.msra.mxu0 %v162
  %489 = vmatprep.subr.mxu0 %v165
  %490 = vmatpush1.msra.mxu0 %v164
  %491 = vmatprep.subr.mxu0 %v167
  %492 = vmatpush1.msra.mxu0 %v166
  %493 = vmatprep.subr.mxu0 %v169
  %494 = vmatpush1.msra.mxu0 %v168
  %495 = vmatprep.subr.mxu0 %v171
  %496 = vmatpush1.msra.mxu0 %v170
  %497 = vmatprep.subr.mxu0 %v173
  %498 = vmatpush1.msra.mxu0 %v172
  %499 = vmatprep.subr.mxu0 %v175
  %500 = vmatpush1.msra.mxu0 %v174
  %501 = vmatprep.subr.mxu0 %v177
  %502 = vmatpush1.msra.mxu0 %v176
  %503 = vmatprep.mubr.f32.mxu0 %v17
  %504 = vmatmul.mubr.f32.gmra.mrb[0].mxu0 %v16
  %v505 = vpop.f32.mrb[0].mxu0
  %v506 = vadd.f32 %v417, %v505
  %v507 = vpop.f32.mrb[0].mxu0
  %v508 = vadd.f32 %v419, %v507
  %509 = vmatprep.mubr.f32.mxu0 %v26
  %510 = vmatmul.mubr.f32.gmra.mrb[0].mxu0 %v25
  %v511 = vpop.f32.mrb[0].mxu0
  %v512 = vadd.f32 %v423, %v511
  %v513 = vpop.f32.mrb[0].mxu0
  %v514 = vadd.f32 %v425, %v513
  %515 = vmatprep.mubr.f32.mxu0 %v35
  %516 = vmatmul.mubr.f32.gmra.mrb[0].mxu0 %v34
  %v517 = vpop.f32.mrb[0].mxu0
  %v518 = vadd.f32 %v429, %v517
  %v519 = vpop.f32.mrb[0].mxu0
  %v520 = vadd.f32 %v431, %v519
  %521 = vmatprep.mubr.f32.mxu0 %v44
  %522 = vmatmul.mubr.f32.gmra.mrb[0].mxu0 %v43
  %v523 = vpop.f32.mrb[0].mxu0
  %v524 = vadd.f32 %v435, %v523
  %v525 = vpop.f32.mrb[0].mxu0
  %v526 = vadd.f32 %v437, %v525
  %527 = vdwg.mxu0
  %528 = vmatprep.subr.mxu0 %v179
  %529 = vmatpush1.msra.mxu0 %v178
  %530 = vmatprep.subr.mxu0 %v181
  %531 = vmatpush1.msra.mxu0 %v180
  %532 = vmatprep.subr.mxu0 %v183
  %533 = vmatpush1.msra.mxu0 %v182
  %534 = vmatprep.subr.mxu0 %v185
  %535 = vmatpush1.msra.mxu0 %v184
  %536 = vmatprep.subr.mxu0 %v187
  %537 = vmatpush1.msra.mxu0 %v186
  %538 = vmatprep.subr.mxu0 %v189
  %539 = vmatpush1.msra.mxu0 %v188
  %540 = vmatprep.subr.mxu0 %v191
  %541 = vmatpush1.msra.mxu0 %v190
  %542 = vmatprep.subr.mxu0 %v193
  %543 = vmatpush1.msra.mxu0 %v192
  %544 = vmatprep.subr.mxu0 %v195
  %545 = vmatpush1.msra.mxu0 %v194
  %546 = vmatprep.subr.mxu0 %v197
  %547 = vmatpush1.msra.mxu0 %v196
  %548 = vmatprep.subr.mxu0 %v199
  %549 = vmatpush1.msra.mxu0 %v198
  %550 = vmatprep.subr.mxu0 %v201
  %551 = vmatpush1.msra.mxu0 %v200
  %552 = vmatprep.subr.mxu0 %v203
  %553 = vmatpush1.msra.mxu0 %v202
  %554 = vmatprep.subr.mxu0 %v205
  %555 = vmatpush1.msra.mxu0 %v204
  %556 = vmatprep.subr.mxu0 %v207
  %557 = vmatpush1.msra.mxu0 %v206
  %558 = vmatprep.subr.mxu0 %v209
  %559 = vmatpush1.msra.mxu0 %v208
  %560 = vmatprep.subr.mxu0 %v211
  %561 = vmatpush1.msra.mxu0 %v210
  %562 = vmatprep.subr.mxu0 %v213
  %563 = vmatpush1.msra.mxu0 %v212
  %564 = vmatprep.subr.mxu0 %v215
  %565 = vmatpush1.msra.mxu0 %v214
  %566 = vmatprep.subr.mxu0 %v217
  %567 = vmatpush1.msra.mxu0 %v216
  %568 = vmatprep.subr.mxu0 %v219
  %569 = vmatpush1.msra.mxu0 %v218
  %570 = vmatprep.subr.mxu0 %v221
  %571 = vmatpush1.msra.mxu0 %v220
  %572 = vmatprep.subr.mxu0 %v223
  %573 = vmatpush1.msra.mxu0 %v222
  %574 = vmatprep.subr.mxu0 %v225
  %575 = vmatpush1.msra.mxu0 %v224
  %576 = vmatprep.subr.mxu0 %v227
  %577 = vmatpush1.msra.mxu0 %v226
  %578 = vmatprep.subr.mxu0 %v229
  %579 = vmatpush1.msra.mxu0 %v228
  %580 = vmatprep.subr.mxu0 %v231
  %581 = vmatpush1.msra.mxu0 %v230
  %582 = vmatprep.subr.mxu0 %v233
  %583 = vmatpush1.msra.mxu0 %v232
  %584 = vmatprep.subr.mxu0 %v235
  %585 = vmatpush1.msra.mxu0 %v234
  %586 = vmatprep.subr.mxu0 %v237
  %587 = vmatpush1.msra.mxu0 %v236
  %588 = vmatprep.subr.mxu0 %v239
  %589 = vmatpush1.msra.mxu0 %v238
  %590 = vmatprep.subr.mxu0 %v241
  %591 = vmatpush1.msra.mxu0 %v240
  %592 = vmatprep.mubr.f32.mxu0 %v19
  %593 = vmatmul.mubr.f32.gmra.mrb[0].mxu0 %v18
  %v594 = vpop.f32.mrb[0].mxu0
  %v595 = vadd.f32 %v506, %v594
  %v596 = vpop.f32.mrb[0].mxu0
  %v597 = vadd.f32 %v508, %v596
  %598 = vmatprep.mubr.f32.mxu0 %v28
  %599 = vmatmul.mubr.f32.gmra.mrb[0].mxu0 %v27
  %v600 = vpop.f32.mrb[0].mxu0
  %v601 = vadd.f32 %v512, %v600
  %v602 = vpop.f32.mrb[0].mxu0
  %v603 = vadd.f32 %v514, %v602
  %604 = vmatprep.mubr.f32.mxu0 %v37
  %605 = vmatmul.mubr.f32.gmra.mrb[0].mxu0 %v36
  %v606 = vpop.f32.mrb[0].mxu0
  %v607 = vadd.f32 %v518, %v606
  %v608 = vpop.f32.mrb[0].mxu0
  %v609 = vadd.f32 %v520, %v608
  %610 = vmatprep.mubr.f32.mxu0 %v46
  %611 = vmatmul.mubr.f32.gmra.mrb[0].mxu0 %v45
  %v612 = vpop.f32.mrb[0].mxu0
  %v613 = vadd.f32 %v524, %v612
  %v614 = vpop.f32.mrb[0].mxu0
  %v615 = vadd.f32 %v526, %v614
  %616 = vdwg.mxu0
  %617 = vmatprep.subr.mxu0 %v243
  %618 = vmatpush1.msra.mxu0 %v242
  %619 = vmatprep.subr.mxu0 %v245
  %620 = vmatpush1.msra.mxu0 %v244
  %621 = vmatprep.subr.mxu0 %v247
  %622 = vmatpush1.msra.mxu0 %v246
  %623 = vmatprep.subr.mxu0 %v249
  %624 = vmatpush1.msra.mxu0 %v248
  %625 = vmatprep.subr.mxu0 %v251
  %626 = vmatpush1.msra.mxu0 %v250
  %627 = vmatprep.subr.mxu0 %v253
  %628 = vmatpush1.msra.mxu0 %v252
  %629 = vmatprep.subr.mxu0 %v255
  %630 = vmatpush1.msra.mxu0 %v254
  %631 = vmatprep.subr.mxu0 %v257
  %632 = vmatpush1.msra.mxu0 %v256
  %633 = vmatprep.subr.mxu0 %v259
  %634 = vmatpush1.msra.mxu0 %v258
  %635 = vmatprep.subr.mxu0 %v261
  %636 = vmatpush1.msra.mxu0 %v260
  %637 = vmatprep.subr.mxu0 %v263
  %638 = vmatpush1.msra.mxu0 %v262
  %639 = vmatprep.subr.mxu0 %v265
  %640 = vmatpush1.msra.mxu0 %v264
  %641 = vmatprep.subr.mxu0 %v267
  %642 = vmatpush1.msra.mxu0 %v266
  %643 = vmatprep.subr.mxu0 %v269
  %644 = vmatpush1.msra.mxu0 %v268
  %645 = vmatprep.subr.mxu0 %v271
  %646 = vmatpush1.msra.mxu0 %v270
  %647 = vmatprep.subr.mxu0 %v273
  %648 = vmatpush1.msra.mxu0 %v272
  %649 = vmatprep.subr.mxu0 %v275
  %650 = vmatpush1.msra.mxu0 %v274
  %651 = vmatprep.subr.mxu0 %v277
  %652 = vmatpush1.msra.mxu0 %v276
  %653 = vmatprep.subr.mxu0 %v279
  %654 = vmatpush1.msra.mxu0 %v278
  %655 = vmatprep.subr.mxu0 %v281
  %656 = vmatpush1.msra.mxu0 %v280
  %657 = vmatprep.subr.mxu0 %v283
  %658 = vmatpush1.msra.mxu0 %v282
  %659 = vmatprep.subr.mxu0 %v285
  %660 = vmatpush1.msra.mxu0 %v284
  %661 = vmatprep.subr.mxu0 %v287
  %662 = vmatpush1.msra.mxu0 %v286
  %663 = vmatprep.subr.mxu0 %v289
  %664 = vmatpush1.msra.mxu0 %v288
  %665 = vmatprep.subr.mxu0 %v291
  %666 = vmatpush1.msra.mxu0 %v290
  %667 = vmatprep.subr.mxu0 %v293
  %668 = vmatpush1.msra.mxu0 %v292
  %669 = vmatprep.subr.mxu0 %v295
  %670 = vmatpush1.msra.mxu0 %v294
  %671 = vmatprep.subr.mxu0 %v297
  %672 = vmatpush1.msra.mxu0 %v296
  %673 = vmatprep.subr.mxu0 %v299
  %674 = vmatpush1.msra.mxu0 %v298
  %675 = vmatprep.subr.mxu0 %v301
  %676 = vmatpush1.msra.mxu0 %v300
  %677 = vmatprep.subr.mxu0 %v303
  %678 = vmatpush1.msra.mxu0 %v302
  %679 = vmatprep.subr.mxu0 %v305
  %680 = vmatpush1.msra.mxu0 %v304
  %681 = vmatprep.mubr.f32.mxu0 %v21
  %682 = vmatmul.mubr.f32.gmra.mrb[0].mxu0 %v20
  %v683 = vpop.f32.mrb[0].mxu0
  %v684 = vadd.f32 %v595, %v683
  %v685 = vpop.f32.mrb[0].mxu0
  %v686 = vadd.f32 %v597, %v685
  %687 = vmatprep.mubr.f32.mxu0 %v30
  %688 = vmatmul.mubr.f32.gmra.mrb[0].mxu0 %v29
  %v689 = vpop.f32.mrb[0].mxu0
  %v690 = vadd.f32 %v601, %v689
  %v691 = vpop.f32.mrb[0].mxu0
  %v692 = vadd.f32 %v603, %v691
  %693 = vmatprep.mubr.f32.mxu0 %v39
  %694 = vmatmul.mubr.f32.gmra.mrb[0].mxu0 %v38
  %v695 = vpop.f32.mrb[0].mxu0
  %v696 = vadd.f32 %v607, %v695
  %v697 = vpop.f32.mrb[0].mxu0
  %v698 = vadd.f32 %v609, %v697
  %699 = vmatprep.mubr.f32.mxu0 %v48
  %700 = vmatmul.mubr.f32.gmra.mrb[0].mxu0 %v47
  %v701 = vpop.f32.mrb[0].mxu0
  %v702 = vadd.f32 %v613, %v701
  %v703 = vpop.f32.mrb[0].mxu0
  %v704 = vadd.f32 %v615, %v703
  %705 = vdwg.mxu0
  %706 = vmatprep.subr.mxu0 %v307
  %707 = vmatpush1.msra.mxu0 %v306
  %708 = vmatprep.subr.mxu0 %v309
  %709 = vmatpush1.msra.mxu0 %v308
  %710 = vmatprep.subr.mxu0 %v311
  %711 = vmatpush1.msra.mxu0 %v310
  %712 = vmatprep.subr.mxu0 %v313
  %713 = vmatpush1.msra.mxu0 %v312
  %714 = vmatprep.subr.mxu0 %v315
  %715 = vmatpush1.msra.mxu0 %v314
  %716 = vmatprep.subr.mxu0 %v317
  %717 = vmatpush1.msra.mxu0 %v316
  %718 = vmatprep.subr.mxu0 %v319
  %719 = vmatpush1.msra.mxu0 %v318
  %720 = vmatprep.subr.mxu0 %v321
  %721 = vmatpush1.msra.mxu0 %v320
  %722 = vmatprep.subr.mxu0 %v323
  %723 = vmatpush1.msra.mxu0 %v322
  %724 = vmatprep.subr.mxu0 %v325
  %725 = vmatpush1.msra.mxu0 %v324
  %726 = vmatprep.subr.mxu0 %v327
  %727 = vmatpush1.msra.mxu0 %v326
  %728 = vmatprep.subr.mxu0 %v329
  %729 = vmatpush1.msra.mxu0 %v328
  %730 = vmatprep.subr.mxu0 %v331
  %731 = vmatpush1.msra.mxu0 %v330
  %732 = vmatprep.subr.mxu0 %v333
  %733 = vmatpush1.msra.mxu0 %v332
  %734 = vmatprep.subr.mxu0 %v335
  %735 = vmatpush1.msra.mxu0 %v334
  %736 = vmatprep.subr.mxu0 %v337
  %737 = vmatpush1.msra.mxu0 %v336
  %738 = vmatprep.subr.mxu0 0.0
  %739 = vmatpush1.msra.mxu0 0.0
  %740 = vmatprep.subr.mxu0 0.0
  %741 = vmatpush1.msra.mxu0 0.0
  %742 = vmatprep.subr.mxu0 0.0
  %743 = vmatpush1.msra.mxu0 0.0
  %744 = vmatprep.subr.mxu0 0.0
  %745 = vmatpush1.msra.mxu0 0.0
  %746 = vmatprep.subr.mxu0 0.0
  %747 = vmatpush1.msra.mxu0 0.0
  %748 = vmatprep.subr.mxu0 0.0
  %749 = vmatpush1.msra.mxu0 0.0
  %750 = vmatprep.subr.mxu0 0.0
  %751 = vmatpush1.msra.mxu0 0.0
  %752 = vmatprep.subr.mxu0 0.0
  %753 = vmatpush1.msra.mxu0 0.0
  %754 = vmatprep.subr.mxu0 0.0
  %755 = vmatpush1.msra.mxu0 0.0
  %756 = vmatprep.subr.mxu0 0.0
  %757 = vmatpush1.msra.mxu0 0.0
  %758 = vmatprep.subr.mxu0 0.0
  %759 = vmatpush1.msra.mxu0 0.0
  %760 = vmatprep.subr.mxu0 0.0
  %761 = vmatpush1.msra.mxu0 0.0
  %762 = vmatprep.subr.mxu0 0.0
  %763 = vmatpush1.msra.mxu0 0.0
  %764 = vmatprep.subr.mxu0 0.0
  %765 = vmatpush1.msra.mxu0 0.0
  %766 = vmatprep.subr.mxu0 0.0
  %767 = vmatpush1.msra.mxu0 0.0
  %768 = vmatprep.subr.mxu0 0.0
  %769 = vmatpush1.msra.mxu0 0.0
  %770 = vmatprep.mubr.f32.mxu0 0.0
  %771 = vmatmul.mubr.f32.gmra.mrb[0].mxu0 %v22
  %v772 = vpop.f32.mrb[0].mxu0
  %v773 = vadd.f32 %v684, %v772
  %v774 = vpop.f32.mrb[0].mxu0
  %v775 = vadd.f32 %v686, %v774
  %776 = vmatprep.mubr.f32.mxu0 0.0
  %777 = vmatmul.mubr.f32.gmra.mrb[0].mxu0 %v31
  %v778 = vpop.f32.mrb[0].mxu0
  %v779 = vadd.f32 %v690, %v778
  %v780 = vpop.f32.mrb[0].mxu0
  %v781 = vadd.f32 %v692, %v780
  %782 = vmatprep.mubr.f32.mxu0 0.0
  %783 = vmatmul.mubr.f32.gmra.mrb[0].mxu0 %v40
  %v784 = vpop.f32.mrb[0].mxu0
  %v785 = vadd.f32 %v696, %v784
  %v786 = vpop.f32.mrb[0].mxu0
  %v787 = vadd.f32 %v698, %v786
  %788 = vmatprep.mubr.f32.mxu0 0.0
  %789 = vmatmul.mubr.f32.gmra.mrb[0].mxu0 %v49
  %v790 = vpop.f32.mrb[0].mxu0
  %v791 = vadd.f32 %v702, %v790
  %v792 = vpop.f32.mrb[0].mxu0
  %v793 = vadd.f32 %v704, %v792
  %794 = vdwg.mxu0
  %v795 = vmax.f32 %v773, 0.0
  %v796 = vmax.f32 %v775, 0.0
  %v797 = vmax.f32 %v779, 0.0
  %v798 = vmax.f32 %v781, 0.0
  %v799 = vmax.f32 %v785, 0.0
  %v800 = vmax.f32 %v787, 0.0
  %v801 = vmax.f32 %v791, 0.0
  %v802 = vmax.f32 %v793, 0.0
  %803 = vst [vmem:[%s3] sm:$0xff] %v795
  %804 = vst [vmem:[%s3 + $0x8] sm:$0xff] %v796
  %805 = vst [vmem:[%s3 + $0x10] sm:$0xff] %v797
  %806 = vst [vmem:[%s3 + $0x18] sm:$0xff] %v798
  %807 = vst [vmem:[%s3 + $0x20] sm:$0xff] %v799
  %808 = vst [vmem:[%s3 + $0x28] sm:$0xff] %v800
  %809 = vst [vmem:[%s3 + $0x30] sm:$0xff] %v801
  %810 = vst [vmem:[%s3 + $0x38] sm:$0xff] %v802
  // Predicated region
  $region14: #{actor_critic_forward.5} parent=0 // pred_check
    _
  $region15: #{actor_critic_forward.5} parent=0 // pred_check_branch
    %812 = sbr.rel (0) target = $region17
  $region16: #{actor_critic_forward.5} parent=0 // pred_region
    _
  $region17: #{actor_critic_forward.5} parent=0 // pred_fallthru
    _
  // Predicated region
  $region18: #{actor_critic_forward.5} parent=0 // pred_check
    _
  $region19: #{actor_critic_forward.5} parent=0 // pred_check_branch
    %814 = sbr.rel (0) target = $region21
  $region20: #{actor_critic_forward.5} parent=0 // pred_region
    _
  $region21: #{actor_critic_forward.5} parent=0 // pred_fallthru
    _

// kernel: actor_critic_forward.6
$region0: #{actor_critic_forward.6}
  #allocation0 [shape = 'u32[]', space=smem, size = 0x4, offset = 0x4, fixed_abs, tag = 'smem constant byte address 0x4 - core index']
  #allocation1 [shape = 'u32[144,128]{1,0:T(1,128)}', space=vmem, size = 0x12000, scoped, tag = 'internal scratch']
  %s0 = inlined_call_operand.vmem [shape: f32[8,2304], index: 0, kind: input, shape index: {}]
  %s1 = inlined_call_operand.vmem [shape: f32[2304,256], index: 1, kind: input, shape index: {}]
  %s2 = inlined_call_operand.vmem [shape: f32[1,256], index: 2, kind: input, shape index: {}]
  %s3 = inlined_call_operand.vmem [shape: f32[8,256], index: 3, kind: output, shape index: {}]
  %s4 = sld [smem:[#allocation0]]
  $region22: #{actor_critic_forward.6} parent=0
    _
  %s6 = ssub.s32 1, %s4
  %s7 = scalar_select 0, %s6, %s4
  // Predicated region
  $region2: #{actor_critic_forward.6} parent=0 // pred_check
    _
  $region3: #{actor_critic_forward.6} parent=0 // pred_check_branch
    %9 = sbr.rel (0) target = $region5
  $region4: #{actor_critic_forward.6} parent=0 // pred_region
    _
  $region5: #{actor_critic_forward.6} parent=0 // pred_fallthru
    _
  // Predicated region
  $region6: #{actor_critic_forward.6} parent=0 // pred_check
    _
  $region7: #{actor_critic_forward.6} parent=0 // pred_check_branch
    %11 = sbr.rel (0) target = $region9
  $region8: #{actor_critic_forward.6} parent=0 // pred_region
    _
  $region9: #{actor_critic_forward.6} parent=0 // pred_fallthru
    _
  // Predicated region
  $region10: #{actor_critic_forward.6} parent=0 // pred_check
    _
  $region11: #{actor_critic_forward.6} parent=0 // pred_check_branch
    %13 = sbr.rel (0) target = $region13
  $region12: #{actor_critic_forward.6} parent=0 // pred_region
    _
  $region13: #{actor_critic_forward.6} parent=0 // pred_fallthru
    _
  %v14 = vld [vmem:[%s0] sm:$0xff]
  %v15 = vld [vmem:[%s0 + $0x8] sm:$0xff]
  %v16 = vld [vmem:[%s0 + $0x10] sm:$0xff]
  %v17 = vld [vmem:[%s0 + $0x18] sm:$0xff]
  %v18 = vld [vmem:[%s0 + $0x20] sm:$0xff]
  %v19 = vld [vmem:[%s0 + $0x28] sm:$0xff]
  %v20 = vld [vmem:[%s0 + $0x30] sm:$0xff]
  %v21 = vld [vmem:[%s0 + $0x38] sm:$0xff]
  %v22 = vld [vmem:[%s0 + $0x40] sm:$0xff]
  %v23 = vld [vmem:[%s0 + $0x48] sm:$0xff]
  %v24 = vld [vmem:[%s0 + $0x50] sm:$0xff]
  %v25 = vld [vmem:[%s0 + $0x58] sm:$0xff]
  %v26 = vld [vmem:[%s0 + $0x60] sm:$0xff]
  %v27 = vld [vmem:[%s0 + $0x68] sm:$0xff]
  %v28 = vld [vmem:[%s0 + $0x70] sm:$0xff]
  %v29 = vld [vmem:[%s0 + $0x78] sm:$0xff]
  %v30 = vld [vmem:[%s0 + $0x80] sm:$0xff]
  %v31 = vld [vmem:[%s0 + $0x88] sm:$0xff]
  %v32 = vld [vmem:[%s1] sm:$0xff]
  %v33 = vld [vmem:[%s1 + $0x8] sm:$0xff]
  %v34 = vld [vmem:[%s1 + $0x10] sm:$0xff]
  %v35 = vld [vmem:[%s1 + $0x18] sm:$0xff]
  %v36 = vld [vmem:[%s1 + $0x20] sm:$0xff]
  %v37 = vld [vmem:[%s1 + $0x28] sm:$0xff]
  %v38 = vld [vmem:[%s1 + $0x30] sm:$0xff]
  %v39 = vld [vmem:[%s1 + $0x38] sm:$0xff]
  %v40 = vld [vmem:[%s1 + $0x40] sm:$0xff]
  %v41 = vld [vmem:[%s1 + $0x48] sm:$0xff]
  %v42 = vld [vmem:[%s1 + $0x50] sm:$0xff]
  %v43 = vld [vmem:[%s1 + $0x58] sm:$0xff]
  %v44 = vld [vmem:[%s1 + $0x60] sm:$0xff]
  %v45 = vld [vmem:[%s1 + $0x68] sm:$0xff]
  %v46 = vld [vmem:[%s1 + $0x70] sm:$0xff]
  %v47 = vld [vmem:[%s1 + $0x78] sm:$0xff]
  %v48 = vld [vmem:[%s1 + $0x80] sm:$0xff]
  %v49 = vld [vmem:[%s1 + $0x88] sm:$0xff]
  %v50 = vld [vmem:[%s1 + $0x90] sm:$0xff]
  %v51 = vld [vmem:[%s1 + $0x98] sm:$0xff]
  %v52 = vld [vmem:[%s1 + $0xa0] sm:$0xff]
  %v53 = vld [vmem:[%s1 + $0xa8] sm:$0xff]
  %v54 = vld [vmem:[%s1 + $0xb0] sm:$0xff]
  %v55 = vld [vmem:[%s1 + $0xb8] sm:$0xff]
  %v56 = vld [vmem:[%s1 + $0xc0] sm:$0xff]
  %v57 = vld [vmem:[%s1 + $0xc8] sm:$0xff]
  %v58 = vld [vmem:[%s1 + $0xd0] sm:$0xff]
  %v59 = vld [vmem:[%s1 + $0xd8] sm:$0xff]
  %v60 = vld [vmem:[%s1 + $0xe0] sm:$0xff]
  %v61 = vld [vmem:[%s1 + $0xe8] sm:$0xff]
  %v62 = vld [vmem:[%s1 + $0xf0] sm:$0xff]
  %v63 = vld [vmem:[%s1 + $0xf8] sm:$0xff]
  %v64 = vld [vmem:[%s1 + $0x100] sm:$0xff]
  %v65 = vld [vmem:[%s1 + $0x108] sm:$0xff]
  %v66 = vld [vmem:[%s1 + $0x110] sm:$0xff]
  %v67 = vld [vmem:[%s1 + $0x118] sm:$0xff]
  %v68 = vld [vmem:[%s1 + $0x120] sm:$0xff]
  %v69 = vld [vmem:[%s1 + $0x128] sm:$0xff]
  %v70 = vld [vmem:[%s1 + $0x130] sm:$0xff]
  %v71 = vld [vmem:[%s1 + $0x138] sm:$0xff]
  %v72 = vld [vmem:[%s1 + $0x140] sm:$0xff]
  %v73 = vld [vmem:[%s1 + $0x148] sm:$0xff]
  %v74 = vld [vmem:[%s1 + $0x150] sm:$0xff]
  %v75 = vld [vmem:[%s1 + $0x158] sm:$0xff]
  %v76 = vld [vmem:[%s1 + $0x160] sm:$0xff]
  %v77 = vld [vmem:[%s1 + $0x168] sm:$0xff]
  %v78 = vld [vmem:[%s1 + $0x170] sm:$0xff]
  %v79 = vld [vmem:[%s1 + $0x178] sm:$0xff]
  %v80 = vld [vmem:[%s1 + $0x180] sm:$0xff]
  %v81 = vld [vmem:[%s1 + $0x188] sm:$0xff]
  %v82 = vld [vmem:[%s1 + $0x190] sm:$0xff]
  %v83 = vld [vmem:[%s1 + $0x198] sm:$0xff]
  %v84 = vld [vmem:[%s1 + $0x1a0] sm:$0xff]
  %v85 = vld [vmem:[%s1 + $0x1a8] sm:$0xff]
  %v86 = vld [vmem:[%s1 + $0x1b0] sm:$0xff]
  %v87 = vld [vmem:[%s1 + $0x1b8] sm:$0xff]
  %v88 = vld [vmem:[%s1 + $0x1c0] sm:$0xff]
  %v89 = vld [vmem:[%s1 + $0x1c8] sm:$0xff]
  %v90 = vld [vmem:[%s1 + $0x1d0] sm:$0xff]
  %v91 = vld [vmem:[%s1 + $0x1d8] sm:$0xff]
  %v92 = vld [vmem:[%s1 + $0x1e0] sm:$0xff]
  %v93 = vld [vmem:[%s1 + $0x1e8] sm:$0xff]
  %v94 = vld [vmem:[%s1 + $0x1f0] sm:$0xff]
  %v95 = vld [vmem:[%s1 + $0x1f8] sm:$0xff]
  %v96 = vld [vmem:[%s1 + $0x200] sm:$0xff]
  %v97 = vld [vmem:[%s1 + $0x208] sm:$0xff]
  %v98 = vld [vmem:[%s1 + $0x210] sm:$0xff]
  %v99 = vld [vmem:[%s1 + $0x218] sm:$0xff]
  %v100 = vld [vmem:[%s1 + $0x220] sm:$0xff]
  %v101 = vld [vmem:[%s1 + $0x228] sm:$0xff]
  %v102 = vld [vmem:[%s1 + $0x230] sm:$0xff]
  %v103 = vld [vmem:[%s1 + $0x238] sm:$0xff]
  %v104 = vld [vmem:[%s1 + $0x240] sm:$0xff]
  %v105 = vld [vmem:[%s1 + $0x248] sm:$0xff]
  %v106 = vld [vmem:[%s1 + $0x250] sm:$0xff]
  %v107 = vld [vmem:[%s1 + $0x258] sm:$0xff]
  %v108 = vld [vmem:[%s1 + $0x260] sm:$0xff]
  %v109 = vld [vmem:[%s1 + $0x268] sm:$0xff]
  %v110 = vld [vmem:[%s1 + $0x270] sm:$0xff]
  %v111 = vld [vmem:[%s1 + $0x278] sm:$0xff]
  %v112 = vld [vmem:[%s1 + $0x280] sm:$0xff]
  %v113 = vld [vmem:[%s1 + $0x288] sm:$0xff]
  %v114 = vld [vmem:[%s1 + $0x290] sm:$0xff]
  %v115 = vld [vmem:[%s1 + $0x298] sm:$0xff]
  %v116 = vld [vmem:[%s1 + $0x2a0] sm:$0xff]
  %v117 = vld [vmem:[%s1 + $0x2a8] sm:$0xff]
  %v118 = vld [vmem:[%s1 + $0x2b0] sm:$0xff]
  %v119 = vld [vmem:[%s1 + $0x2b8] sm:$0xff]
  %v120 = vld [vmem:[%s1 + $0x2c0] sm:$0xff]
  %v121 = vld [vmem:[%s1 + $0x2c8] sm:$0xff]
  %v122 = vld [vmem:[%s1 + $0x2d0] sm:$0xff]
  %v123 = vld [vmem:[%s1 + $0x2d8] sm:$0xff]
  %v124 = vld [vmem:[%s1 + $0x2e0] sm:$0xff]
  %v125 = vld [vmem:[%s1 + $0x2e8] sm:$0xff]
  %v126 = vld [vmem:[%s1 + $0x2f0] sm:$0xff]
  %v127 = vld [vmem:[%s1 + $0x2f8] sm:$0xff]
  %v128 = vld [vmem:[%s1 + $0x300] sm:$0xff]
  %v129 = vld [vmem:[%s1 + $0x308] sm:$0xff]
  %v130 = vld [vmem:[%s1 + $0x310] sm:$0xff]
  %v131 = vld [vmem:[%s1 + $0x318] sm:$0xff]
  %v132 = vld [vmem:[%s1 + $0x320] sm:$0xff]
  %v133 = vld [vmem:[%s1 + $0x328] sm:$0xff]
  %v134 = vld [vmem:[%s1 + $0x330] sm:$0xff]
  %v135 = vld [vmem:[%s1 + $0x338] sm:$0xff]
  %v136 = vld [vmem:[%s1 + $0x340] sm:$0xff]
  %v137 = vld [vmem:[%s1 + $0x348] sm:$0xff]
  %v138 = vld [vmem:[%s1 + $0x350] sm:$0xff]
  %v139 = vld [vmem:[%s1 + $0x358] sm:$0xff]
  %v140 = vld [vmem:[%s1 + $0x360] sm:$0xff]
  %v141 = vld [vmem:[%s1 + $0x368] sm:$0xff]
  %v142 = vld [vmem:[%s1 + $0x370] sm:$0xff]
  %v143 = vld [vmem:[%s1 + $0x378] sm:$0xff]
  %v144 = vld [vmem:[%s1 + $0x380] sm:$0xff]
  %v145 = vld [vmem:[%s1 + $0x388] sm:$0xff]
  %v146 = vld [vmem:[%s1 + $0x390] sm:$0xff]
  %v147 = vld [vmem:[%s1 + $0x398] sm:$0xff]
  %v148 = vld [vmem:[%s1 + $0x3a0] sm:$0xff]
  %v149 = vld [vmem:[%s1 + $0x3a8] sm:$0xff]
  %v150 = vld [vmem:[%s1 + $0x3b0] sm:$0xff]
  %v151 = vld [vmem:[%s1 + $0x3b8] sm:$0xff]
  %v152 = vld [vmem:[%s1 + $0x3c0] sm:$0xff]
  %v153 = vld [vmem:[%s1 + $0x3c8] sm:$0xff]
  %v154 = vld [vmem:[%s1 + $0x3d0] sm:$0xff]
  %v155 = vld [vmem:[%s1 + $0x3d8] sm:$0xff]
  %v156 = vld [vmem:[%s1 + $0x3e0] sm:$0xff]
  %v157 = vld [vmem:[%s1 + $0x3e8] sm:$0xff]
  %v158 = vld [vmem:[%s1 + $0x3f0] sm:$0xff]
  %v159 = vld [vmem:[%s1 + $0x3f8] sm:$0xff]
  %v160 = vld [vmem:[%s1 + $0x400] sm:$0xff]
  %v161 = vld [vmem:[%s1 + $0x408] sm:$0xff]
  %v162 = vld [vmem:[%s1 + $0x410] sm:$0xff]
  %v163 = vld [vmem:[%s1 + $0x418] sm:$0xff]
  %v164 = vld [vmem:[%s1 + $0x420] sm:$0xff]
  %v165 = vld [vmem:[%s1 + $0x428] sm:$0xff]
  %v166 = vld [vmem:[%s1 + $0x430] sm:$0xff]
  %v167 = vld [vmem:[%s1 + $0x438] sm:$0xff]
  %v168 = vld [vmem:[%s1 + $0x440] sm:$0xff]
  %v169 = vld [vmem:[%s1 + $0x448] sm:$0xff]
  %v170 = vld [vmem:[%s1 + $0x450] sm:$0xff]
  %v171 = vld [vmem:[%s1 + $0x458] sm:$0xff]
  %v172 = vld [vmem:[%s1 + $0x460] sm:$0xff]
  %v173 = vld [vmem:[%s1 + $0x468] sm:$0xff]
  %v174 = vld [vmem:[%s1 + $0x470] sm:$0xff]
  %v175 = vld [vmem:[%s1 + $0x478] sm:$0xff]
  %v176 = vld [vmem:[%s1 + $0x480] sm:$0xff]
  %v177 = vld [vmem:[%s1 + $0x488] sm:$0xff]
  %v178 = vld [vmem:[%s1 + $0x490] sm:$0xff]
  %v179 = vld [vmem:[%s1 + $0x498] sm:$0xff]
  %v180 = vld [vmem:[%s1 + $0x4a0] sm:$0xff]
  %v181 = vld [vmem:[%s1 + $0x4a8] sm:$0xff]
  %v182 = vld [vmem:[%s1 + $0x4b0] sm:$0xff]
  %v183 = vld [vmem:[%s1 + $0x4b8] sm:$0xff]
  %v184 = vld [vmem:[%s1 + $0x4c0] sm:$0xff]
  %v185 = vld [vmem:[%s1 + $0x4c8] sm:$0xff]
  %v186 = vld [vmem:[%s1 + $0x4d0] sm:$0xff]
  %v187 = vld [vmem:[%s1 + $0x4d8] sm:$0xff]
  %v188 = vld [vmem:[%s1 + $0x4e0] sm:$0xff]
  %v189 = vld [vmem:[%s1 + $0x4e8] sm:$0xff]
  %v190 = vld [vmem:[%s1 + $0x4f0] sm:$0xff]
  %v191 = vld [vmem:[%s1 + $0x4f8] sm:$0xff]
  %v192 = vld [vmem:[%s1 + $0x500] sm:$0xff]
  %v193 = vld [vmem:[%s1 + $0x508] sm:$0xff]
  %v194 = vld [vmem:[%s1 + $0x510] sm:$0xff]
  %v195 = vld [vmem:[%s1 + $0x518] sm:$0xff]
  %v196 = vld [vmem:[%s1 + $0x520] sm:$0xff]
  %v197 = vld [vmem:[%s1 + $0x528] sm:$0xff]
  %v198 = vld [vmem:[%s1 + $0x530] sm:$0xff]
  %v199 = vld [vmem:[%s1 + $0x538] sm:$0xff]
  %v200 = vld [vmem:[%s1 + $0x540] sm:$0xff]
  %v201 = vld [vmem:[%s1 + $0x548] sm:$0xff]
  %v202 = vld [vmem:[%s1 + $0x550] sm:$0xff]
  %v203 = vld [vmem:[%s1 + $0x558] sm:$0xff]
  %v204 = vld [vmem:[%s1 + $0x560] sm:$0xff]
  %v205 = vld [vmem:[%s1 + $0x568] sm:$0xff]
  %v206 = vld [vmem:[%s1 + $0x570] sm:$0xff]
  %v207 = vld [vmem:[%s1 + $0x578] sm:$0xff]
  %v208 = vld [vmem:[%s1 + $0x580] sm:$0xff]
  %v209 = vld [vmem:[%s1 + $0x588] sm:$0xff]
  %v210 = vld [vmem:[%s1 + $0x590] sm:$0xff]
  %v211 = vld [vmem:[%s1 + $0x598] sm:$0xff]
  %v212 = vld [vmem:[%s1 + $0x5a0] sm:$0xff]
  %v213 = vld [vmem:[%s1 + $0x5a8] sm:$0xff]
  %v214 = vld [vmem:[%s1 + $0x5b0] sm:$0xff]
  %v215 = vld [vmem:[%s1 + $0x5b8] sm:$0xff]
  %v216 = vld [vmem:[%s1 + $0x5c0] sm:$0xff]
  %v217 = vld [vmem:[%s1 + $0x5c8] sm:$0xff]
  %v218 = vld [vmem:[%s1 + $0x5d0] sm:$0xff]
  %v219 = vld [vmem:[%s1 + $0x5d8] sm:$0xff]
  %v220 = vld [vmem:[%s1 + $0x5e0] sm:$0xff]
  %v221 = vld [vmem:[%s1 + $0x5e8] sm:$0xff]
  %v222 = vld [vmem:[%s1 + $0x5f0] sm:$0xff]
  %v223 = vld [vmem:[%s1 + $0x5f8] sm:$0xff]
  %v224 = vld [vmem:[%s1 + $0x600] sm:$0xff]
  %v225 = vld [vmem:[%s1 + $0x608] sm:$0xff]
  %v226 = vld [vmem:[%s1 + $0x610] sm:$0xff]
  %v227 = vld [vmem:[%s1 + $0x618] sm:$0xff]
  %v228 = vld [vmem:[%s1 + $0x620] sm:$0xff]
  %v229 = vld [vmem:[%s1 + $0x628] sm:$0xff]
  %v230 = vld [vmem:[%s1 + $0x630] sm:$0xff]
  %v231 = vld [vmem:[%s1 + $0x638] sm:$0xff]
  %v232 = vld [vmem:[%s1 + $0x640] sm:$0xff]
  %v233 = vld [vmem:[%s1 + $0x648] sm:$0xff]
  %v234 = vld [vmem:[%s1 + $0x650] sm:$0xff]
  %v235 = vld [vmem:[%s1 + $0x658] sm:$0xff]
  %v236 = vld [vmem:[%s1 + $0x660] sm:$0xff]
  %v237 = vld [vmem:[%s1 + $0x668] sm:$0xff]
  %v238 = vld [vmem:[%s1 + $0x670] sm:$0xff]
  %v239 = vld [vmem:[%s1 + $0x678] sm:$0xff]
  %v240 = vld [vmem:[%s1 + $0x680] sm:$0xff]
  %v241 = vld [vmem:[%s1 + $0x688] sm:$0xff]
  %v242 = vld [vmem:[%s1 + $0x690] sm:$0xff]
  %v243 = vld [vmem:[%s1 + $0x698] sm:$0xff]
  %v244 = vld [vmem:[%s1 + $0x6a0] sm:$0xff]
  %v245 = vld [vmem:[%s1 + $0x6a8] sm:$0xff]
  %v246 = vld [vmem:[%s1 + $0x6b0] sm:$0xff]
  %v247 = vld [vmem:[%s1 + $0x6b8] sm:$0xff]
  %v248 = vld [vmem:[%s1 + $0x6c0] sm:$0xff]
  %v249 = vld [vmem:[%s1 + $0x6c8] sm:$0xff]
  %v250 = vld [vmem:[%s1 + $0x6d0] sm:$0xff]
  %v251 = vld [vmem:[%s1 + $0x6d8] sm:$0xff]
  %v252 = vld [vmem:[%s1 + $0x6e0] sm:$0xff]
  %v253 = vld [vmem:[%s1 + $0x6e8] sm:$0xff]
  %v254 = vld [vmem:[%s1 + $0x6f0] sm:$0xff]
  %v255 = vld [vmem:[%s1 + $0x6f8] sm:$0xff]
  %v256 = vld [vmem:[%s1 + $0x700] sm:$0xff]
  %v257 = vld [vmem:[%s1 + $0x708] sm:$0xff]
  %v258 = vld [vmem:[%s1 + $0x710] sm:$0xff]
  %v259 = vld [vmem:[%s1 + $0x718] sm:$0xff]
  %v260 = vld [vmem:[%s1 + $0x720] sm:$0xff]
  %v261 = vld [vmem:[%s1 + $0x728] sm:$0xff]
  %v262 = vld [vmem:[%s1 + $0x730] sm:$0xff]
  %v263 = vld [vmem:[%s1 + $0x738] sm:$0xff]
  %v264 = vld [vmem:[%s1 + $0x740] sm:$0xff]
  %v265 = vld [vmem:[%s1 + $0x748] sm:$0xff]
  %v266 = vld [vmem:[%s1 + $0x750] sm:$0xff]
  %v267 = vld [vmem:[%s1 + $0x758] sm:$0xff]
  %v268 = vld [vmem:[%s1 + $0x760] sm:$0xff]
  %v269 = vld [vmem:[%s1 + $0x768] sm:$0xff]
  %v270 = vld [vmem:[%s1 + $0x770] sm:$0xff]
  %v271 = vld [vmem:[%s1 + $0x778] sm:$0xff]
  %v272 = vld [vmem:[%s1 + $0x780] sm:$0xff]
  %v273 = vld [vmem:[%s1 + $0x788] sm:$0xff]
  %v274 = vld [vmem:[%s1 + $0x790] sm:$0xff]
  %v275 = vld [vmem:[%s1 + $0x798] sm:$0xff]
  %v276 = vld [vmem:[%s1 + $0x7a0] sm:$0xff]
  %v277 = vld [vmem:[%s1 + $0x7a8] sm:$0xff]
  %v278 = vld [vmem:[%s1 + $0x7b0] sm:$0xff]
  %v279 = vld [vmem:[%s1 + $0x7b8] sm:$0xff]
  %v280 = vld [vmem:[%s1 + $0x7c0] sm:$0xff]
  %v281 = vld [vmem:[%s1 + $0x7c8] sm:$0xff]
  %v282 = vld [vmem:[%s1 + $0x7d0] sm:$0xff]
  %v283 = vld [vmem:[%s1 + $0x7d8] sm:$0xff]
  %v284 = vld [vmem:[%s1 + $0x7e0] sm:$0xff]
  %v285 = vld [vmem:[%s1 + $0x7e8] sm:$0xff]
  %v286 = vld [vmem:[%s1 + $0x7f0] sm:$0xff]
  %v287 = vld [vmem:[%s1 + $0x7f8] sm:$0xff]
  %v288 = vld [vmem:[%s1 + $0x800] sm:$0xff]
  %v289 = vld [vmem:[%s1 + $0x808] sm:$0xff]
  %v290 = vld [vmem:[%s1 + $0x810] sm:$0xff]
  %v291 = vld [vmem:[%s1 + $0x818] sm:$0xff]
  %v292 = vld [vmem:[%s1 + $0x820] sm:$0xff]
  %v293 = vld [vmem:[%s1 + $0x828] sm:$0xff]
  %v294 = vld [vmem:[%s1 + $0x830] sm:$0xff]
  %v295 = vld [vmem:[%s1 + $0x838] sm:$0xff]
  %v296 = vld [vmem:[%s1 + $0x840] sm:$0xff]
  %v297 = vld [vmem:[%s1 + $0x848] sm:$0xff]
  %v298 = vld [vmem:[%s1 + $0x850] sm:$0xff]
  %v299 = vld [vmem:[%s1 + $0x858] sm:$0xff]
  %v300 = vld [vmem:[%s1 + $0x860] sm:$0xff]
  %v301 = vld [vmem:[%s1 + $0x868] sm:$0xff]
  %v302 = vld [vmem:[%s1 + $0x870] sm:$0xff]
  %v303 = vld [vmem:[%s1 + $0x878] sm:$0xff]
  %v304 = vld [vmem:[%s1 + $0x880] sm:$0xff]
  %v305 = vld [vmem:[%s1 + $0x888] sm:$0xff]
  %v306 = vld [vmem:[%s1 + $0x890] sm:$0xff]
  %v307 = vld [vmem:[%s1 + $0x898] sm:$0xff]
  %v308 = vld [vmem:[%s1 + $0x8a0] sm:$0xff]
  %v309 = vld [vmem:[%s1 + $0x8a8] sm:$0xff]
  %v310 = vld [vmem:[%s1 + $0x8b0] sm:$0xff]
  %v311 = vld [vmem:[%s1 + $0x8b8] sm:$0xff]
  %v312 = vld [vmem:[%s1 + $0x8c0] sm:$0xff]
  %v313 = vld [vmem:[%s1 + $0x8c8] sm:$0xff]
  %v314 = vld [vmem:[%s1 + $0x8d0] sm:$0xff]
  %v315 = vld [vmem:[%s1 + $0x8d8] sm:$0xff]
  %v316 = vld [vmem:[%s1 + $0x8e0] sm:$0xff]
  %v317 = vld [vmem:[%s1 + $0x8e8] sm:$0xff]
  %v318 = vld [vmem:[%s1 + $0x8f0] sm:$0xff]
  %v319 = vld [vmem:[%s1 + $0x8f8] sm:$0xff]
  %v320 = vld [vmem:[%s1 + $0x900] sm:$0xff]
  %v321 = vld [vmem:[%s1 + $0x908] sm:$0xff]
  %v322 = vld [vmem:[%s1 + $0x910] sm:$0xff]
  %v323 = vld [vmem:[%s1 + $0x918] sm:$0xff]
  %v324 = vld [vmem:[%s1 + $0x920] sm:$0xff]
  %v325 = vld [vmem:[%s1 + $0x928] sm:$0xff]
  %v326 = vld [vmem:[%s1 + $0x930] sm:$0xff]
  %v327 = vld [vmem:[%s1 + $0x938] sm:$0xff]
  %v328 = vld [vmem:[%s1 + $0x940] sm:$0xff]
  %v329 = vld [vmem:[%s1 + $0x948] sm:$0xff]
  %v330 = vld [vmem:[%s1 + $0x950] sm:$0xff]
  %v331 = vld [vmem:[%s1 + $0x958] sm:$0xff]
  %v332 = vld [vmem:[%s1 + $0x960] sm:$0xff]
  %v333 = vld [vmem:[%s1 + $0x968] sm:$0xff]
  %v334 = vld [vmem:[%s1 + $0x970] sm:$0xff]
  %v335 = vld [vmem:[%s1 + $0x978] sm:$0xff]
  %v336 = vld [vmem:[%s1 + $0x980] sm:$0xff]
  %v337 = vld [vmem:[%s1 + $0x988] sm:$0xff]
  %v338 = vld [vmem:[%s1 + $0x990] sm:$0xff]
  %v339 = vld [vmem:[%s1 + $0x998] sm:$0xff]
  %v340 = vld [vmem:[%s1 + $0x9a0] sm:$0xff]
  %v341 = vld [vmem:[%s1 + $0x9a8] sm:$0xff]
  %v342 = vld [vmem:[%s1 + $0x9b0] sm:$0xff]
  %v343 = vld [vmem:[%s1 + $0x9b8] sm:$0xff]
  %v344 = vld [vmem:[%s1 + $0x9c0] sm:$0xff]
  %v345 = vld [vmem:[%s1 + $0x9c8] sm:$0xff]
  %v346 = vld [vmem:[%s1 + $0x9d0] sm:$0xff]
  %v347 = vld [vmem:[%s1 + $0x9d8] sm:$0xff]
  %v348 = vld [vmem:[%s1 + $0x9e0] sm:$0xff]
  %v349 = vld [vmem:[%s1 + $0x9e8] sm:$0xff]
  %v350 = vld [vmem:[%s1 + $0x9f0] sm:$0xff]
  %v351 = vld [vmem:[%s1 + $0x9f8] sm:$0xff]
  %v352 = vld [vmem:[%s1 + $0xa00] sm:$0xff]
  %v353 = vld [vmem:[%s1 + $0xa08] sm:$0xff]
  %v354 = vld [vmem:[%s1 + $0xa10] sm:$0xff]
  %v355 = vld [vmem:[%s1 + $0xa18] sm:$0xff]
  %v356 = vld [vmem:[%s1 + $0xa20] sm:$0xff]
  %v357 = vld [vmem:[%s1 + $0xa28] sm:$0xff]
  %v358 = vld [vmem:[%s1 + $0xa30] sm:$0xff]
  %v359 = vld [vmem:[%s1 + $0xa38] sm:$0xff]
  %v360 = vld [vmem:[%s1 + $0xa40] sm:$0xff]
  %v361 = vld [vmem:[%s1 + $0xa48] sm:$0xff]
  %v362 = vld [vmem:[%s1 + $0xa50] sm:$0xff]
  %v363 = vld [vmem:[%s1 + $0xa58] sm:$0xff]
  %v364 = vld [vmem:[%s1 + $0xa60] sm:$0xff]
  %v365 = vld [vmem:[%s1 + $0xa68] sm:$0xff]
  %v366 = vld [vmem:[%s1 + $0xa70] sm:$0xff]
  %v367 = vld [vmem:[%s1 + $0xa78] sm:$0xff]
  %v368 = vld [vmem:[%s1 + $0xa80] sm:$0xff]
  %v369 = vld [vmem:[%s1 + $0xa88] sm:$0xff]
  %v370 = vld [vmem:[%s1 + $0xa90] sm:$0xff]
  %v371 = vld [vmem:[%s1 + $0xa98] sm:$0xff]
  %v372 = vld [vmem:[%s1 + $0xaa0] sm:$0xff]
  %v373 = vld [vmem:[%s1 + $0xaa8] sm:$0xff]
  %v374 = vld [vmem:[%s1 + $0xab0] sm:$0xff]
  %v375 = vld [vmem:[%s1 + $0xab8] sm:$0xff]
  %v376 = vld [vmem:[%s1 + $0xac0] sm:$0xff]
  %v377 = vld [vmem:[%s1 + $0xac8] sm:$0xff]
  %v378 = vld [vmem:[%s1 + $0xad0] sm:$0xff]
  %v379 = vld [vmem:[%s1 + $0xad8] sm:$0xff]
  %v380 = vld [vmem:[%s1 + $0xae0] sm:$0xff]
  %v381 = vld [vmem:[%s1 + $0xae8] sm:$0xff]
  %v382 = vld [vmem:[%s1 + $0xaf0] sm:$0xff]
  %v383 = vld [vmem:[%s1 + $0xaf8] sm:$0xff]
  %v384 = vld [vmem:[%s1 + $0xb00] sm:$0xff]
  %v385 = vld [vmem:[%s1 + $0xb08] sm:$0xff]
  %v386 = vld [vmem:[%s1 + $0xb10] sm:$0xff]
  %v387 = vld [vmem:[%s1 + $0xb18] sm:$0xff]
  %v388 = vld [vmem:[%s1 + $0xb20] sm:$0xff]
  %v389 = vld [vmem:[%s1 + $0xb28] sm:$0xff]
  %v390 = vld [vmem:[%s1 + $0xb30] sm:$0xff]
  %v391 = vld [vmem:[%s1 + $0xb38] sm:$0xff]
  %v392 = vld [vmem:[%s1 + $0xb40] sm:$0xff]
  %v393 = vld [vmem:[%s1 + $0xb48] sm:$0xff]
  %v394 = vld [vmem:[%s1 + $0xb50] sm:$0xff]
  %v395 = vld [vmem:[%s1 + $0xb58] sm:$0xff]
  %v396 = vld [vmem:[%s1 + $0xb60] sm:$0xff]
  %v397 = vld [vmem:[%s1 + $0xb68] sm:$0xff]
  %v398 = vld [vmem:[%s1 + $0xb70] sm:$0xff]
  %v399 = vld [vmem:[%s1 + $0xb78] sm:$0xff]
  %v400 = vld [vmem:[%s1 + $0xb80] sm:$0xff]
  %v401 = vld [vmem:[%s1 + $0xb88] sm:$0xff]
  %v402 = vld [vmem:[%s1 + $0xb90] sm:$0xff]
  %v403 = vld [vmem:[%s1 + $0xb98] sm:$0xff]
  %v404 = vld [vmem:[%s1 + $0xba0] sm:$0xff]
  %v405 = vld [vmem:[%s1 + $0xba8] sm:$0xff]
  %v406 = vld [vmem:[%s1 + $0xbb0] sm:$0xff]
  %v407 = vld [vmem:[%s1 + $0xbb8] sm:$0xff]
  %v408 = vld [vmem:[%s1 + $0xbc0] sm:$0xff]
  %v409 = vld [vmem:[%s1 + $0xbc8] sm:$0xff]
  %v410 = vld [vmem:[%s1 + $0xbd0] sm:$0xff]
  %v411 = vld [vmem:[%s1 + $0xbd8] sm:$0xff]
  %v412 = vld [vmem:[%s1 + $0xbe0] sm:$0xff]
  %v413 = vld [vmem:[%s1 + $0xbe8] sm:$0xff]
  %v414 = vld [vmem:[%s1 + $0xbf0] sm:$0xff]
  %v415 = vld [vmem:[%s1 + $0xbf8] sm:$0xff]
  %v416 = vld [vmem:[%s1 + $0xc00] sm:$0xff]
  %v417 = vld [vmem:[%s1 + $0xc08] sm:$0xff]
  %v418 = vld [vmem:[%s1 + $0xc10] sm:$0xff]
  %v419 = vld [vmem:[%s1 + $0xc18] sm:$0xff]
  %v420 = vld [vmem:[%s1 + $0xc20] sm:$0xff]
  %v421 = vld [vmem:[%s1 + $0xc28] sm:$0xff]
  %v422 = vld [vmem:[%s1 + $0xc30] sm:$0xff]
  %v423 = vld [vmem:[%s1 + $0xc38] sm:$0xff]
  %v424 = vld [vmem:[%s1 + $0xc40] sm:$0xff]
  %v425 = vld [vmem:[%s1 + $0xc48] sm:$0xff]
  %v426 = vld [vmem:[%s1 + $0xc50] sm:$0xff]
  %v427 = vld [vmem:[%s1 + $0xc58] sm:$0xff]
  %v428 = vld [vmem:[%s1 + $0xc60] sm:$0xff]
  %v429 = vld [vmem:[%s1 + $0xc68] sm:$0xff]
  %v430 = vld [vmem:[%s1 + $0xc70] sm:$0xff]
  %v431 = vld [vmem:[%s1 + $0xc78] sm:$0xff]
  %v432 = vld [vmem:[%s1 + $0xc80] sm:$0xff]
  %v433 = vld [vmem:[%s1 + $0xc88] sm:$0xff]
  %v434 = vld [vmem:[%s1 + $0xc90] sm:$0xff]
  %v435 = vld [vmem:[%s1 + $0xc98] sm:$0xff]
  %v436 = vld [vmem:[%s1 + $0xca0] sm:$0xff]
  %v437 = vld [vmem:[%s1 + $0xca8] sm:$0xff]
  %v438 = vld [vmem:[%s1 + $0xcb0] sm:$0xff]
  %v439 = vld [vmem:[%s1 + $0xcb8] sm:$0xff]
  %v440 = vld [vmem:[%s1 + $0xcc0] sm:$0xff]
  %v441 = vld [vmem:[%s1 + $0xcc8] sm:$0xff]
  %v442 = vld [vmem:[%s1 + $0xcd0] sm:$0xff]
  %v443 = vld [vmem:[%s1 + $0xcd8] sm:$0xff]
  %v444 = vld [vmem:[%s1 + $0xce0] sm:$0xff]
  %v445 = vld [vmem:[%s1 + $0xce8] sm:$0xff]
  %v446 = vld [vmem:[%s1 + $0xcf0] sm:$0xff]
  %v447 = vld [vmem:[%s1 + $0xcf8] sm:$0xff]
  %v448 = vld [vmem:[%s1 + $0xd00] sm:$0xff]
  %v449 = vld [vmem:[%s1 + $0xd08] sm:$0xff]
  %v450 = vld [vmem:[%s1 + $0xd10] sm:$0xff]
  %v451 = vld [vmem:[%s1 + $0xd18] sm:$0xff]
  %v452 = vld [vmem:[%s1 + $0xd20] sm:$0xff]
  %v453 = vld [vmem:[%s1 + $0xd28] sm:$0xff]
  %v454 = vld [vmem:[%s1 + $0xd30] sm:$0xff]
  %v455 = vld [vmem:[%s1 + $0xd38] sm:$0xff]
  %v456 = vld [vmem:[%s1 + $0xd40] sm:$0xff]
  %v457 = vld [vmem:[%s1 + $0xd48] sm:$0xff]
  %v458 = vld [vmem:[%s1 + $0xd50] sm:$0xff]
  %v459 = vld [vmem:[%s1 + $0xd58] sm:$0xff]
  %v460 = vld [vmem:[%s1 + $0xd60] sm:$0xff]
  %v461 = vld [vmem:[%s1 + $0xd68] sm:$0xff]
  %v462 = vld [vmem:[%s1 + $0xd70] sm:$0xff]
  %v463 = vld [vmem:[%s1 + $0xd78] sm:$0xff]
  %v464 = vld [vmem:[%s1 + $0xd80] sm:$0xff]
  %v465 = vld [vmem:[%s1 + $0xd88] sm:$0xff]
  %v466 = vld [vmem:[%s1 + $0xd90] sm:$0xff]
  %v467 = vld [vmem:[%s1 + $0xd98] sm:$0xff]
  %v468 = vld [vmem:[%s1 + $0xda0] sm:$0xff]
  %v469 = vld [vmem:[%s1 + $0xda8] sm:$0xff]
  %v470 = vld [vmem:[%s1 + $0xdb0] sm:$0xff]
  %v471 = vld [vmem:[%s1 + $0xdb8] sm:$0xff]
  %v472 = vld [vmem:[%s1 + $0xdc0] sm:$0xff]
  %v473 = vld [vmem:[%s1 + $0xdc8] sm:$0xff]
  %v474 = vld [vmem:[%s1 + $0xdd0] sm:$0xff]
  %v475 = vld [vmem:[%s1 + $0xdd8] sm:$0xff]
  %v476 = vld [vmem:[%s1 + $0xde0] sm:$0xff]
  %v477 = vld [vmem:[%s1 + $0xde8] sm:$0xff]
  %v478 = vld [vmem:[%s1 + $0xdf0] sm:$0xff]
  %v479 = vld [vmem:[%s1 + $0xdf8] sm:$0xff]
  %v480 = vld [vmem:[%s1 + $0xe00] sm:$0xff]
  %v481 = vld [vmem:[%s1 + $0xe08] sm:$0xff]
  %v482 = vld [vmem:[%s1 + $0xe10] sm:$0xff]
  %v483 = vld [vmem:[%s1 + $0xe18] sm:$0xff]
  %v484 = vld [vmem:[%s1 + $0xe20] sm:$0xff]
  %v485 = vld [vmem:[%s1 + $0xe28] sm:$0xff]
  %v486 = vld [vmem:[%s1 + $0xe30] sm:$0xff]
  %v487 = vld [vmem:[%s1 + $0xe38] sm:$0xff]
  %v488 = vld [vmem:[%s1 + $0xe40] sm:$0xff]
  %v489 = vld [vmem:[%s1 + $0xe48] sm:$0xff]
  %v490 = vld [vmem:[%s1 + $0xe50] sm:$0xff]
  %v491 = vld [vmem:[%s1 + $0xe58] sm:$0xff]
  %v492 = vld [vmem:[%s1 + $0xe60] sm:$0xff]
  %v493 = vld [vmem:[%s1 + $0xe68] sm:$0xff]
  %v494 = vld [vmem:[%s1 + $0xe70] sm:$0xff]
  %v495 = vld [vmem:[%s1 + $0xe78] sm:$0xff]
  %v496 = vld [vmem:[%s1 + $0xe80] sm:$0xff]
  %v497 = vld [vmem:[%s1 + $0xe88] sm:$0xff]
  %v498 = vld [vmem:[%s1 + $0xe90] sm:$0xff]
  %v499 = vld [vmem:[%s1 + $0xe98] sm:$0xff]
  %v500 = vld [vmem:[%s1 + $0xea0] sm:$0xff]
  %v501 = vld [vmem:[%s1 + $0xea8] sm:$0xff]
  %v502 = vld [vmem:[%s1 + $0xeb0] sm:$0xff]
  %v503 = vld [vmem:[%s1 + $0xeb8] sm:$0xff]
  %v504 = vld [vmem:[%s1 + $0xec0] sm:$0xff]
  %v505 = vld [vmem:[%s1 + $0xec8] sm:$0xff]
  %v506 = vld [vmem:[%s1 + $0xed0] sm:$0xff]
  %v507 = vld [vmem:[%s1 + $0xed8] sm:$0xff]
  %v508 = vld [vmem:[%s1 + $0xee0] sm:$0xff]
  %v509 = vld [vmem:[%s1 + $0xee8] sm:$0xff]
  %v510 = vld [vmem:[%s1 + $0xef0] sm:$0xff]
  %v511 = vld [vmem:[%s1 + $0xef8] sm:$0xff]
  %v512 = vld [vmem:[%s1 + $0xf00] sm:$0xff]
  %v513 = vld [vmem:[%s1 + $0xf08] sm:$0xff]
  %v514 = vld [vmem:[%s1 + $0xf10] sm:$0xff]
  %v515 = vld [vmem:[%s1 + $0xf18] sm:$0xff]
  %v516 = vld [vmem:[%s1 + $0xf20] sm:$0xff]
  %v517 = vld [vmem:[%s1 + $0xf28] sm:$0xff]
  %v518 = vld [vmem:[%s1 + $0xf30] sm:$0xff]
  %v519 = vld [vmem:[%s1 + $0xf38] sm:$0xff]
  %v520 = vld [vmem:[%s1 + $0xf40] sm:$0xff]
  %v521 = vld [vmem:[%s1 + $0xf48] sm:$0xff]
  %v522 = vld [vmem:[%s1 + $0xf50] sm:$0xff]
  %v523 = vld [vmem:[%s1 + $0xf58] sm:$0xff]
  %v524 = vld [vmem:[%s1 + $0xf60] sm:$0xff]
  %v525 = vld [vmem:[%s1 + $0xf68] sm:$0xff]
  %v526 = vld [vmem:[%s1 + $0xf70] sm:$0xff]
  %v527 = vld [vmem:[%s1 + $0xf78] sm:$0xff]
  %v528 = vld [vmem:[%s1 + $0xf80] sm:$0xff]
  %v529 = vld [vmem:[%s1 + $0xf88] sm:$0xff]
  %v530 = vld [vmem:[%s1 + $0xf90] sm:$0xff]
  %v531 = vld [vmem:[%s1 + $0xf98] sm:$0xff]
  %v532 = vld [vmem:[%s1 + $0xfa0] sm:$0xff]
  %v533 = vld [vmem:[%s1 + $0xfa8] sm:$0xff]
  %v534 = vld [vmem:[%s1 + $0xfb0] sm:$0xff]
  %v535 = vld [vmem:[%s1 + $0xfb8] sm:$0xff]
  %v536 = vld [vmem:[%s1 + $0xfc0] sm:$0xff]
  %v537 = vld [vmem:[%s1 + $0xfc8] sm:$0xff]
  %v538 = vld [vmem:[%s1 + $0xfd0] sm:$0xff]
  %v539 = vld [vmem:[%s1 + $0xfd8] sm:$0xff]
  %v540 = vld [vmem:[%s1 + $0xfe0] sm:$0xff]
  %v541 = vld [vmem:[%s1 + $0xfe8] sm:$0xff]
  %v542 = vld [vmem:[%s1 + $0xff0] sm:$0xff]
  %v543 = vld [vmem:[%s1 + $0xff8] sm:$0xff]
  %v544 = vld [vmem:[%s1 + $0x1000] sm:$0xff]
  %v545 = vld [vmem:[%s1 + $0x1008] sm:$0xff]
  %v546 = vld [vmem:[%s1 + $0x1010] sm:$0xff]
  %v547 = vld [vmem:[%s1 + $0x1018] sm:$0xff]
  %v548 = vld [vmem:[%s1 + $0x1020] sm:$0xff]
  %v549 = vld [vmem:[%s1 + $0x1028] sm:$0xff]
  %v550 = vld [vmem:[%s1 + $0x1030] sm:$0xff]
  %v551 = vld [vmem:[%s1 + $0x1038] sm:$0xff]
  %v552 = vld [vmem:[%s1 + $0x1040] sm:$0xff]
  %v553 = vld [vmem:[%s1 + $0x1048] sm:$0xff]
  %v554 = vld [vmem:[%s1 + $0x1050] sm:$0xff]
  %v555 = vld [vmem:[%s1 + $0x1058] sm:$0xff]
  %v556 = vld [vmem:[%s1 + $0x1060] sm:$0xff]
  %v557 = vld [vmem:[%s1 + $0x1068] sm:$0xff]
  %v558 = vld [vmem:[%s1 + $0x1070] sm:$0xff]
  %v559 = vld [vmem:[%s1 + $0x1078] sm:$0xff]
  %v560 = vld [vmem:[%s1 + $0x1080] sm:$0xff]
  %v561 = vld [vmem:[%s1 + $0x1088] sm:$0xff]
  %v562 = vld [vmem:[%s1 + $0x1090] sm:$0xff]
  %v563 = vld [vmem:[%s1 + $0x1098] sm:$0xff]
  %v564 = vld [vmem:[%s1 + $0x10a0] sm:$0xff]
  %v565 = vld [vmem:[%s1 + $0x10a8] sm:$0xff]
  %v566 = vld [vmem:[%s1 + $0x10b0] sm:$0xff]
  %v567 = vld [vmem:[%s1 + $0x10b8] sm:$0xff]
  %v568 = vld [vmem:[%s1 + $0x10c0] sm:$0xff]
  %v569 = vld [vmem:[%s1 + $0x10c8] sm:$0xff]
  %v570 = vld [vmem:[%s1 + $0x10d0] sm:$0xff]
  %v571 = vld [vmem:[%s1 + $0x10d8] sm:$0xff]
  %v572 = vld [vmem:[%s1 + $0x10e0] sm:$0xff]
  %v573 = vld [vmem:[%s1 + $0x10e8] sm:$0xff]
  %v574 = vld [vmem:[%s1 + $0x10f0] sm:$0xff]
  %v575 = vld [vmem:[%s1 + $0x10f8] sm:$0xff]
  %v576 = vld [vmem:[%s1 + $0x1100] sm:$0xff]
  %v577 = vld [vmem:[%s1 + $0x1108] sm:$0xff]
  %v578 = vld [vmem:[%s1 + $0x1110] sm:$0xff]
  %v579 = vld [vmem:[%s1 + $0x1118] sm:$0xff]
  %v580 = vld [vmem:[%s1 + $0x1120] sm:$0xff]
  %v581 = vld [vmem:[%s1 + $0x1128] sm:$0xff]
  %v582 = vld [vmem:[%s1 + $0x1130] sm:$0xff]
  %v583 = vld [vmem:[%s1 + $0x1138] sm:$0xff]
  %v584 = vld [vmem:[%s1 + $0x1140] sm:$0xff]
  %v585 = vld [vmem:[%s1 + $0x1148] sm:$0xff]
  %v586 = vld [vmem:[%s1 + $0x1150] sm:$0xff]
  %v587 = vld [vmem:[%s1 + $0x1158] sm:$0xff]
  %v588 = vld [vmem:[%s1 + $0x1160] sm:$0xff]
  %v589 = vld [vmem:[%s1 + $0x1168] sm:$0xff]
  %v590 = vld [vmem:[%s1 + $0x1170] sm:$0xff]
  %v591 = vld [vmem:[%s1 + $0x1178] sm:$0xff]
  %v592 = vld [vmem:[%s1 + $0x1180] sm:$0xff]
  %v593 = vld [vmem:[%s1 + $0x1188] sm:$0xff]
  %v594 = vld [vmem:[%s1 + $0x1190] sm:$0xff]
  %v595 = vld [vmem:[%s1 + $0x1198] sm:$0xff]
  %v596 = vld [vmem:[%s1 + $0x11a0] sm:$0xff]
  %v597 = vld [vmem:[%s1 + $0x11a8] sm:$0xff]
  %v598 = vld [vmem:[%s1 + $0x11b0] sm:$0xff]
  %v599 = vld [vmem:[%s1 + $0x11b8] sm:$0xff]
  %v600 = vld [vmem:[%s1 + $0x11c0] sm:$0xff]
  %v601 = vld [vmem:[%s1 + $0x11c8] sm:$0xff]
  %v602 = vld [vmem:[%s1 + $0x11d0] sm:$0xff]
  %v603 = vld [vmem:[%s1 + $0x11d8] sm:$0xff]
  %v604 = vld [vmem:[%s1 + $0x11e0] sm:$0xff]
  %v605 = vld [vmem:[%s1 + $0x11e8] sm:$0xff]
  %v606 = vld [vmem:[%s1 + $0x11f0] sm:$0xff]
  %v607 = vld [vmem:[%s1 + $0x11f8] sm:$0xff]
  %v608 = vld [vmem:[%s2] sm:$0x3]
  %v610 = vlaneseq
  %v611 = vshrl.u32 %v610, 7
  %v612 = vsub.s32 0, %v611
  %v613 = vrot.slane %v608, %v612
  %v614 = vlaneseq
  %v615 = vshrl.u32 %v614, 7
  %v616 = vsub.s32 1, %v615
  %v617 = vrot.slane %v608, %v616
  %620 = vmatprep.subr.mxu0 %v33
  %621 = vmatpush1.msra.mxu0 %v32
  %622 = vmatprep.subr.mxu0 %v35
  %623 = vmatpush1.msra.mxu0 %v34
  %624 = vmatprep.subr.mxu0 %v37
  %625 = vmatpush1.msra.mxu0 %v36
  %626 = vmatprep.subr.mxu0 %v39
  %627 = vmatpush1.msra.mxu0 %v38
  %628 = vmatprep.subr.mxu0 %v41
  %629 = vmatpush1.msra.mxu0 %v40
  %630 = vmatprep.subr.mxu0 %v43
  %631 = vmatpush1.msra.mxu0 %v42
  %632 = vmatprep.subr.mxu0 %v45
  %633 = vmatpush1.msra.mxu0 %v44
  %634 = vmatprep.subr.mxu0 %v47
  %635 = vmatpush1.msra.mxu0 %v46
  %636 = vmatprep.subr.mxu0 %v49
  %637 = vmatpush1.msra.mxu0 %v48
  %638 = vmatprep.subr.mxu0 %v51
  %639 = vmatpush1.msra.mxu0 %v50
  %640 = vmatprep.subr.mxu0 %v53
  %641 = vmatpush1.msra.mxu0 %v52
  %642 = vmatprep.subr.mxu0 %v55
  %643 = vmatpush1.msra.mxu0 %v54
  %644 = vmatprep.subr.mxu0 %v57
  %645 = vmatpush1.msra.mxu0 %v56
  %646 = vmatprep.subr.mxu0 %v59
  %647 = vmatpush1.msra.mxu0 %v58
  %648 = vmatprep.subr.mxu0 %v61
  %649 = vmatpush1.msra.mxu0 %v60
  %650 = vmatprep.subr.mxu0 %v63
  %651 = vmatpush1.msra.mxu0 %v62
  %652 = vmatprep.subr.mxu0 %v65
  %653 = vmatpush1.msra.mxu0 %v64
  %654 = vmatprep.subr.mxu0 %v67
  %655 = vmatpush1.msra.mxu0 %v66
  %656 = vmatprep.subr.mxu0 %v69
  %657 = vmatpush1.msra.mxu0 %v68
  %658 = vmatprep.subr.mxu0 %v71
  %659 = vmatpush1.msra.mxu0 %v70
  %660 = vmatprep.subr.mxu0 %v73
  %661 = vmatpush1.msra.mxu0 %v72
  %662 = vmatprep.subr.mxu0 %v75
  %663 = vmatpush1.msra.mxu0 %v74
  %664 = vmatprep.subr.mxu0 %v77
  %665 = vmatpush1.msra.mxu0 %v76
  %666 = vmatprep.subr.mxu0 %v79
  %667 = vmatpush1.msra.mxu0 %v78
  %668 = vmatprep.subr.mxu0 %v81
  %669 = vmatpush1.msra.mxu0 %v80
  %670 = vmatprep.subr.mxu0 %v83
  %671 = vmatpush1.msra.mxu0 %v82
  %672 = vmatprep.subr.mxu0 %v85
  %673 = vmatpush1.msra.mxu0 %v84
  %674 = vmatprep.subr.mxu0 %v87
  %675 = vmatpush1.msra.mxu0 %v86
  %676 = vmatprep.subr.mxu0 %v89
  %677 = vmatpush1.msra.mxu0 %v88
  %678 = vmatprep.subr.mxu0 %v91
  %679 = vmatpush1.msra.mxu0 %v90
  %680 = vmatprep.subr.mxu0 %v93
  %681 = vmatpush1.msra.mxu0 %v92
  %682 = vmatprep.subr.mxu0 %v95
  %683 = vmatpush1.msra.mxu0 %v94
  %684 = vmatprep.mubr.f32.mxu0 %v15
  %685 = vmatmul.mubr.f32.gmra.mrb[0].mxu0 %v14
  %v686 = vpop.f32.mrb[0].mxu0
  %v687 = vadd.f32 %v613, %v686
  %v688 = vpop.f32.mrb[0].mxu0
  %v689 = vadd.f32 %v617, %v688
  %690 = vdwg.mxu0
  %691 = vmatprep.subr.mxu0 %v97
  %692 = vmatpush1.msra.mxu0 %v96
  %693 = vmatprep.subr.mxu0 %v99
  %694 = vmatpush1.msra.mxu0 %v98
  %695 = vmatprep.subr.mxu0 %v101
  %696 = vmatpush1.msra.mxu0 %v100
  %697 = vmatprep.subr.mxu0 %v103
  %698 = vmatpush1.msra.mxu0 %v102
  %699 = vmatprep.subr.mxu0 %v105
  %700 = vmatpush1.msra.mxu0 %v104
  %701 = vmatprep.subr.mxu0 %v107
  %702 = vmatpush1.msra.mxu0 %v106
  %703 = vmatprep.subr.mxu0 %v109
  %704 = vmatpush1.msra.mxu0 %v108
  %705 = vmatprep.subr.mxu0 %v111
  %706 = vmatpush1.msra.mxu0 %v110
  %707 = vmatprep.subr.mxu0 %v113
  %708 = vmatpush1.msra.mxu0 %v112
  %709 = vmatprep.subr.mxu0 %v115
  %710 = vmatpush1.msra.mxu0 %v114
  %711 = vmatprep.subr.mxu0 %v117
  %712 = vmatpush1.msra.mxu0 %v116
  %713 = vmatprep.subr.mxu0 %v119
  %714 = vmatpush1.msra.mxu0 %v118
  %715 = vmatprep.subr.mxu0 %v121
  %716 = vmatpush1.msra.mxu0 %v120
  %717 = vmatprep.subr.mxu0 %v123
  %718 = vmatpush1.msra.mxu0 %v122
  %719 = vmatprep.subr.mxu0 %v125
  %720 = vmatpush1.msra.mxu0 %v124
  %721 = vmatprep.subr.mxu0 %v127
  %722 = vmatpush1.msra.mxu0 %v126
  %723 = vmatprep.subr.mxu0 %v129
  %724 = vmatpush1.msra.mxu0 %v128
  %725 = vmatprep.subr.mxu0 %v131
  %726 = vmatpush1.msra.mxu0 %v130
  %727 = vmatprep.subr.mxu0 %v133
  %728 = vmatpush1.msra.mxu0 %v132
  %729 = vmatprep.subr.mxu0 %v135
  %730 = vmatpush1.msra.mxu0 %v134
  %731 = vmatprep.subr.mxu0 %v137
  %732 = vmatpush1.msra.mxu0 %v136
  %733 = vmatprep.subr.mxu0 %v139
  %734 = vmatpush1.msra.mxu0 %v138
  %735 = vmatprep.subr.mxu0 %v141
  %736 = vmatpush1.msra.mxu0 %v140
  %737 = vmatprep.subr.mxu0 %v143
  %738 = vmatpush1.msra.mxu0 %v142
  %739 = vmatprep.subr.mxu0 %v145
  %740 = vmatpush1.msra.mxu0 %v144
  %741 = vmatprep.subr.mxu0 %v147
  %742 = vmatpush1.msra.mxu0 %v146
  %743 = vmatprep.subr.mxu0 %v149
  %744 = vmatpush1.msra.mxu0 %v148
  %745 = vmatprep.subr.mxu0 %v151
  %746 = vmatpush1.msra.mxu0 %v150
  %747 = vmatprep.subr.mxu0 %v153
  %748 = vmatpush1.msra.mxu0 %v152
  %749 = vmatprep.subr.mxu0 %v155
  %750 = vmatpush1.msra.mxu0 %v154
  %751 = vmatprep.subr.mxu0 %v157
  %752 = vmatpush1.msra.mxu0 %v156
  %753 = vmatprep.subr.mxu0 %v159
  %754 = vmatpush1.msra.mxu0 %v158
  %755 = vmatprep.mubr.f32.mxu0 %v17
  %756 = vmatmul.mubr.f32.gmra.mrb[0].mxu0 %v16
  %v757 = vpop.f32.mrb[0].mxu0
  %v758 = vadd.f32 %v687, %v757
  %v759 = vpop.f32.mrb[0].mxu0
  %v760 = vadd.f32 %v689, %v759
  %761 = vdwg.mxu0
  %762 = vmatprep.subr.mxu0 %v161
  %763 = vmatpush1.msra.mxu0 %v160
  %764 = vmatprep.subr.mxu0 %v163
  %765 = vmatpush1.msra.mxu0 %v162
  %766 = vmatprep.subr.mxu0 %v165
  %767 = vmatpush1.msra.mxu0 %v164
  %768 = vmatprep.subr.mxu0 %v167
  %769 = vmatpush1.msra.mxu0 %v166
  %770 = vmatprep.subr.mxu0 %v169
  %771 = vmatpush1.msra.mxu0 %v168
  %772 = vmatprep.subr.mxu0 %v171
  %773 = vmatpush1.msra.mxu0 %v170
  %774 = vmatprep.subr.mxu0 %v173
  %775 = vmatpush1.msra.mxu0 %v172
  %776 = vmatprep.subr.mxu0 %v175
  %777 = vmatpush1.msra.mxu0 %v174
  %778 = vmatprep.subr.mxu0 %v177
  %779 = vmatpush1.msra.mxu0 %v176
  %780 = vmatprep.subr.mxu0 %v179
  %781 = vmatpush1.msra.mxu0 %v178
  %782 = vmatprep.subr.mxu0 %v181
  %783 = vmatpush1.msra.mxu0 %v180
  %784 = vmatprep.subr.mxu0 %v183
  %785 = vmatpush1.msra.mxu0 %v182
  %786 = vmatprep.subr.mxu0 %v185
  %787 = vmatpush1.msra.mxu0 %v184
  %788 = vmatprep.subr.mxu0 %v187
  %789 = vmatpush1.msra.mxu0 %v186
  %790 = vmatprep.subr.mxu0 %v189
  %791 = vmatpush1.msra.mxu0 %v188
  %792 = vmatprep.subr.mxu0 %v191
  %793 = vmatpush1.msra.mxu0 %v190
  %794 = vmatprep.subr.mxu0 %v193
  %795 = vmatpush1.msra.mxu0 %v192
  %796 = vmatprep.subr.mxu0 %v195
  %797 = vmatpush1.msra.mxu0 %v194
  %798 = vmatprep.subr.mxu0 %v197
  %799 = vmatpush1.msra.mxu0 %v196
  %800 = vmatprep.subr.mxu0 %v199
  %801 = vmatpush1.msra.mxu0 %v198
  %802 = vmatprep.subr.mxu0 %v201
  %803 = vmatpush1.msra.mxu0 %v200
  %804 = vmatprep.subr.mxu0 %v203
  %805 = vmatpush1.msra.mxu0 %v202
  %806 = vmatprep.subr.mxu0 %v205
  %807 = vmatpush1.msra.mxu0 %v204
  %808 = vmatprep.subr.mxu0 %v207
  %809 = vmatpush1.msra.mxu0 %v206
  %810 = vmatprep.subr.mxu0 %v209
  %811 = vmatpush1.msra.mxu0 %v208
  %812 = vmatprep.subr.mxu0 %v211
  %813 = vmatpush1.msra.mxu0 %v210
  %814 = vmatprep.subr.mxu0 %v213
  %815 = vmatpush1.msra.mxu0 %v212
  %816 = vmatprep.subr.mxu0 %v215
  %817 = vmatpush1.msra.mxu0 %v214
  %818 = vmatprep.subr.mxu0 %v217
  %819 = vmatpush1.msra.mxu0 %v216
  %820 = vmatprep.subr.mxu0 %v219
  %821 = vmatpush1.msra.mxu0 %v218
  %822 = vmatprep.subr.mxu0 %v221
  %823 = vmatpush1.msra.mxu0 %v220
  %824 = vmatprep.subr.mxu0 %v223
  %825 = vmatpush1.msra.mxu0 %v222
  %826 = vmatprep.mubr.f32.mxu0 %v19
  %827 = vmatmul.mubr.f32.gmra.mrb[0].mxu0 %v18
  %v828 = vpop.f32.mrb[0].mxu0
  %v829 = vadd.f32 %v758, %v828
  %v830 = vpop.f32.mrb[0].mxu0
  %v831 = vadd.f32 %v760, %v830
  %832 = vdwg.mxu0
  %833 = vmatprep.subr.mxu0 %v225
  %834 = vmatpush1.msra.mxu0 %v224
  %835 = vmatprep.subr.mxu0 %v227
  %836 = vmatpush1.msra.mxu0 %v226
  %837 = vmatprep.subr.mxu0 %v229
  %838 = vmatpush1.msra.mxu0 %v228
  %839 = vmatprep.subr.mxu0 %v231
  %840 = vmatpush1.msra.mxu0 %v230
  %841 = vmatprep.subr.mxu0 %v233
  %842 = vmatpush1.msra.mxu0 %v232
  %843 = vmatprep.subr.mxu0 %v235
  %844 = vmatpush1.msra.mxu0 %v234
  %845 = vmatprep.subr.mxu0 %v237
  %846 = vmatpush1.msra.mxu0 %v236
  %847 = vmatprep.subr.mxu0 %v239
  %848 = vmatpush1.msra.mxu0 %v238
  %849 = vmatprep.subr.mxu0 %v241
  %850 = vmatpush1.msra.mxu0 %v240
  %851 = vmatprep.subr.mxu0 %v243
  %852 = vmatpush1.msra.mxu0 %v242
  %853 = vmatprep.subr.mxu0 %v245
  %854 = vmatpush1.msra.mxu0 %v244
  %855 = vmatprep.subr.mxu0 %v247
  %856 = vmatpush1.msra.mxu0 %v246
  %857 = vmatprep.subr.mxu0 %v249
  %858 = vmatpush1.msra.mxu0 %v248
  %859 = vmatprep.subr.mxu0 %v251
  %860 = vmatpush1.msra.mxu0 %v250
  %861 = vmatprep.subr.mxu0 %v253
  %862 = vmatpush1.msra.mxu0 %v252
  %863 = vmatprep.subr.mxu0 %v255
  %864 = vmatpush1.msra.mxu0 %v254
  %865 = vmatprep.subr.mxu0 %v257
  %866 = vmatpush1.msra.mxu0 %v256
  %867 = vmatprep.subr.mxu0 %v259
  %868 = vmatpush1.msra.mxu0 %v258
  %869 = vmatprep.subr.mxu0 %v261
  %870 = vmatpush1.msra.mxu0 %v260
  %871 = vmatprep.subr.mxu0 %v263
  %872 = vmatpush1.msra.mxu0 %v262
  %873 = vmatprep.subr.mxu0 %v265
  %874 = vmatpush1.msra.mxu0 %v264
  %875 = vmatprep.subr.mxu0 %v267
  %876 = vmatpush1.msra.mxu0 %v266
  %877 = vmatprep.subr.mxu0 %v269
  %878 = vmatpush1.msra.mxu0 %v268
  %879 = vmatprep.subr.mxu0 %v271
  %880 = vmatpush1.msra.mxu0 %v270
  %881 = vmatprep.subr.mxu0 %v273
  %882 = vmatpush1.msra.mxu0 %v272
  %883 = vmatprep.subr.mxu0 %v275
  %884 = vmatpush1.msra.mxu0 %v274
  %885 = vmatprep.subr.mxu0 %v277
  %886 = vmatpush1.msra.mxu0 %v276
  %887 = vmatprep.subr.mxu0 %v279
  %888 = vmatpush1.msra.mxu0 %v278
  %889 = vmatprep.subr.mxu0 %v281
  %890 = vmatpush1.msra.mxu0 %v280
  %891 = vmatprep.subr.mxu0 %v283
  %892 = vmatpush1.msra.mxu0 %v282
  %893 = vmatprep.subr.mxu0 %v285
  %894 = vmatpush1.msra.mxu0 %v284
  %895 = vmatprep.subr.mxu0 %v287
  %896 = vmatpush1.msra.mxu0 %v286
  %897 = vmatprep.mubr.f32.mxu0 %v21
  %898 = vmatmul.mubr.f32.gmra.mrb[0].mxu0 %v20
  %v899 = vpop.f32.mrb[0].mxu0
  %v900 = vadd.f32 %v829, %v899
  %v901 = vpop.f32.mrb[0].mxu0
  %v902 = vadd.f32 %v831, %v901
  %903 = vdwg.mxu0
  %904 = vmatprep.subr.mxu0 %v289
  %905 = vmatpush1.msra.mxu0 %v288
  %906 = vmatprep.subr.mxu0 %v291
  %907 = vmatpush1.msra.mxu0 %v290
  %908 = vmatprep.subr.mxu0 %v293
  %909 = vmatpush1.msra.mxu0 %v292
  %910 = vmatprep.subr.mxu0 %v295
  %911 = vmatpush1.msra.mxu0 %v294
  %912 = vmatprep.subr.mxu0 %v297
  %913 = vmatpush1.msra.mxu0 %v296
  %914 = vmatprep.subr.mxu0 %v299
  %915 = vmatpush1.msra.mxu0 %v298
  %916 = vmatprep.subr.mxu0 %v301
  %917 = vmatpush1.msra.mxu0 %v300
  %918 = vmatprep.subr.mxu0 %v303
  %919 = vmatpush1.msra.mxu0 %v302
  %920 = vmatprep.subr.mxu0 %v305
  %921 = vmatpush1.msra.mxu0 %v304
  %922 = vmatprep.subr.mxu0 %v307
  %923 = vmatpush1.msra.mxu0 %v306
  %924 = vmatprep.subr.mxu0 %v309
  %925 = vmatpush1.msra.mxu0 %v308
  %926 = vmatprep.subr.mxu0 %v311
  %927 = vmatpush1.msra.mxu0 %v310
  %928 = vmatprep.subr.mxu0 %v313
  %929 = vmatpush1.msra.mxu0 %v312
  %930 = vmatprep.subr.mxu0 %v315
  %931 = vmatpush1.msra.mxu0 %v314
  %932 = vmatprep.subr.mxu0 %v317
  %933 = vmatpush1.msra.mxu0 %v316
  %934 = vmatprep.subr.mxu0 %v319
  %935 = vmatpush1.msra.mxu0 %v318
  %936 = vmatprep.subr.mxu0 %v321
  %937 = vmatpush1.msra.mxu0 %v320
  %938 = vmatprep.subr.mxu0 %v323
  %939 = vmatpush1.msra.mxu0 %v322
  %940 = vmatprep.subr.mxu0 %v325
  %941 = vmatpush1.msra.mxu0 %v324
  %942 = vmatprep.subr.mxu0 %v327
  %943 = vmatpush1.msra.mxu0 %v326
  %944 = vmatprep.subr.mxu0 %v329
  %945 = vmatpush1.msra.mxu0 %v328
  %946 = vmatprep.subr.mxu0 %v331
  %947 = vmatpush1.msra.mxu0 %v330
  %948 = vmatprep.subr.mxu0 %v333
  %949 = vmatpush1.msra.mxu0 %v332
  %950 = vmatprep.subr.mxu0 %v335
  %951 = vmatpush1.msra.mxu0 %v334
  %952 = vmatprep.subr.mxu0 %v337
  %953 = vmatpush1.msra.mxu0 %v336
  %954 = vmatprep.subr.mxu0 %v339
  %955 = vmatpush1.msra.mxu0 %v338
  %956 = vmatprep.subr.mxu0 %v341
  %957 = vmatpush1.msra.mxu0 %v340
  %958 = vmatprep.subr.mxu0 %v343
  %959 = vmatpush1.msra.mxu0 %v342
  %960 = vmatprep.subr.mxu0 %v345
  %961 = vmatpush1.msra.mxu0 %v344
  %962 = vmatprep.subr.mxu0 %v347
  %963 = vmatpush1.msra.mxu0 %v346
  %964 = vmatprep.subr.mxu0 %v349
  %965 = vmatpush1.msra.mxu0 %v348
  %966 = vmatprep.subr.mxu0 %v351
  %967 = vmatpush1.msra.mxu0 %v350
  %968 = vmatprep.mubr.f32.mxu0 %v23
  %969 = vmatmul.mubr.f32.gmra.mrb[0].mxu0 %v22
  %v970 = vpop.f32.mrb[0].mxu0
  %v971 = vadd.f32 %v900, %v970
  %v972 = vpop.f32.mrb[0].mxu0
  %v973 = vadd.f32 %v902, %v972
  %974 = vdwg.mxu0
  %975 = vmatprep.subr.mxu0 %v353
  %976 = vmatpush1.msra.mxu0 %v352
  %977 = vmatprep.subr.mxu0 %v355
  %978 = vmatpush1.msra.mxu0 %v354
  %979 = vmatprep.subr.mxu0 %v357
  %980 = vmatpush1.msra.mxu0 %v356
  %981 = vmatprep.subr.mxu0 %v359
  %982 = vmatpush1.msra.mxu0 %v358
  %983 = vmatprep.subr.mxu0 %v361
  %984 = vmatpush1.msra.mxu0 %v360
  %985 = vmatprep.subr.mxu0 %v363
  %986 = vmatpush1.msra.mxu0 %v362
  %987 = vmatprep.subr.mxu0 %v365
  %988 = vmatpush1.msra.mxu0 %v364
  %989 = vmatprep.subr.mxu0 %v367
  %990 = vmatpush1.msra.mxu0 %v366
  %991 = vmatprep.subr.mxu0 %v369
  %992 = vmatpush1.msra.mxu0 %v368
  %993 = vmatprep.subr.mxu0 %v371
  %994 = vmatpush1.msra.mxu0 %v370
  %995 = vmatprep.subr.mxu0 %v373
  %996 = vmatpush1.msra.mxu0 %v372
  %997 = vmatprep.subr.mxu0 %v375
  %998 = vmatpush1.msra.mxu0 %v374
  %999 = vmatprep.subr.mxu0 %v377
  %1000 = vmatpush1.msra.mxu0 %v376
  %1001 = vmatprep.subr.mxu0 %v379
  %1002 = vmatpush1.msra.mxu0 %v378
  %1003 = vmatprep.subr.mxu0 %v381
  %1004 = vmatpush1.msra.mxu0 %v380
  %1005 = vmatprep.subr.mxu0 %v383
  %1006 = vmatpush1.msra.mxu0 %v382
  %1007 = vmatprep.subr.mxu0 %v385
  %1008 = vmatpush1.msra.mxu0 %v384
  %1009 = vmatprep.subr.mxu0 %v387
  %1010 = vmatpush1.msra.mxu0 %v386
  %1011 = vmatprep.subr.mxu0 %v389
  %1012 = vmatpush1.msra.mxu0 %v388
  %1013 = vmatprep.subr.mxu0 %v391
  %1014 = vmatpush1.msra.mxu0 %v390
  %1015 = vmatprep.subr.mxu0 %v393
  %1016 = vmatpush1.msra.mxu0 %v392
  %1017 = vmatprep.subr.mxu0 %v395
  %1018 = vmatpush1.msra.mxu0 %v394
  %1019 = vmatprep.subr.mxu0 %v397
  %1020 = vmatpush1.msra.mxu0 %v396
  %1021 = vmatprep.subr.mxu0 %v399
  %1022 = vmatpush1.msra.mxu0 %v398
  %1023 = vmatprep.subr.mxu0 %v401
  %1024 = vmatpush1.msra.mxu0 %v400
  %1025 = vmatprep.subr.mxu0 %v403
  %1026 = vmatpush1.msra.mxu0 %v402
  %1027 = vmatprep.subr.mxu0 %v405
  %1028 = vmatpush1.msra.mxu0 %v404
  %1029 = vmatprep.subr.mxu0 %v407
  %1030 = vmatpush1.msra.mxu0 %v406
  %1031 = vmatprep.subr.mxu0 %v409
  %1032 = vmatpush1.msra.mxu0 %v408
  %1033 = vmatprep.subr.mxu0 %v411
  %1034 = vmatpush1.msra.mxu0 %v410
  %1035 = vmatprep.subr.mxu0 %v413
  %1036 = vmatpush1.msra.mxu0 %v412
  %1037 = vmatprep.subr.mxu0 %v415
  %1038 = vmatpush1.msra.mxu0 %v414
  %1039 = vmatprep.mubr.f32.mxu0 %v25
  %1040 = vmatmul.mubr.f32.gmra.mrb[0].mxu0 %v24
  %v1041 = vpop.f32.mrb[0].mxu0
  %v1042 = vadd.f32 %v971, %v1041
  %v1043 = vpop.f32.mrb[0].mxu0
  %v1044 = vadd.f32 %v973, %v1043
  %1045 = vdwg.mxu0
  %1046 = vmatprep.subr.mxu0 %v417
  %1047 = vmatpush1.msra.mxu0 %v416
  %1048 = vmatprep.subr.mxu0 %v419
  %1049 = vmatpush1.msra.mxu0 %v418
  %1050 = vmatprep.subr.mxu0 %v421
  %1051 = vmatpush1.msra.mxu0 %v420
  %1052 = vmatprep.subr.mxu0 %v423
  %1053 = vmatpush1.msra.mxu0 %v422
  %1054 = vmatprep.subr.mxu0 %v425
  %1055 = vmatpush1.msra.mxu0 %v424
  %1056 = vmatprep.subr.mxu0 %v427
  %1057 = vmatpush1.msra.mxu0 %v426
  %1058 = vmatprep.subr.mxu0 %v429
  %1059 = vmatpush1.msra.mxu0 %v428
  %1060 = vmatprep.subr.mxu0 %v431
  %1061 = vmatpush1.msra.mxu0 %v430
  %1062 = vmatprep.subr.mxu0 %v433
  %1063 = vmatpush1.msra.mxu0 %v432
  %1064 = vmatprep.subr.mxu0 %v435
  %1065 = vmatpush1.msra.mxu0 %v434
  %1066 = vmatprep.subr.mxu0 %v437
  %1067 = vmatpush1.msra.mxu0 %v436
  %1068 = vmatprep.subr.mxu0 %v439
  %1069 = vmatpush1.msra.mxu0 %v438
  %1070 = vmatprep.subr.mxu0 %v441
  %1071 = vmatpush1.msra.mxu0 %v440
  %1072 = vmatprep.subr.mxu0 %v443
  %1073 = vmatpush1.msra.mxu0 %v442
  %1074 = vmatprep.subr.mxu0 %v445
  %1075 = vmatpush1.msra.mxu0 %v444
  %1076 = vmatprep.subr.mxu0 %v447
  %1077 = vmatpush1.msra.mxu0 %v446
  %1078 = vmatprep.subr.mxu0 %v449
  %1079 = vmatpush1.msra.mxu0 %v448
  %1080 = vmatprep.subr.mxu0 %v451
  %1081 = vmatpush1.msra.mxu0 %v450
  %1082 = vmatprep.subr.mxu0 %v453
  %1083 = vmatpush1.msra.mxu0 %v452
  %1084 = vmatprep.subr.mxu0 %v455
  %1085 = vmatpush1.msra.mxu0 %v454
  %1086 = vmatprep.subr.mxu0 %v457
  %1087 = vmatpush1.msra.mxu0 %v456
  %1088 = vmatprep.subr.mxu0 %v459
  %1089 = vmatpush1.msra.mxu0 %v458
  %1090 = vmatprep.subr.mxu0 %v461
  %1091 = vmatpush1.msra.mxu0 %v460
  %1092 = vmatprep.subr.mxu0 %v463
  %1093 = vmatpush1.msra.mxu0 %v462
  %1094 = vmatprep.subr.mxu0 %v465
  %1095 = vmatpush1.msra.mxu0 %v464
  %1096 = vmatprep.subr.mxu0 %v467
  %1097 = vmatpush1.msra.mxu0 %v466
  %1098 = vmatprep.subr.mxu0 %v469
  %1099 = vmatpush1.msra.mxu0 %v468
  %1100 = vmatprep.subr.mxu0 %v471
  %1101 = vmatpush1.msra.mxu0 %v470
  %1102 = vmatprep.subr.mxu0 %v473
  %1103 = vmatpush1.msra.mxu0 %v472
  %1104 = vmatprep.subr.mxu0 %v475
  %1105 = vmatpush1.msra.mxu0 %v474
  %1106 = vmatprep.subr.mxu0 %v477
  %1107 = vmatpush1.msra.mxu0 %v476
  %1108 = vmatprep.subr.mxu0 %v479
  %1109 = vmatpush1.msra.mxu0 %v478
  %1110 = vmatprep.mubr.f32.mxu0 %v27
  %1111 = vmatmul.mubr.f32.gmra.mrb[0].mxu0 %v26
  %v1112 = vpop.f32.mrb[0].mxu0
  %v1113 = vadd.f32 %v1042, %v1112
  %v1114 = vpop.f32.mrb[0].mxu0
  %v1115 = vadd.f32 %v1044, %v1114
  %1116 = vdwg.mxu0
  %1117 = vmatprep.subr.mxu0 %v481
  %1118 = vmatpush1.msra.mxu0 %v480
  %1119 = vmatprep.subr.mxu0 %v483
  %1120 = vmatpush1.msra.mxu0 %v482
  %1121 = vmatprep.subr.mxu0 %v485
  %1122 = vmatpush1.msra.mxu0 %v484
  %1123 = vmatprep.subr.mxu0 %v487
  %1124 = vmatpush1.msra.mxu0 %v486
  %1125 = vmatprep.subr.mxu0 %v489
  %1126 = vmatpush1.msra.mxu0 %v488
  %1127 = vmatprep.subr.mxu0 %v491
  %1128 = vmatpush1.msra.mxu0 %v490
  %1129 = vmatprep.subr.mxu0 %v493
  %1130 = vmatpush1.msra.mxu0 %v492
  %1131 = vmatprep.subr.mxu0 %v495
  %1132 = vmatpush1.msra.mxu0 %v494
  %1133 = vmatprep.subr.mxu0 %v497
  %1134 = vmatpush1.msra.mxu0 %v496
  %1135 = vmatprep.subr.mxu0 %v499
  %1136 = vmatpush1.msra.mxu0 %v498
  %1137 = vmatprep.subr.mxu0 %v501
  %1138 = vmatpush1.msra.mxu0 %v500
  %1139 = vmatprep.subr.mxu0 %v503
  %1140 = vmatpush1.msra.mxu0 %v502
  %1141 = vmatprep.subr.mxu0 %v505
  %1142 = vmatpush1.msra.mxu0 %v504
  %1143 = vmatprep.subr.mxu0 %v507
  %1144 = vmatpush1.msra.mxu0 %v506
  %1145 = vmatprep.subr.mxu0 %v509
  %1146 = vmatpush1.msra.mxu0 %v508
  %1147 = vmatprep.subr.mxu0 %v511
  %1148 = vmatpush1.msra.mxu0 %v510
  %1149 = vmatprep.subr.mxu0 %v513
  %1150 = vmatpush1.msra.mxu0 %v512
  %1151 = vmatprep.subr.mxu0 %v515
  %1152 = vmatpush1.msra.mxu0 %v514
  %1153 = vmatprep.subr.mxu0 %v517
  %1154 = vmatpush1.msra.mxu0 %v516
  %1155 = vmatprep.subr.mxu0 %v519
  %1156 = vmatpush1.msra.mxu0 %v518
  %1157 = vmatprep.subr.mxu0 %v521
  %1158 = vmatpush1.msra.mxu0 %v520
  %1159 = vmatprep.subr.mxu0 %v523
  %1160 = vmatpush1.msra.mxu0 %v522
  %1161 = vmatprep.subr.mxu0 %v525
  %1162 = vmatpush1.msra.mxu0 %v524
  %1163 = vmatprep.subr.mxu0 %v527
  %1164 = vmatpush1.msra.mxu0 %v526
  %1165 = vmatprep.subr.mxu0 %v529
  %1166 = vmatpush1.msra.mxu0 %v528
  %1167 = vmatprep.subr.mxu0 %v531
  %1168 = vmatpush1.msra.mxu0 %v530
  %1169 = vmatprep.subr.mxu0 %v533
  %1170 = vmatpush1.msra.mxu0 %v532
  %1171 = vmatprep.subr.mxu0 %v535
  %1172 = vmatpush1.msra.mxu0 %v534
  %1173 = vmatprep.subr.mxu0 %v537
  %1174 = vmatpush1.msra.mxu0 %v536
  %1175 = vmatprep.subr.mxu0 %v539
  %1176 = vmatpush1.msra.mxu0 %v538
  %1177 = vmatprep.subr.mxu0 %v541
  %1178 = vmatpush1.msra.mxu0 %v540
  %1179 = vmatprep.subr.mxu0 %v543
  %1180 = vmatpush1.msra.mxu0 %v542
  %1181 = vmatprep.mubr.f32.mxu0 %v29
  %1182 = vmatmul.mubr.f32.gmra.mrb[0].mxu0 %v28
  %v1183 = vpop.f32.mrb[0].mxu0
  %v1184 = vadd.f32 %v1113, %v1183
  %v1185 = vpop.f32.mrb[0].mxu0
  %v1186 = vadd.f32 %v1115, %v1185
  %1187 = vdwg.mxu0
  %1188 = vmatprep.subr.mxu0 %v545
  %1189 = vmatpush1.msra.mxu0 %v544
  %1190 = vmatprep.subr.mxu0 %v547
  %1191 = vmatpush1.msra.mxu0 %v546
  %1192 = vmatprep.subr.mxu0 %v549
  %1193 = vmatpush1.msra.mxu0 %v548
  %1194 = vmatprep.subr.mxu0 %v551
  %1195 = vmatpush1.msra.mxu0 %v550
  %1196 = vmatprep.subr.mxu0 %v553
  %1197 = vmatpush1.msra.mxu0 %v552
  %1198 = vmatprep.subr.mxu0 %v555
  %1199 = vmatpush1.msra.mxu0 %v554
  %1200 = vmatprep.subr.mxu0 %v557
  %1201 = vmatpush1.msra.mxu0 %v556
  %1202 = vmatprep.subr.mxu0 %v559
  %1203 = vmatpush1.msra.mxu0 %v558
  %1204 = vmatprep.subr.mxu0 %v561
  %1205 = vmatpush1.msra.mxu0 %v560
  %1206 = vmatprep.subr.mxu0 %v563
  %1207 = vmatpush1.msra.mxu0 %v562
  %1208 = vmatprep.subr.mxu0 %v565
  %1209 = vmatpush1.msra.mxu0 %v564
  %1210 = vmatprep.subr.mxu0 %v567
  %1211 = vmatpush1.msra.mxu0 %v566
  %1212 = vmatprep.subr.mxu0 %v569
  %1213 = vmatpush1.msra.mxu0 %v568
  %1214 = vmatprep.subr.mxu0 %v571
  %1215 = vmatpush1.msra.mxu0 %v570
  %1216 = vmatprep.subr.mxu0 %v573
  %1217 = vmatpush1.msra.mxu0 %v572
  %1218 = vmatprep.subr.mxu0 %v575
  %1219 = vmatpush1.msra.mxu0 %v574
  %1220 = vmatprep.subr.mxu0 %v577
  %1221 = vmatpush1.msra.mxu0 %v576
  %1222 = vmatprep.subr.mxu0 %v579
  %1223 = vmatpush1.msra.mxu0 %v578
  %1224 = vmatprep.subr.mxu0 %v581
  %1225 = vmatpush1.msra.mxu0 %v580
  %1226 = vmatprep.subr.mxu0 %v583
  %1227 = vmatpush1.msra.mxu0 %v582
  %1228 = vmatprep.subr.mxu0 %v585
  %1229 = vmatpush1.msra.mxu0 %v584
  %1230 = vmatprep.subr.mxu0 %v587
  %1231 = vmatpush1.msra.mxu0 %v586
  %1232 = vmatprep.subr.mxu0 %v589
  %1233 = vmatpush1.msra.mxu0 %v588
  %1234 = vmatprep.subr.mxu0 %v591
  %1235 = vmatpush1.msra.mxu0 %v590
  %1236 = vmatprep.subr.mxu0 %v593
  %1237 = vmatpush1.msra.mxu0 %v592
  %1238 = vmatprep.subr.mxu0 %v595
  %1239 = vmatpush1.msra.mxu0 %v594
  %1240 = vmatprep.subr.mxu0 %v597
  %1241 = vmatpush1.msra.mxu0 %v596
  %1242 = vmatprep.subr.mxu0 %v599
  %1243 = vmatpush1.msra.mxu0 %v598
  %1244 = vmatprep.subr.mxu0 %v601
  %1245 = vmatpush1.msra.mxu0 %v600
  %1246 = vmatprep.subr.mxu0 %v603
  %1247 = vmatpush1.msra.mxu0 %v602
  %1248 = vmatprep.subr.mxu0 %v605
  %1249 = vmatpush1.msra.mxu0 %v604
  %1250 = vmatprep.subr.mxu0 %v607
  %1251 = vmatpush1.msra.mxu0 %v606
  %1252 = vmatprep.mubr.f32.mxu0 %v31
  %1253 = vmatmul.mubr.f32.gmra.mrb[0].mxu0 %v30
  %v1254 = vpop.f32.mrb[0].mxu0
  %v1255 = vadd.f32 %v1184, %v1254
  %v1256 = vpop.f32.mrb[0].mxu0
  %v1257 = vadd.f32 %v1186, %v1256
  %1258 = vdwg.mxu0
  %v1259 = vmax.f32 %v1255, 0.0
  %v1260 = vmax.f32 %v1257, 0.0
  %1261 = vst [vmem:[%s3] sm:$0xff] %v1259
  %1262 = vst [vmem:[%s3 + $0x8] sm:$0xff] %v1260
  // Predicated region
  $region14: #{actor_critic_forward.6} parent=0 // pred_check
    _
  $region15: #{actor_critic_forward.6} parent=0 // pred_check_branch
    %1264 = sbr.rel (0) target = $region17
  $region16: #{actor_critic_forward.6} parent=0 // pred_region
    _
  $region17: #{actor_critic_forward.6} parent=0 // pred_fallthru
    _
  // Predicated region
  $region18: #{actor_critic_forward.6} parent=0 // pred_check
    _
  $region19: #{actor_critic_forward.6} parent=0 // pred_check_branch
    %1266 = sbr.rel (0) target = $region21
  $region20: #{actor_critic_forward.6} parent=0 // pred_region
    _
  $region21: #{actor_critic_forward.6} parent=0 // pred_fallthru
    _

// kernel: actor_critic_forward.7
$region0: #{actor_critic_forward.7}
  #allocation0 [shape = 'u32[]', space=smem, size = 0x4, offset = 0x4, fixed_abs, tag = 'smem constant byte address 0x4 - core index']
  #allocation1 [shape = 'u32[144,128]{1,0:T(1,128)}', space=vmem, size = 0x12000, scoped, tag = 'internal scratch']
  %s0 = inlined_call_operand.vmem [shape: f32[2,1024], index: 0, kind: input, shape index: {}]
  %s1 = inlined_call_operand.vmem [shape: f32[1024,32], index: 1, kind: input, shape index: {}]
  %s2 = inlined_call_operand.vmem [shape: f32[1,32], index: 2, kind: input, shape index: {}]
  %s3 = inlined_call_operand.vmem [shape: f32[2,16,32], index: 3, kind: input, shape index: {}]
  %s4 = inlined_call_operand.vmem [shape: f32[2,8], index: 4, kind: input, shape index: {}]
  %s5 = inlined_call_operand.vmem [shape: f32[2,32,32], index: 5, kind: input, shape index: {}]
  %s6 = inlined_call_operand.vmem [shape: f32[2,1,32], index: 6, kind: input, shape index: {}]
  %s7 = inlined_call_operand.vmem [shape: f32[2,32,64], index: 7, kind: input, shape index: {}]
  %s8 = inlined_call_operand.vmem [shape: f32[2,1,64], index: 8, kind: input, shape index: {}]
  %s9 = inlined_call_operand.vmem [shape: f32[2,32,32], index: 9, kind: input, shape index: {}]
  %s10 = inlined_call_operand.vmem [shape: f32[2,1,32], index: 10, kind: input, shape index: {}]
  %s11 = inlined_call_operand.vmem [shape: f32[2,32,32], index: 11, kind: input, shape index: {}]
  %s12 = inlined_call_operand.vmem [shape: f32[2,1,32], index: 12, kind: input, shape index: {}]
  %s13 = inlined_call_operand.vmem [shape: f32[2,1,32], index: 13, kind: input, shape index: {}]
  %s14 = inlined_call_operand.vmem [shape: f32[2,1,32], index: 14, kind: input, shape index: {}]
  %s15 = inlined_call_operand.vmem [shape: f32[2,1,32], index: 15, kind: input, shape index: {}]
  %s16 = inlined_call_operand.vmem [shape: f32[2,1,32], index: 16, kind: input, shape index: {}]
  %s17 = inlined_call_operand.vmem [shape: f32[32,4], index: 17, kind: input, shape index: {}]
  %s18 = inlined_call_operand.vmem [shape: f32[4,32], index: 18, kind: input, shape index: {}]
  %s19 = inlined_call_operand.vmem [shape: f32[32,64], index: 19, kind: input, shape index: {}]
  %s20 = inlined_call_operand.vmem [shape: f32[1,64], index: 20, kind: input, shape index: {}]
  %s21 = inlined_call_operand.vmem [shape: f32[64,128], index: 21, kind: input, shape index: {}]
  %s22 = inlined_call_operand.vmem [shape: f32[1,128], index: 22, kind: input, shape index: {}]
  %s23 = inlined_call_operand.vmem [shape: f32[2,128], index: 23, kind: output, shape index: {0}]
  %s24 = inlined_call_operand.vmem [shape: f32[2,2,32], index: 24, kind: output, shape index: {1}]
  %25 = xla_tuple %s23, %s24
  %s26 = sld [smem:[#allocation0]]
  $region110: #{actor_critic_forward.7} parent=0
    _
  %s28 = ssub.s32 1, %s26
  %s29 = scalar_select 0, %s28, %s26
  // Predicated region
  $region2: #{actor_critic_forward.7} parent=0 // pred_check
    _
  $region3: #{actor_critic_forward.7} parent=0 // pred_check_branch
    %31 = sbr.rel (0) target = $region5
  $region4: #{actor_critic_forward.7} parent=0 // pred_region
    _
  $region5: #{actor_critic_forward.7} parent=0 // pred_fallthru
    _
  // Predicated region
  $region6: #{actor_critic_forward.7} parent=0 // pred_check
    _
  $region7: #{actor_critic_forward.7} parent=0 // pred_check_branch
    %33 = sbr.rel (0) target = $region9
  $region8: #{actor_critic_forward.7} parent=0 // pred_region
    _
  $region9: #{actor_critic_forward.7} parent=0 // pred_fallthru
    _
  // Predicated region
  $region10: #{actor_critic_forward.7} parent=0 // pred_check
    _
  $region11: #{actor_critic_forward.7} parent=0 // pred_check_branch
    %35 = sbr.rel (0) target = $region13
  $region12: #{actor_critic_forward.7} parent=0 // pred_region
    _
  $region13: #{actor_critic_forward.7} parent=0 // pred_fallthru
    _
  // Predicated region
  $region14: #{actor_critic_forward.7} parent=0 // pred_check
    _
  $region15: #{actor_critic_forward.7} parent=0 // pred_check_branch
    %37 = sbr.rel (0) target = $region17
  $region16: #{actor_critic_forward.7} parent=0 // pred_region
    _
  $region17: #{actor_critic_forward.7} parent=0 // pred_fallthru
    _
  // Predicated region
  $region18: #{actor_critic_forward.7} parent=0 // pred_check
    _
  $region19: #{actor_critic_forward.7} parent=0 // pred_check_branch
    %39 = sbr.rel (0) target = $region21
  $region20: #{actor_critic_forward.7} parent=0 // pred_region
    _
  $region21: #{actor_critic_forward.7} parent=0 // pred_fallthru
    _
  // Predicated region
  $region22: #{actor_critic_forward.7} parent=0 // pred_check
    _
  $region23: #{actor_critic_forward.7} parent=0 // pred_check_branch
    %41 = sbr.rel (0) target = $region25
  $region24: #{actor_critic_forward.7} parent=0 // pred_region
    _
  $region25: #{actor_critic_forward.7} parent=0 // pred_fallthru
    _
  // Predicated region
  $region26: #{actor_critic_forward.7} parent=0 // pred_check
    _
  $region27: #{actor_critic_forward.7} parent=0 // pred_check_branch
    %43 = sbr.rel (0) target = $region29
  $region28: #{actor_critic_forward.7} parent=0 // pred_region
    _
  $region29: #{actor_critic_forward.7} parent=0 // pred_fallthru
    _
  // Predicated region
  $region30: #{actor_critic_forward.7} parent=0 // pred_check
    _
  $region31: #{actor_critic_forward.7} parent=0 // pred_check_branch
    %45 = sbr.rel (0) target = $region33
  $region32: #{actor_critic_forward.7} parent=0 // pred_region
    _
  $region33: #{actor_critic_forward.7} parent=0 // pred_fallthru
    _
  // Predicated region
  $region34: #{actor_critic_forward.7} parent=0 // pred_check
    _
  $region35: #{actor_critic_forward.7} parent=0 // pred_check_branch
    %47 = sbr.rel (0) target = $region37
  $region36: #{actor_critic_forward.7} parent=0 // pred_region
    _
  $region37: #{actor_critic_forward.7} parent=0 // pred_fallthru
    _
  // Predicated region
  $region38: #{actor_critic_forward.7} parent=0 // pred_check
    _
  $region39: #{actor_critic_forward.7} parent=0 // pred_check_branch
    %49 = sbr.rel (0) target = $region41
  $region40: #{actor_critic_forward.7} parent=0 // pred_region
    _
  $region41: #{actor_critic_forward.7} parent=0 // pred_fallthru
    _
  // Predicated region
  $region42: #{actor_critic_forward.7} parent=0 // pred_check
    _
  $region43: #{actor_critic_forward.7} parent=0 // pred_check_branch
    %51 = sbr.rel (0) target = $region45
  $region44: #{actor_critic_forward.7} parent=0 // pred_region
    _
  $region45: #{actor_critic_forward.7} parent=0 // pred_fallthru
    _
  // Predicated region
  $region46: #{actor_critic_forward.7} parent=0 // pred_check
    _
  $region47: #{actor_critic_forward.7} parent=0 // pred_check_branch
    %53 = sbr.rel (0) target = $region49
  $region48: #{actor_critic_forward.7} parent=0 // pred_region
    _
  $region49: #{actor_critic_forward.7} parent=0 // pred_fallthru
    _
  // Predicated region
  $region50: #{actor_critic_forward.7} parent=0 // pred_check
    _
  $region51: #{actor_critic_forward.7} parent=0 // pred_check_branch
    %55 = sbr.rel (0) target = $region53
  $region52: #{actor_critic_forward.7} parent=0 // pred_region
    _
  $region53: #{actor_critic_forward.7} parent=0 // pred_fallthru
    _
  // Predicated region
  $region54: #{actor_critic_forward.7} parent=0 // pred_check
    _
  $region55: #{actor_critic_forward.7} parent=0 // pred_check_branch
    %57 = sbr.rel (0) target = $region57
  $region56: #{actor_critic_forward.7} parent=0 // pred_region
    _
  $region57: #{actor_critic_forward.7} parent=0 // pred_fallthru
    _
  // Predicated region
  $region58: #{actor_critic_forward.7} parent=0 // pred_check
    _
  $region59: #{actor_critic_forward.7} parent=0 // pred_check_branch
    %59 = sbr.rel (0) target = $region61
  $region60: #{actor_critic_forward.7} parent=0 // pred_region
    _
  $region61: #{actor_critic_forward.7} parent=0 // pred_fallthru
    _
  // Predicated region
  $region62: #{actor_critic_forward.7} parent=0 // pred_check
    _
  $region63: #{actor_critic_forward.7} parent=0 // pred_check_branch
    %61 = sbr.rel (0) target = $region65
  $region64: #{actor_critic_forward.7} parent=0 // pred_region
    _
  $region65: #{actor_critic_forward.7} parent=0 // pred_fallthru
    _
  // Predicated region
  $region66: #{actor_critic_forward.7} parent=0 // pred_check
    _
  $region67: #{actor_critic_forward.7} parent=0 // pred_check_branch
    %63 = sbr.rel (0) target = $region69
  $region68: #{actor_critic_forward.7} parent=0 // pred_region
    _
  $region69: #{actor_critic_forward.7} parent=0 // pred_fallthru
    _
  // Predicated region
  $region70: #{actor_critic_forward.7} parent=0 // pred_check
    _
  $region71: #{actor_critic_forward.7} parent=0 // pred_check_branch
    %65 = sbr.rel (0) target = $region73
  $region72: #{actor_critic_forward.7} parent=0 // pred_region
    _
  $region73: #{actor_critic_forward.7} parent=0 // pred_fallthru
    _
  // Predicated region
  $region74: #{actor_critic_forward.7} parent=0 // pred_check
    _
  $region75: #{actor_critic_forward.7} parent=0 // pred_check_branch
    %67 = sbr.rel (0) target = $region77
  $region76: #{actor_critic_forward.7} parent=0 // pred_region
    _
  $region77: #{actor_critic_forward.7} parent=0 // pred_fallthru
    _
  // Predicated region
  $region78: #{actor_critic_forward.7} parent=0 // pred_check
    _
  $region79: #{actor_critic_forward.7} parent=0 // pred_check_branch
    %69 = sbr.rel (0) target = $region81
  $region80: #{actor_critic_forward.7} parent=0 // pred_region
    _
  $region81: #{actor_critic_forward.7} parent=0 // pred_fallthru
    _
  // Predicated region
  $region82: #{actor_critic_forward.7} parent=0 // pred_check
    _
  $region83: #{actor_critic_forward.7} parent=0 // pred_check_branch
    %71 = sbr.rel (0) target = $region85
  $region84: #{actor_critic_forward.7} parent=0 // pred_region
    _
  $region85: #{actor_critic_forward.7} parent=0 // pred_fallthru
    _
  // Predicated region
  $region86: #{actor_critic_forward.7} parent=0 // pred_check
    _
  $region87: #{actor_critic_forward.7} parent=0 // pred_check_branch
    %73 = sbr.rel (0) target = $region89
  $region88: #{actor_critic_forward.7} parent=0 // pred_region
    _
  $region89: #{actor_critic_forward.7} parent=0 // pred_fallthru
    _
  // Predicated region
  $region90: #{actor_critic_forward.7} parent=0 // pred_check
    _
  $region91: #{actor_critic_forward.7} parent=0 // pred_check_branch
    %75 = sbr.rel (0) target = $region93
  $region92: #{actor_critic_forward.7} parent=0 // pred_region
    _
  $region93: #{actor_critic_forward.7} parent=0 // pred_fallthru
    _
  %v76 = vld [vmem:[%s0] sm:$0xff]
  %v77 = vld [vmem:[%s0 + $0x8] sm:$0xff]
  %v78 = vld [vmem:[%s1] sm:$0xff]
  %v79 = vld [vmem:[%s1 + $0x8] sm:$0xff]
  %v80 = vld [vmem:[%s1 + $0x10] sm:$0xff]
  %v81 = vld [vmem:[%s1 + $0x18] sm:$0xff]
  %v82 = vld [vmem:[%s1 + $0x20] sm:$0xff]
  %v83 = vld [vmem:[%s1 + $0x28] sm:$0xff]
  %v84 = vld [vmem:[%s1 + $0x30] sm:$0xff]
  %v85 = vld [vmem:[%s1 + $0x38] sm:$0xff]
  %v86 = vld [vmem:[%s1 + $0x40] sm:$0xff]
  %v87 = vld [vmem:[%s1 + $0x48] sm:$0xff]
  %v88 = vld [vmem:[%s1 + $0x50] sm:$0xff]
  %v89 = vld [vmem:[%s1 + $0x58] sm:$0xff]
  %v90 = vld [vmem:[%s1 + $0x60] sm:$0xff]
  %v91 = vld [vmem:[%s1 + $0x68] sm:$0xff]
  %v92 = vld [vmem:[%s1 + $0x70] sm:$0xff]
  %v93 = vld [vmem:[%s1 + $0x78] sm:$0xff]
  %v94 = vld [vmem:[%s1 + $0x80] sm:$0xff]
  %v95 = vld [vmem:[%s1 + $0x88] sm:$0xff]
  %v96 = vld [vmem:[%s1 + $0x90] sm:$0xff]
  %v97 = vld [vmem:[%s1 + $0x98] sm:$0xff]
  %v98 = vld [vmem:[%s1 + $0xa0] sm:$0xff]
  %v99 = vld [vmem:[%s1 + $0xa8] sm:$0xff]
  %v100 = vld [vmem:[%s1 + $0xb0] sm:$0xff]
  %v101 = vld [vmem:[%s1 + $0xb8] sm:$0xff]
  %v102 = vld [vmem:[%s1 + $0xc0] sm:$0xff]
  %v103 = vld [vmem:[%s1 + $0xc8] sm:$0xff]
  %v104 = vld [vmem:[%s1 + $0xd0] sm:$0xff]
  %v105 = vld [vmem:[%s1 + $0xd8] sm:$0xff]
  %v106 = vld [vmem:[%s1 + $0xe0] sm:$0xff]
  %v107 = vld [vmem:[%s1 + $0xe8] sm:$0xff]
  %v108 = vld [vmem:[%s1 + $0xf0] sm:$0xff]
  %v109 = vld [vmem:[%s1 + $0xf8] sm:$0xff]
  %v110 = vld [vmem:[%s1 + $0x100] sm:$0xff]
  %v111 = vld [vmem:[%s1 + $0x108] sm:$0xff]
  %v112 = vld [vmem:[%s1 + $0x110] sm:$0xff]
  %v113 = vld [vmem:[%s1 + $0x118] sm:$0xff]
  %v114 = vld [vmem:[%s1 + $0x120] sm:$0xff]
  %v115 = vld [vmem:[%s1 + $0x128] sm:$0xff]
  %v116 = vld [vmem:[%s1 + $0x130] sm:$0xff]
  %v117 = vld [vmem:[%s1 + $0x138] sm:$0xff]
  %v118 = vld [vmem:[%s1 + $0x140] sm:$0xff]
  %v119 = vld [vmem:[%s1 + $0x148] sm:$0xff]
  %v120 = vld [vmem:[%s1 + $0x150] sm:$0xff]
  %v121 = vld [vmem:[%s1 + $0x158] sm:$0xff]
  %v122 = vld [vmem:[%s1 + $0x160] sm:$0xff]
  %v123 = vld [vmem:[%s1 + $0x168] sm:$0xff]
  %v124 = vld [vmem:[%s1 + $0x170] sm:$0xff]
  %v125 = vld [vmem:[%s1 + $0x178] sm:$0xff]
  %v126 = vld [vmem:[%s1 + $0x180] sm:$0xff]
  %v127 = vld [vmem:[%s1 + $0x188] sm:$0xff]
  %v128 = vld [vmem:[%s1 + $0x190] sm:$0xff]
  %v129 = vld [vmem:[%s1 + $0x198] sm:$0xff]
  %v130 = vld [vmem:[%s1 + $0x1a0] sm:$0xff]
  %v131 = vld [vmem:[%s1 + $0x1a8] sm:$0xff]
  %v132 = vld [vmem:[%s1 + $0x1b0] sm:$0xff]
  %v133 = vld [vmem:[%s1 + $0x1b8] sm:$0xff]
  %v134 = vld [vmem:[%s1 + $0x1c0] sm:$0xff]
  %v135 = vld [vmem:[%s1 + $0x1c8] sm:$0xff]
  %v136 = vld [vmem:[%s1 + $0x1d0] sm:$0xff]
  %v137 = vld [vmem:[%s1 + $0x1d8] sm:$0xff]
  %v138 = vld [vmem:[%s1 + $0x1e0] sm:$0xff]
  %v139 = vld [vmem:[%s1 + $0x1e8] sm:$0xff]
  %v140 = vld [vmem:[%s1 + $0x1f0] sm:$0xff]
  %v141 = vld [vmem:[%s1 + $0x1f8] sm:$0xff]
  %v142 = vld [vmem:[%s1 + $0x200] sm:$0xff]
  %v143 = vld [vmem:[%s1 + $0x208] sm:$0xff]
  %v144 = vld [vmem:[%s1 + $0x210] sm:$0xff]
  %v145 = vld [vmem:[%s1 + $0x218] sm:$0xff]
  %v146 = vld [vmem:[%s1 + $0x220] sm:$0xff]
  %v147 = vld [vmem:[%s1 + $0x228] sm:$0xff]
  %v148 = vld [vmem:[%s1 + $0x230] sm:$0xff]
  %v149 = vld [vmem:[%s1 + $0x238] sm:$0xff]
  %v150 = vld [vmem:[%s1 + $0x240] sm:$0xff]
  %v151 = vld [vmem:[%s1 + $0x248] sm:$0xff]
  %v152 = vld [vmem:[%s1 + $0x250] sm:$0xff]
  %v153 = vld [vmem:[%s1 + $0x258] sm:$0xff]
  %v154 = vld [vmem:[%s1 + $0x260] sm:$0xff]
  %v155 = vld [vmem:[%s1 + $0x268] sm:$0xff]
  %v156 = vld [vmem:[%s1 + $0x270] sm:$0xff]
  %v157 = vld [vmem:[%s1 + $0x278] sm:$0xff]
  %v158 = vld [vmem:[%s1 + $0x280] sm:$0xff]
  %v159 = vld [vmem:[%s1 + $0x288] sm:$0xff]
  %v160 = vld [vmem:[%s1 + $0x290] sm:$0xff]
  %v161 = vld [vmem:[%s1 + $0x298] sm:$0xff]
  %v162 = vld [vmem:[%s1 + $0x2a0] sm:$0xff]
  %v163 = vld [vmem:[%s1 + $0x2a8] sm:$0xff]
  %v164 = vld [vmem:[%s1 + $0x2b0] sm:$0xff]
  %v165 = vld [vmem:[%s1 + $0x2b8] sm:$0xff]
  %v166 = vld [vmem:[%s1 + $0x2c0] sm:$0xff]
  %v167 = vld [vmem:[%s1 + $0x2c8] sm:$0xff]
  %v168 = vld [vmem:[%s1 + $0x2d0] sm:$0xff]
  %v169 = vld [vmem:[%s1 + $0x2d8] sm:$0xff]
  %v170 = vld [vmem:[%s1 + $0x2e0] sm:$0xff]
  %v171 = vld [vmem:[%s1 + $0x2e8] sm:$0xff]
  %v172 = vld [vmem:[%s1 + $0x2f0] sm:$0xff]
  %v173 = vld [vmem:[%s1 + $0x2f8] sm:$0xff]
  %v174 = vld [vmem:[%s1 + $0x300] sm:$0xff]
  %v175 = vld [vmem:[%s1 + $0x308] sm:$0xff]
  %v176 = vld [vmem:[%s1 + $0x310] sm:$0xff]
  %v177 = vld [vmem:[%s1 + $0x318] sm:$0xff]
  %v178 = vld [vmem:[%s1 + $0x320] sm:$0xff]
  %v179 = vld [vmem:[%s1 + $0x328] sm:$0xff]
  %v180 = vld [vmem:[%s1 + $0x330] sm:$0xff]
  %v181 = vld [vmem:[%s1 + $0x338] sm:$0xff]
  %v182 = vld [vmem:[%s1 + $0x340] sm:$0xff]
  %v183 = vld [vmem:[%s1 + $0x348] sm:$0xff]
  %v184 = vld [vmem:[%s1 + $0x350] sm:$0xff]
  %v185 = vld [vmem:[%s1 + $0x358] sm:$0xff]
  %v186 = vld [vmem:[%s1 + $0x360] sm:$0xff]
  %v187 = vld [vmem:[%s1 + $0x368] sm:$0xff]
  %v188 = vld [vmem:[%s1 + $0x370] sm:$0xff]
  %v189 = vld [vmem:[%s1 + $0x378] sm:$0xff]
  %v190 = vld [vmem:[%s1 + $0x380] sm:$0xff]
  %v191 = vld [vmem:[%s1 + $0x388] sm:$0xff]
  %v192 = vld [vmem:[%s1 + $0x390] sm:$0xff]
  %v193 = vld [vmem:[%s1 + $0x398] sm:$0xff]
  %v194 = vld [vmem:[%s1 + $0x3a0] sm:$0xff]
  %v195 = vld [vmem:[%s1 + $0x3a8] sm:$0xff]
  %v196 = vld [vmem:[%s1 + $0x3b0] sm:$0xff]
  %v197 = vld [vmem:[%s1 + $0x3b8] sm:$0xff]
  %v198 = vld [vmem:[%s1 + $0x3c0] sm:$0xff]
  %v199 = vld [vmem:[%s1 + $0x3c8] sm:$0xff]
  %v200 = vld [vmem:[%s1 + $0x3d0] sm:$0xff]
  %v201 = vld [vmem:[%s1 + $0x3d8] sm:$0xff]
  %v202 = vld [vmem:[%s1 + $0x3e0] sm:$0xff]
  %v203 = vld [vmem:[%s1 + $0x3e8] sm:$0xff]
  %v204 = vld [vmem:[%s1 + $0x3f0] sm:$0xff]
  %v205 = vld [vmem:[%s1 + $0x3f8] sm:$0xff]
  %v206 = vld [vmem:[%s2] sm:$0x1]
  %v208 = vlaneseq
  %v209 = vshrl.u32 %v208, 7
  %v210 = vsub.s32 0, %v209
  %v211 = vrot.slane %v206, %v210
  %v215 = vcombine.high %v76, %v76
  %v217 = vunpack.c.l.s4 1983009808
  %v218 = vunpack.c.0.s8 %v217
  %v219 = vlaneseq
  %v220 = vshrl.u32 %v219, 7
  %v221 = vsub.s32 %v218, %v220
  %v222 = vrot.slane %v76, %v221
  %v224 = vunpack.c.l.s4 1983009808
  %v225 = vunpack.c.0.s8 %v224
  %v226 = vlaneseq
  %v227 = vshrl.u32 %v226, 7
  %v228 = vsub.s32 %v225, %v227
  %v229 = vrot.slane %v215, %v228
  %v230 = vcombine.high %v222, %v222
  %v231 = vcombine.high %v229, %v229
  %v232 = vcombine.high %v77, %v77
  %v234 = vunpack.c.l.s4 1983009808
  %v235 = vunpack.c.0.s8 %v234
  %v236 = vlaneseq
  %v237 = vshrl.u32 %v236, 7
  %v238 = vsub.s32 %v235, %v237
  %v239 = vrot.slane %v77, %v238
  %v241 = vunpack.c.l.s4 1983009808
  %v242 = vunpack.c.0.s8 %v241
  %v243 = vlaneseq
  %v244 = vshrl.u32 %v243, 7
  %v245 = vsub.s32 %v242, %v244
  %v246 = vrot.slane %v232, %v245
  %v247 = vcombine.high %v239, %v239
  %v248 = vcombine.high %v246, %v246
  %257 = vmatprep.subr.mxu0 0.0
  %258 = vmatpush1.msra.mxu0 %v78
  %259 = vmatprep.subr.mxu0 0.0
  %260 = vmatpush1.msra.mxu0 %v79
  %261 = vmatprep.subr.mxu0 0.0
  %262 = vmatpush1.msra.mxu0 %v80
  %263 = vmatprep.subr.mxu0 0.0
  %264 = vmatpush1.msra.mxu0 %v81
  %265 = vmatprep.subr.mxu0 0.0
  %266 = vmatpush1.msra.mxu0 %v82
  %267 = vmatprep.subr.mxu0 0.0
  %268 = vmatpush1.msra.mxu0 %v83
  %269 = vmatprep.subr.mxu0 0.0
  %270 = vmatpush1.msra.mxu0 %v84
  %271 = vmatprep.subr.mxu0 0.0
  %272 = vmatpush1.msra.mxu0 %v85
  %273 = vmatprep.subr.mxu0 0.0
  %274 = vmatpush1.msra.mxu0 %v86
  %275 = vmatprep.subr.mxu0 0.0
  %276 = vmatpush1.msra.mxu0 %v87
  %277 = vmatprep.subr.mxu0 0.0
  %278 = vmatpush1.msra.mxu0 %v88
  %279 = vmatprep.subr.mxu0 0.0
  %280 = vmatpush1.msra.mxu0 %v89
  %281 = vmatprep.subr.mxu0 0.0
  %282 = vmatpush1.msra.mxu0 %v90
  %283 = vmatprep.subr.mxu0 0.0
  %284 = vmatpush1.msra.mxu0 %v91
  %285 = vmatprep.subr.mxu0 0.0
  %286 = vmatpush1.msra.mxu0 %v92
  %287 = vmatprep.subr.mxu0 0.0
  %288 = vmatpush1.msra.mxu0 %v93
  %289 = vmatprep.subr.mxu0 0.0
  %290 = vmatpush1.msra.mxu0 %v94
  %291 = vmatprep.subr.mxu0 0.0
  %292 = vmatpush1.msra.mxu0 %v95
  %293 = vmatprep.subr.mxu0 0.0
  %294 = vmatpush1.msra.mxu0 %v96
  %295 = vmatprep.subr.mxu0 0.0
  %296 = vmatpush1.msra.mxu0 %v97
  %297 = vmatprep.subr.mxu0 0.0
  %298 = vmatpush1.msra.mxu0 %v98
  %299 = vmatprep.subr.mxu0 0.0
  %300 = vmatpush1.msra.mxu0 %v99
  %301 = vmatprep.subr.mxu0 0.0
  %302 = vmatpush1.msra.mxu0 %v100
  %303 = vmatprep.subr.mxu0 0.0
  %304 = vmatpush1.msra.mxu0 %v101
  %305 = vmatprep.subr.mxu0 0.0
  %306 = vmatpush1.msra.mxu0 %v102
  %307 = vmatprep.subr.mxu0 0.0
  %308 = vmatpush1.msra.mxu0 %v103
  %309 = vmatprep.subr.mxu0 0.0
  %310 = vmatpush1.msra.mxu0 %v104
  %311 = vmatprep.subr.mxu0 0.0
  %312 = vmatpush1.msra.mxu0 %v105
  %313 = vmatprep.subr.mxu0 0.0
  %314 = vmatpush1.msra.mxu0 %v106
  %315 = vmatprep.subr.mxu0 0.0
  %316 = vmatpush1.msra.mxu0 %v107
  %317 = vmatprep.subr.mxu0 0.0
  %318 = vmatpush1.msra.mxu0 %v108
  %319 = vmatprep.subr.mxu0 0.0
  %320 = vmatpush1.msra.mxu0 %v109
  %321 = vmatprep.mubr.f32.mxu0 %v230
  %322 = vmatmul.mubr.f32.gmra.mrb[0].mxu0 %v222
  %v323 = vpop.f32.mrb[0].mxu0
  %v324 = vadd.f32 %v211, %v323
  %v325 = vpop.f32.mrb[0].mxu0
  %326 = vdwg.mxu0
  %327 = vmatprep.subr.mxu0 0.0
  %328 = vmatpush1.msra.mxu0 %v110
  %329 = vmatprep.subr.mxu0 0.0
  %330 = vmatpush1.msra.mxu0 %v111
  %331 = vmatprep.subr.mxu0 0.0
  %332 = vmatpush1.msra.mxu0 %v112
  %333 = vmatprep.subr.mxu0 0.0
  %334 = vmatpush1.msra.mxu0 %v113
  %335 = vmatprep.subr.mxu0 0.0
  %336 = vmatpush1.msra.mxu0 %v114
  %337 = vmatprep.subr.mxu0 0.0
  %338 = vmatpush1.msra.mxu0 %v115
  %339 = vmatprep.subr.mxu0 0.0
  %340 = vmatpush1.msra.mxu0 %v116
  %341 = vmatprep.subr.mxu0 0.0
  %342 = vmatpush1.msra.mxu0 %v117
  %343 = vmatprep.subr.mxu0 0.0
  %344 = vmatpush1.msra.mxu0 %v118
  %345 = vmatprep.subr.mxu0 0.0
  %346 = vmatpush1.msra.mxu0 %v119
  %347 = vmatprep.subr.mxu0 0.0
  %348 = vmatpush1.msra.mxu0 %v120
  %349 = vmatprep.subr.mxu0 0.0
  %350 = vmatpush1.msra.mxu0 %v121
  %351 = vmatprep.subr.mxu0 0.0
  %352 = vmatpush1.msra.mxu0 %v122
  %353 = vmatprep.subr.mxu0 0.0
  %354 = vmatpush1.msra.mxu0 %v123
  %355 = vmatprep.subr.mxu0 0.0
  %356 = vmatpush1.msra.mxu0 %v124
  %357 = vmatprep.subr.mxu0 0.0
  %358 = vmatpush1.msra.mxu0 %v125
  %359 = vmatprep.subr.mxu0 0.0
  %360 = vmatpush1.msra.mxu0 %v126
  %361 = vmatprep.subr.mxu0 0.0
  %362 = vmatpush1.msra.mxu0 %v127
  %363 = vmatprep.subr.mxu0 0.0
  %364 = vmatpush1.msra.mxu0 %v128
  %365 = vmatprep.subr.mxu0 0.0
  %366 = vmatpush1.msra.mxu0 %v129
  %367 = vmatprep.subr.mxu0 0.0
  %368 = vmatpush1.msra.mxu0 %v130
  %369 = vmatprep.subr.mxu0 0.0
  %370 = vmatpush1.msra.mxu0 %v131
  %371 = vmatprep.subr.mxu0 0.0
  %372 = vmatpush1.msra.mxu0 %v132
  %373 = vmatprep.subr.mxu0 0.0
  %374 = vmatpush1.msra.mxu0 %v133
  %375 = vmatprep.subr.mxu0 0.0
  %376 = vmatpush1.msra.mxu0 %v134
  %377 = vmatprep.subr.mxu0 0.0
  %378 = vmatpush1.msra.mxu0 %v135
  %379 = vmatprep.subr.mxu0 0.0
  %380 = vmatpush1.msra.mxu0 %v136
  %381 = vmatprep.subr.mxu0 0.0
  %382 = vmatpush1.msra.mxu0 %v137
  %383 = vmatprep.subr.mxu0 0.0
  %384 = vmatpush1.msra.mxu0 %v138
  %385 = vmatprep.subr.mxu0 0.0
  %386 = vmatpush1.msra.mxu0 %v139
  %387 = vmatprep.subr.mxu0 0.0
  %388 = vmatpush1.msra.mxu0 %v140
  %389 = vmatprep.subr.mxu0 0.0
  %390 = vmatpush1.msra.mxu0 %v141
  %391 = vmatprep.mubr.f32.mxu0 %v231
  %392 = vmatmul.mubr.f32.gmra.mrb[0].mxu0 %v229
  %v393 = vpop.f32.mrb[0].mxu0
  %v394 = vadd.f32 %v324, %v393
  %v395 = vpop.f32.mrb[0].mxu0
  %396 = vdwg.mxu0
  %397 = vmatprep.subr.mxu0 0.0
  %398 = vmatpush1.msra.mxu0 %v142
  %399 = vmatprep.subr.mxu0 0.0
  %400 = vmatpush1.msra.mxu0 %v143
  %401 = vmatprep.subr.mxu0 0.0
  %402 = vmatpush1.msra.mxu0 %v144
  %403 = vmatprep.subr.mxu0 0.0
  %404 = vmatpush1.msra.mxu0 %v145
  %405 = vmatprep.subr.mxu0 0.0
  %406 = vmatpush1.msra.mxu0 %v146
  %407 = vmatprep.subr.mxu0 0.0
  %408 = vmatpush1.msra.mxu0 %v147
  %409 = vmatprep.subr.mxu0 0.0
  %410 = vmatpush1.msra.mxu0 %v148
  %411 = vmatprep.subr.mxu0 0.0
  %412 = vmatpush1.msra.mxu0 %v149
  %413 = vmatprep.subr.mxu0 0.0
  %414 = vmatpush1.msra.mxu0 %v150
  %415 = vmatprep.subr.mxu0 0.0
  %416 = vmatpush1.msra.mxu0 %v151
  %417 = vmatprep.subr.mxu0 0.0
  %418 = vmatpush1.msra.mxu0 %v152
  %419 = vmatprep.subr.mxu0 0.0
  %420 = vmatpush1.msra.mxu0 %v153
  %421 = vmatprep.subr.mxu0 0.0
  %422 = vmatpush1.msra.mxu0 %v154
  %423 = vmatprep.subr.mxu0 0.0
  %424 = vmatpush1.msra.mxu0 %v155
  %425 = vmatprep.subr.mxu0 0.0
  %426 = vmatpush1.msra.mxu0 %v156
  %427 = vmatprep.subr.mxu0 0.0
  %428 = vmatpush1.msra.mxu0 %v157
  %429 = vmatprep.subr.mxu0 0.0
  %430 = vmatpush1.msra.mxu0 %v158
  %431 = vmatprep.subr.mxu0 0.0
  %432 = vmatpush1.msra.mxu0 %v159
  %433 = vmatprep.subr.mxu0 0.0
  %434 = vmatpush1.msra.mxu0 %v160
  %435 = vmatprep.subr.mxu0 0.0
  %436 = vmatpush1.msra.mxu0 %v161
  %437 = vmatprep.subr.mxu0 0.0
  %438 = vmatpush1.msra.mxu0 %v162
  %439 = vmatprep.subr.mxu0 0.0
  %440 = vmatpush1.msra.mxu0 %v163
  %441 = vmatprep.subr.mxu0 0.0
  %442 = vmatpush1.msra.mxu0 %v164
  %443 = vmatprep.subr.mxu0 0.0
  %444 = vmatpush1.msra.mxu0 %v165
  %445 = vmatprep.subr.mxu0 0.0
  %446 = vmatpush1.msra.mxu0 %v166
  %447 = vmatprep.subr.mxu0 0.0
  %448 = vmatpush1.msra.mxu0 %v167
  %449 = vmatprep.subr.mxu0 0.0
  %450 = vmatpush1.msra.mxu0 %v168
  %451 = vmatprep.subr.mxu0 0.0
  %452 = vmatpush1.msra.mxu0 %v169
  %453 = vmatprep.subr.mxu0 0.0
  %454 = vmatpush1.msra.mxu0 %v170
  %455 = vmatprep.subr.mxu0 0.0
  %456 = vmatpush1.msra.mxu0 %v171
  %457 = vmatprep.subr.mxu0 0.0
  %458 = vmatpush1.msra.mxu0 %v172
  %459 = vmatprep.subr.mxu0 0.0
  %460 = vmatpush1.msra.mxu0 %v173
  %461 = vmatprep.mubr.f32.mxu0 %v247
  %462 = vmatmul.mubr.f32.gmra.mrb[0].mxu0 %v239
  %v463 = vpop.f32.mrb[0].mxu0
  %v464 = vadd.f32 %v394, %v463
  %v465 = vpop.f32.mrb[0].mxu0
  %466 = vdwg.mxu0
  %467 = vmatprep.subr.mxu0 0.0
  %468 = vmatpush1.msra.mxu0 %v174
  %469 = vmatprep.subr.mxu0 0.0
  %470 = vmatpush1.msra.mxu0 %v175
  %471 = vmatprep.subr.mxu0 0.0
  %472 = vmatpush1.msra.mxu0 %v176
  %473 = vmatprep.subr.mxu0 0.0
  %474 = vmatpush1.msra.mxu0 %v177
  %475 = vmatprep.subr.mxu0 0.0
  %476 = vmatpush1.msra.mxu0 %v178
  %477 = vmatprep.subr.mxu0 0.0
  %478 = vmatpush1.msra.mxu0 %v179
  %479 = vmatprep.subr.mxu0 0.0
  %480 = vmatpush1.msra.mxu0 %v180
  %481 = vmatprep.subr.mxu0 0.0
  %482 = vmatpush1.msra.mxu0 %v181
  %483 = vmatprep.subr.mxu0 0.0
  %484 = vmatpush1.msra.mxu0 %v182
  %485 = vmatprep.subr.mxu0 0.0
  %486 = vmatpush1.msra.mxu0 %v183
  %487 = vmatprep.subr.mxu0 0.0
  %488 = vmatpush1.msra.mxu0 %v184
  %489 = vmatprep.subr.mxu0 0.0
  %490 = vmatpush1.msra.mxu0 %v185
  %491 = vmatprep.subr.mxu0 0.0
  %492 = vmatpush1.msra.mxu0 %v186
  %493 = vmatprep.subr.mxu0 0.0
  %494 = vmatpush1.msra.mxu0 %v187
  %495 = vmatprep.subr.mxu0 0.0
  %496 = vmatpush1.msra.mxu0 %v188
  %497 = vmatprep.subr.mxu0 0.0
  %498 = vmatpush1.msra.mxu0 %v189
  %499 = vmatprep.subr.mxu0 0.0
  %500 = vmatpush1.msra.mxu0 %v190
  %501 = vmatprep.subr.mxu0 0.0
  %502 = vmatpush1.msra.mxu0 %v191
  %503 = vmatprep.subr.mxu0 0.0
  %504 = vmatpush1.msra.mxu0 %v192
  %505 = vmatprep.subr.mxu0 0.0
  %506 = vmatpush1.msra.mxu0 %v193
  %507 = vmatprep.subr.mxu0 0.0
  %508 = vmatpush1.msra.mxu0 %v194
  %509 = vmatprep.subr.mxu0 0.0
  %510 = vmatpush1.msra.mxu0 %v195
  %511 = vmatprep.subr.mxu0 0.0
  %512 = vmatpush1.msra.mxu0 %v196
  %513 = vmatprep.subr.mxu0 0.0
  %514 = vmatpush1.msra.mxu0 %v197
  %515 = vmatprep.subr.mxu0 0.0
  %516 = vmatpush1.msra.mxu0 %v198
  %517 = vmatprep.subr.mxu0 0.0
  %518 = vmatpush1.msra.mxu0 %v199
  %519 = vmatprep.subr.mxu0 0.0
  %520 = vmatpush1.msra.mxu0 %v200
  %521 = vmatprep.subr.mxu0 0.0
  %522 = vmatpush1.msra.mxu0 %v201
  %523 = vmatprep.subr.mxu0 0.0
  %524 = vmatpush1.msra.mxu0 %v202
  %525 = vmatprep.subr.mxu0 0.0
  %526 = vmatpush1.msra.mxu0 %v203
  %527 = vmatprep.subr.mxu0 0.0
  %528 = vmatpush1.msra.mxu0 %v204
  %529 = vmatprep.subr.mxu0 0.0
  %530 = vmatpush1.msra.mxu0 %v205
  %531 = vmatprep.mubr.f32.mxu0 %v248
  %532 = vmatmul.mubr.f32.gmra.mrb[0].mxu0 %v246
  %v533 = vpop.f32.mrb[0].mxu0
  %v534 = vadd.f32 %v464, %v533
  %v535 = vpop.f32.mrb[0].mxu0
  %536 = vdwg.mxu0
  %v537 = vmax.f32 %v534, 0.0
  %v538 = vld [vmem:[%s4] sm:$0x3]
  %v539 = vld [vmem:[%s17] sm:$0xff]
  %v540 = vld [vmem:[%s17 + $0x8] sm:$0xff]
  %v541 = vld [vmem:[%s17 + $0x10] sm:$0xff]
  %v542 = vld [vmem:[%s17 + $0x18] sm:$0xff]
  %v543 = vld [vmem:[%s18] sm:$0xf]
  %vm544 = vcmask 254976
  %545 = vst.msk [vmem:[%s24] sm:$0x3] %vm544, %v537
  %v546 = vld [vmem:[%s3] sm:$0xff]
  %v547 = vld [vmem:[%s3 + $0x8] sm:$0xff]
  %v548 = vld [vmem:[%s5] sm:$0xff]
  %v549 = vld [vmem:[%s5 + $0x8] sm:$0xff]
  %v550 = vld [vmem:[%s5 + $0x10] sm:$0xff]
  %v551 = vld [vmem:[%s5 + $0x18] sm:$0xff]
  %v552 = vld [vmem:[%s6] sm:$0x1]
  %v554 = vlaneseq
  %v555 = vshrl.u32 %v554, 7
  %v556 = vsub.s32 0, %v555
  %v557 = vrot.slane %v552, %v556
  %vm559 = vcmask 261120
  %v561 = vsel %vm559, %v537, 0
  %563 = vmatprep.subr.mxu0 0.0
  %564 = vmatpush1.msra.mxu0 %v548
  %565 = vmatprep.subr.mxu0 0.0
  %566 = vmatpush1.msra.mxu0 %v549
  %567 = vmatprep.subr.mxu0 0.0
  %568 = vmatpush1.msra.mxu0 %v550
  %569 = vmatprep.subr.mxu0 0.0
  %570 = vmatpush1.msra.mxu0 %v551
  %571 = vmatprep.subr.mxu0 0.0
  %572 = vmatpush1.msra.mxu0 0.0
  %573 = vmatprep.subr.mxu0 0.0
  %574 = vmatpush1.msra.mxu0 0.0
  %575 = vmatprep.subr.mxu0 0.0
  %576 = vmatpush1.msra.mxu0 0.0
  %577 = vmatprep.subr.mxu0 0.0
  %578 = vmatpush1.msra.mxu0 0.0
  %579 = vmatprep.subr.mxu0 0.0
  %580 = vmatpush1.msra.mxu0 0.0
  %581 = vmatprep.subr.mxu0 0.0
  %582 = vmatpush1.msra.mxu0 0.0
  %583 = vmatprep.subr.mxu0 0.0
  %584 = vmatpush1.msra.mxu0 0.0
  %585 = vmatprep.subr.mxu0 0.0
  %586 = vmatpush1.msra.mxu0 0.0
  %587 = vmatprep.subr.mxu0 0.0
  %588 = vmatpush1.msra.mxu0 0.0
  %589 = vmatprep.subr.mxu0 0.0
  %590 = vmatpush1.msra.mxu0 0.0
  %591 = vmatprep.subr.mxu0 0.0
  %592 = vmatpush1.msra.mxu0 0.0
  %593 = vmatprep.subr.mxu0 0.0
  %594 = vmatpush1.msra.mxu0 0.0
  %595 = vmatprep.subr.mxu0 0.0
  %596 = vmatpush1.msra.mxu0 0.0
  %597 = vmatprep.subr.mxu0 0.0
  %598 = vmatpush1.msra.mxu0 0.0
  %599 = vmatprep.subr.mxu0 0.0
  %600 = vmatpush1.msra.mxu0 0.0
  %601 = vmatprep.subr.mxu0 0.0
  %602 = vmatpush1.msra.mxu0 0.0
  %603 = vmatprep.subr.mxu0 0.0
  %604 = vmatpush1.msra.mxu0 0.0
  %605 = vmatprep.subr.mxu0 0.0
  %606 = vmatpush1.msra.mxu0 0.0
  %607 = vmatprep.subr.mxu0 0.0
  %608 = vmatpush1.msra.mxu0 0.0
  %609 = vmatprep.subr.mxu0 0.0
  %610 = vmatpush1.msra.mxu0 0.0
  %611 = vmatprep.subr.mxu0 0.0
  %612 = vmatpush1.msra.mxu0 0.0
  %613 = vmatprep.subr.mxu0 0.0
  %614 = vmatpush1.msra.mxu0 0.0
  %615 = vmatprep.subr.mxu0 0.0
  %616 = vmatpush1.msra.mxu0 0.0
  %617 = vmatprep.subr.mxu0 0.0
  %618 = vmatpush1.msra.mxu0 0.0
  %619 = vmatprep.subr.mxu0 0.0
  %620 = vmatpush1.msra.mxu0 0.0
  %621 = vmatprep.subr.mxu0 0.0
  %622 = vmatpush1.msra.mxu0 0.0
  %623 = vmatprep.subr.mxu0 0.0
  %624 = vmatpush1.msra.mxu0 0.0
  %625 = vmatprep.subr.mxu0 0.0
  %626 = vmatpush1.msra.mxu0 0.0
  %627 = vmatprep.mubr.f32.mxu0 0.0
  %628 = vmatmul.mubr.f32.gmra.mrb[0].mxu0 %v561
  %v629 = vpop.f32.mrb[0].mxu0
  %v630 = vadd.f32 %v557, %v629
  %v631 = vpop.f32.mrb[0].mxu0
  %632 = vdwg.mxu0
  %v633 = vld [vmem:[%s7] sm:$0xff]
  %v634 = vld [vmem:[%s7 + $0x8] sm:$0xff]
  %v635 = vld [vmem:[%s7 + $0x10] sm:$0xff]
  %v636 = vld [vmem:[%s7 + $0x18] sm:$0xff]
  %v637 = vld [vmem:[%s8] sm:$0x1]
  %v639 = vlaneseq
  %v640 = vshrl.u32 %v639, 7
  %v641 = vsub.s32 0, %v640
  %v642 = vrot.slane %v637, %v641
  %v645 = vsel %vm559, %v546, 0
  %v648 = vsel %vm559, %v547, 0
  %650 = vmatprep.subr.mxu0 0.0
  %651 = vmatpush1.msra.mxu0 %v633
  %652 = vmatprep.subr.mxu0 0.0
  %653 = vmatpush1.msra.mxu0 %v634
  %654 = vmatprep.subr.mxu0 0.0
  %655 = vmatpush1.msra.mxu0 %v635
  %656 = vmatprep.subr.mxu0 0.0
  %657 = vmatpush1.msra.mxu0 %v636
  %658 = vmatprep.subr.mxu0 0.0
  %659 = vmatpush1.msra.mxu0 0.0
  %660 = vmatprep.subr.mxu0 0.0
  %661 = vmatpush1.msra.mxu0 0.0
  %662 = vmatprep.subr.mxu0 0.0
  %663 = vmatpush1.msra.mxu0 0.0
  %664 = vmatprep.subr.mxu0 0.0
  %665 = vmatpush1.msra.mxu0 0.0
  %666 = vmatprep.subr.mxu0 0.0
  %667 = vmatpush1.msra.mxu0 0.0
  %668 = vmatprep.subr.mxu0 0.0
  %669 = vmatpush1.msra.mxu0 0.0
  %670 = vmatprep.subr.mxu0 0.0
  %671 = vmatpush1.msra.mxu0 0.0
  %672 = vmatprep.subr.mxu0 0.0
  %673 = vmatpush1.msra.mxu0 0.0
  %674 = vmatprep.subr.mxu0 0.0
  %675 = vmatpush1.msra.mxu0 0.0
  %676 = vmatprep.subr.mxu0 0.0
  %677 = vmatpush1.msra.mxu0 0.0
  %678 = vmatprep.subr.mxu0 0.0
  %679 = vmatpush1.msra.mxu0 0.0
  %680 = vmatprep.subr.mxu0 0.0
  %681 = vmatpush1.msra.mxu0 0.0
  %682 = vmatprep.subr.mxu0 0.0
  %683 = vmatpush1.msra.mxu0 0.0
  %684 = vmatprep.subr.mxu0 0.0
  %685 = vmatpush1.msra.mxu0 0.0
  %686 = vmatprep.subr.mxu0 0.0
  %687 = vmatpush1.msra.mxu0 0.0
  %688 = vmatprep.subr.mxu0 0.0
  %689 = vmatpush1.msra.mxu0 0.0
  %690 = vmatprep.subr.mxu0 0.0
  %691 = vmatpush1.msra.mxu0 0.0
  %692 = vmatprep.subr.mxu0 0.0
  %693 = vmatpush1.msra.mxu0 0.0
  %694 = vmatprep.subr.mxu0 0.0
  %695 = vmatpush1.msra.mxu0 0.0
  %696 = vmatprep.subr.mxu0 0.0
  %697 = vmatpush1.msra.mxu0 0.0
  %698 = vmatprep.subr.mxu0 0.0
  %699 = vmatpush1.msra.mxu0 0.0
  %700 = vmatprep.subr.mxu0 0.0
  %701 = vmatpush1.msra.mxu0 0.0
  %702 = vmatprep.subr.mxu0 0.0
  %703 = vmatpush1.msra.mxu0 0.0
  %704 = vmatprep.subr.mxu0 0.0
  %705 = vmatpush1.msra.mxu0 0.0
  %706 = vmatprep.subr.mxu0 0.0
  %707 = vmatpush1.msra.mxu0 0.0
  %708 = vmatprep.subr.mxu0 0.0
  %709 = vmatpush1.msra.mxu0 0.0
  %710 = vmatprep.subr.mxu0 0.0
  %711 = vmatpush1.msra.mxu0 0.0
  %712 = vmatprep.subr.mxu0 0.0
  %713 = vmatpush1.msra.mxu0 0.0
  %714 = vmatprep.mubr.f32.mxu0 0.0
  %715 = vmatmul.mubr.f32.gmra.mrb[0].mxu0 %v645
  %v716 = vpop.f32.mrb[0].mxu0
  %v717 = vadd.f32 %v642, %v716
  %v718 = vpop.f32.mrb[0].mxu0
  %719 = vmatprep.mubr.f32.mxu0 0.0
  %720 = vmatmul.mubr.f32.gmra.mrb[0].mxu0 %v648
  %v721 = vpop.f32.mrb[0].mxu0
  %v722 = vadd.f32 %v642, %v721
  %v723 = vpop.f32.mrb[0].mxu0
  %724 = vdwg.mxu0
  %v727 = vunpack.c.l.s4 1966171168
  %v728 = vunpack.c.0.s8 %v727
  %v729 = vlaneseq
  %v730 = vshrl.u32 %v729, 7
  %v731 = vsub.s32 %v728, %v730
  %v732 = vrot.slane %v630, %v731
  %v733 = vcombine.high %v732, %v732
  %v735 = vunpack.c.l.s4 1966171168
  %v736 = vunpack.c.0.s8 %v735
  %v737 = vlaneseq
  %v738 = vshrl.u32 %v737, 7
  %v739 = vsub.s32 %v736, %v738
  %v740 = vrot.slane %v732, %v739
  %v742 = vunpack.c.l.s4 1966171168
  %v743 = vunpack.c.0.s8 %v742
  %v744 = vlaneseq
  %v745 = vshrl.u32 %v744, 7
  %v746 = vsub.s32 %v743, %v745
  %v747 = vrot.slane %v733, %v746
  %v748 = vlaneseq
  %v749 = vshrl.u32 %v748, 7
  %v750 = vsub.s32 0, %v749
  %v751 = vrot.slane %v740, %v750
  %v752 = vlaneseq
  %v753 = vshrl.u32 %v752, 7
  %v754 = vsub.s32 0, %v753
  %v755 = vrot.slane %v747, %v754
  %v758 = vmul.f32 %v751, %v717
  %v759 = vmul.f32 %v755, %v722
  %v761 = vsel %vm559, %v758, 0
  %v764 = vsel %vm559, %v759, 0
  %766 = vmatprep.subr.mxu0 0.0
  %767 = vmatpush1.msra.mxu0 %v539
  %768 = vmatprep.subr.mxu0 0.0
  %769 = vmatpush1.msra.mxu0 %v540
  %770 = vmatprep.subr.mxu0 0.0
  %771 = vmatpush1.msra.mxu0 %v541
  %772 = vmatprep.subr.mxu0 0.0
  %773 = vmatpush1.msra.mxu0 %v542
  %774 = vmatprep.subr.mxu0 0.0
  %775 = vmatpush1.msra.mxu0 0.0
  %776 = vmatprep.subr.mxu0 0.0
  %777 = vmatpush1.msra.mxu0 0.0
  %778 = vmatprep.subr.mxu0 0.0
  %779 = vmatpush1.msra.mxu0 0.0
  %780 = vmatprep.subr.mxu0 0.0
  %781 = vmatpush1.msra.mxu0 0.0
  %782 = vmatprep.subr.mxu0 0.0
  %783 = vmatpush1.msra.mxu0 0.0
  %784 = vmatprep.subr.mxu0 0.0
  %785 = vmatpush1.msra.mxu0 0.0
  %786 = vmatprep.subr.mxu0 0.0
  %787 = vmatpush1.msra.mxu0 0.0
  %788 = vmatprep.subr.mxu0 0.0
  %789 = vmatpush1.msra.mxu0 0.0
  %790 = vmatprep.subr.mxu0 0.0
  %791 = vmatpush1.msra.mxu0 0.0
  %792 = vmatprep.subr.mxu0 0.0
  %793 = vmatpush1.msra.mxu0 0.0
  %794 = vmatprep.subr.mxu0 0.0
  %795 = vmatpush1.msra.mxu0 0.0
  %796 = vmatprep.subr.mxu0 0.0
  %797 = vmatpush1.msra.mxu0 0.0
  %798 = vmatprep.subr.mxu0 0.0
  %799 = vmatpush1.msra.mxu0 0.0
  %800 = vmatprep.subr.mxu0 0.0
  %801 = vmatpush1.msra.mxu0 0.0
  %802 = vmatprep.subr.mxu0 0.0
  %803 = vmatpush1.msra.mxu0 0.0
  %804 = vmatprep.subr.mxu0 0.0
  %805 = vmatpush1.msra.mxu0 0.0
  %806 = vmatprep.subr.mxu0 0.0
  %807 = vmatpush1.msra.mxu0 0.0
  %808 = vmatprep.subr.mxu0 0.0
  %809 = vmatpush1.msra.mxu0 0.0
  %810 = vmatprep.subr.mxu0 0.0
  %811 = vmatpush1.msra.mxu0 0.0
  %812 = vmatprep.subr.mxu0 0.0
  %813 = vmatpush1.msra.mxu0 0.0
  %814 = vmatprep.subr.mxu0 0.0
  %815 = vmatpush1.msra.mxu0 0.0
  %816 = vmatprep.subr.mxu0 0.0
  %817 = vmatpush1.msra.mxu0 0.0
  %818 = vmatprep.subr.mxu0 0.0
  %819 = vmatpush1.msra.mxu0 0.0
  %820 = vmatprep.subr.mxu0 0.0
  %821 = vmatpush1.msra.mxu0 0.0
  %822 = vmatprep.subr.mxu0 0.0
  %823 = vmatpush1.msra.mxu0 0.0
  %824 = vmatprep.subr.mxu0 0.0
  %825 = vmatpush1.msra.mxu0 0.0
  %826 = vmatprep.subr.mxu0 0.0
  %827 = vmatpush1.msra.mxu0 0.0
  %828 = vmatprep.subr.mxu0 0.0
  %829 = vmatpush1.msra.mxu0 0.0
  %830 = vmatprep.mubr.f32.mxu0 0.0
  %831 = vmatmul.mubr.f32.gmra.mrb[0].mxu0 %v761
  %v832 = vpop.f32.mrb[0].mxu0
  %v833 = vadd.f32 0.0, %v832
  %v834 = vpop.f32.mrb[0].mxu0
  %835 = vmatprep.mubr.f32.mxu0 0.0
  %836 = vmatmul.mubr.f32.gmra.mrb[0].mxu0 %v764
  %v837 = vpop.f32.mrb[0].mxu0
  %v838 = vadd.f32 0.0, %v837
  %v839 = vpop.f32.mrb[0].mxu0
  %840 = vdwg.mxu0
  %v841 = vmul.f32 %v833, 0.17677669
  %v842 = vmul.f32 %v838, 0.17677669
  %v843 = vlaneseq
  %v844 = vshrl.u32 %v843, 7
  %v845 = vsub.s32 0, %v844
  %v846 = vrot.slane %v538, %v845
  %848 = vbcast.lane.b32.xlu0 %v846, 256
  %v849 = vpop.permute.xlu0 %848
  %v850 = vlaneseq
  %v851 = vshrl.u32 %v850, 7
  %v852 = vsub.s32 1, %v851
  %v853 = vrot.slane %v538, %v852
  %855 = vbcast.lane.b32.xlu0 %v853, 256
  %v856 = vpop.permute.xlu0 %855
  %vm857 = vcmp.gt.f32.partialorder %v849, 0.0
  %vm858 = vcmp.gt.f32.partialorder %v856, 0.0
  %v859 = vsel %vm857, 1, 0
  %v860 = vsel %vm858, 1, 0
  %vm861 = vcmp.eq.s32.totalorder %v859, 1
  %vm862 = vcmp.eq.s32.totalorder %v860, 1
  %v863 = vsel %vm861, %v841, -1e+30
  %v864 = vsel %vm862, %v842, -1e+30
  %vm865 = vcmask 31744
  %v866 = vsel %vm865, %v863, -inf
  %v867 = vrot.slane %v866, 4
  %v868 = vmax.f32 %v866, %v867
  %v869 = vrot.slane %v868, 2
  %v870 = vmax.f32 %v868, %v869
  %v871 = vrot.slane %v870, 1
  %v872 = vmax.f32 %v870, %v871
  %v873 = vsel %vm865, %v864, -inf
  %v874 = vrot.slane %v873, 4
  %v875 = vmax.f32 %v873, %v874
  %v876 = vrot.slane %v875, 2
  %v877 = vmax.f32 %v875, %v876
  %v878 = vrot.slane %v877, 1
  %v879 = vmax.f32 %v877, %v878
  %v880 = vsub.f32 %v863, %v872
  %v881 = vsub.f32 %v864, %v879
  %v882 = vmul.f32 %v880, 1.442695
  %v883 = vpow.pop %v882
  %v884 = vmul.f32 %v881, 1.442695
  %v885 = vpow.pop %v884
  %v886 = vsel %vm865, %v883, 0.0
  %v887 = vrot.slane %v886, 4
  %v888 = vadd.f32 %v886, %v887
  %v889 = vrot.slane %v888, 2
  %v890 = vadd.f32 %v888, %v889
  %v891 = vrot.slane %v890, 1
  %v892 = vadd.f32 %v890, %v891
  %v893 = vsel %vm865, %v885, 0.0
  %v894 = vrot.slane %v893, 4
  %v895 = vadd.f32 %v893, %v894
  %v896 = vrot.slane %v895, 2
  %v897 = vadd.f32 %v895, %v896
  %v898 = vrot.slane %v897, 1
  %v899 = vadd.f32 %v897, %v898
  %v900 = vrcp.pop %v892
  %v901 = vrcp.pop %v899
  %v902 = vmul.f32 %v883, %v900
  %v903 = vmul.f32 %v885, %v901
  %v905 = vsel %vm865, %v902, 0
  %v908 = vsel %vm865, %v903, 0
  %vm910 = vcmask 1043456
  %v912 = vsel %vm910, %v543, 0
  %914 = vmatprep.subr.mxu0 0.0
  %915 = vmatpush1.msra.mxu0 %v912
  %916 = vmatprep.subr.mxu0 0.0
  %917 = vmatpush1.msra.mxu0 0.0
  %918 = vmatprep.subr.mxu0 0.0
  %919 = vmatpush1.msra.mxu0 0.0
  %920 = vmatprep.subr.mxu0 0.0
  %921 = vmatpush1.msra.mxu0 0.0
  %922 = vmatprep.subr.mxu0 0.0
  %923 = vmatpush1.msra.mxu0 0.0
  %924 = vmatprep.subr.mxu0 0.0
  %925 = vmatpush1.msra.mxu0 0.0
  %926 = vmatprep.subr.mxu0 0.0
  %927 = vmatpush1.msra.mxu0 0.0
  %928 = vmatprep.subr.mxu0 0.0
  %929 = vmatpush1.msra.mxu0 0.0
  %930 = vmatprep.subr.mxu0 0.0
  %931 = vmatpush1.msra.mxu0 0.0
  %932 = vmatprep.subr.mxu0 0.0
  %933 = vmatpush1.msra.mxu0 0.0
  %934 = vmatprep.subr.mxu0 0.0
  %935 = vmatpush1.msra.mxu0 0.0
  %936 = vmatprep.subr.mxu0 0.0
  %937 = vmatpush1.msra.mxu0 0.0
  %938 = vmatprep.subr.mxu0 0.0
  %939 = vmatpush1.msra.mxu0 0.0
  %940 = vmatprep.subr.mxu0 0.0
  %941 = vmatpush1.msra.mxu0 0.0
  %942 = vmatprep.subr.mxu0 0.0
  %943 = vmatpush1.msra.mxu0 0.0
  %944 = vmatprep.subr.mxu0 0.0
  %945 = vmatpush1.msra.mxu0 0.0
  %946 = vmatprep.subr.mxu0 0.0
  %947 = vmatpush1.msra.mxu0 0.0
  %948 = vmatprep.subr.mxu0 0.0
  %949 = vmatpush1.msra.mxu0 0.0
  %950 = vmatprep.subr.mxu0 0.0
  %951 = vmatpush1.msra.mxu0 0.0
  %952 = vmatprep.subr.mxu0 0.0
  %953 = vmatpush1.msra.mxu0 0.0
  %954 = vmatprep.subr.mxu0 0.0
  %955 = vmatpush1.msra.mxu0 0.0
  %956 = vmatprep.subr.mxu0 0.0
  %957 = vmatpush1.msra.mxu0 0.0
  %958 = vmatprep.subr.mxu0 0.0
  %959 = vmatpush1.msra.mxu0 0.0
  %960 = vmatprep.subr.mxu0 0.0
  %961 = vmatpush1.msra.mxu0 0.0
  %962 = vmatprep.subr.mxu0 0.0
  %963 = vmatpush1.msra.mxu0 0.0
  %964 = vmatprep.subr.mxu0 0.0
  %965 = vmatpush1.msra.mxu0 0.0
  %966 = vmatprep.subr.mxu0 0.0
  %967 = vmatpush1.msra.mxu0 0.0
  %968 = vmatprep.subr.mxu0 0.0
  %969 = vmatpush1.msra.mxu0 0.0
  %970 = vmatprep.subr.mxu0 0.0
  %971 = vmatpush1.msra.mxu0 0.0
  %972 = vmatprep.subr.mxu0 0.0
  %973 = vmatpush1.msra.mxu0 0.0
  %974 = vmatprep.subr.mxu0 0.0
  %975 = vmatpush1.msra.mxu0 0.0
  %976 = vmatprep.subr.mxu0 0.0
  %977 = vmatpush1.msra.mxu0 0.0
  %978 = vmatprep.mubr.f32.mxu0 0.0
  %979 = vmatmul.mubr.f32.gmra.mrb[0].mxu0 %v905
  %v980 = vpop.f32.mrb[0].mxu0
  %v981 = vadd.f32 0.0, %v980
  %v982 = vpop.f32.mrb[0].mxu0
  %983 = vmatprep.mubr.f32.mxu0 0.0
  %984 = vmatmul.mubr.f32.gmra.mrb[0].mxu0 %v908
  %v985 = vpop.f32.mrb[0].mxu0
  %v986 = vadd.f32 0.0, %v985
  %v987 = vpop.f32.mrb[0].mxu0
  %988 = vdwg.mxu0
  %991 = vrot.lane.b32.xlu0 %v717, 96
  %v992 = vpop.permute.xlu0 %991
  %993 = vrot.lane.b32.xlu0 %v722, 96
  %v994 = vpop.permute.xlu0 %993
  %v997 = vmul.f32 %v981, %v992
  %v998 = vmul.f32 %v986, %v994
  %v999 = vsel %vm559, %v997, 0.0
  %v1000 = vrot.slane %v999, 4
  %v1001 = vadd.f32 %v999, %v1000
  %v1002 = vrot.slane %v1001, 2
  %v1003 = vadd.f32 %v1001, %v1002
  %v1004 = vrot.slane %v1003, 1
  %v1005 = vadd.f32 %v1003, %v1004
  %v1006 = vsel %vm559, %v998, 0.0
  %v1007 = vrot.slane %v1006, 4
  %v1008 = vadd.f32 %v1006, %v1007
  %v1009 = vrot.slane %v1008, 2
  %v1010 = vadd.f32 %v1008, %v1009
  %v1011 = vrot.slane %v1010, 1
  %v1012 = vadd.f32 %v1010, %v1011
  %v1013 = vld [vmem:[%s9] sm:$0xff]
  %v1014 = vld [vmem:[%s9 + $0x8] sm:$0xff]
  %v1015 = vld [vmem:[%s9 + $0x10] sm:$0xff]
  %v1016 = vld [vmem:[%s9 + $0x18] sm:$0xff]
  %v1017 = vld [vmem:[%s10] sm:$0x1]
  %v1019 = vlaneseq
  %v1020 = vshrl.u32 %v1019, 7
  %v1021 = vsub.s32 0, %v1020
  %v1022 = vrot.slane %v1017, %v1021
  %vm1026 = vcmask 1041409
  %v1027 = vsel %vm1026, %v1012, %v1005
  %v1028 = vsel %vm559, %v1027, 0
  %1030 = vmatprep.subr.mxu0 0.0
  %1031 = vmatpush1.msra.mxu0 %v1013
  %1032 = vmatprep.subr.mxu0 0.0
  %1033 = vmatpush1.msra.mxu0 %v1014
  %1034 = vmatprep.subr.mxu0 0.0
  %1035 = vmatpush1.msra.mxu0 %v1015
  %1036 = vmatprep.subr.mxu0 0.0
  %1037 = vmatpush1.msra.mxu0 %v1016
  %1038 = vmatprep.subr.mxu0 0.0
  %1039 = vmatpush1.msra.mxu0 0.0
  %1040 = vmatprep.subr.mxu0 0.0
  %1041 = vmatpush1.msra.mxu0 0.0
  %1042 = vmatprep.subr.mxu0 0.0
  %1043 = vmatpush1.msra.mxu0 0.0
  %1044 = vmatprep.subr.mxu0 0.0
  %1045 = vmatpush1.msra.mxu0 0.0
  %1046 = vmatprep.subr.mxu0 0.0
  %1047 = vmatpush1.msra.mxu0 0.0
  %1048 = vmatprep.subr.mxu0 0.0
  %1049 = vmatpush1.msra.mxu0 0.0
  %1050 = vmatprep.subr.mxu0 0.0
  %1051 = vmatpush1.msra.mxu0 0.0
  %1052 = vmatprep.subr.mxu0 0.0
  %1053 = vmatpush1.msra.mxu0 0.0
  %1054 = vmatprep.subr.mxu0 0.0
  %1055 = vmatpush1.msra.mxu0 0.0
  %1056 = vmatprep.subr.mxu0 0.0
  %1057 = vmatpush1.msra.mxu0 0.0
  %1058 = vmatprep.subr.mxu0 0.0
  %1059 = vmatpush1.msra.mxu0 0.0
  %1060 = vmatprep.subr.mxu0 0.0
  %1061 = vmatpush1.msra.mxu0 0.0
  %1062 = vmatprep.subr.mxu0 0.0
  %1063 = vmatpush1.msra.mxu0 0.0
  %1064 = vmatprep.subr.mxu0 0.0
  %1065 = vmatpush1.msra.mxu0 0.0
  %1066 = vmatprep.subr.mxu0 0.0
  %1067 = vmatpush1.msra.mxu0 0.0
  %1068 = vmatprep.subr.mxu0 0.0
  %1069 = vmatpush1.msra.mxu0 0.0
  %1070 = vmatprep.subr.mxu0 0.0
  %1071 = vmatpush1.msra.mxu0 0.0
  %1072 = vmatprep.subr.mxu0 0.0
  %1073 = vmatpush1.msra.mxu0 0.0
  %1074 = vmatprep.subr.mxu0 0.0
  %1075 = vmatpush1.msra.mxu0 0.0
  %1076 = vmatprep.subr.mxu0 0.0
  %1077 = vmatpush1.msra.mxu0 0.0
  %1078 = vmatprep.subr.mxu0 0.0
  %1079 = vmatpush1.msra.mxu0 0.0
  %1080 = vmatprep.subr.mxu0 0.0
  %1081 = vmatpush1.msra.mxu0 0.0
  %1082 = vmatprep.subr.mxu0 0.0
  %1083 = vmatpush1.msra.mxu0 0.0
  %1084 = vmatprep.subr.mxu0 0.0
  %1085 = vmatpush1.msra.mxu0 0.0
  %1086 = vmatprep.subr.mxu0 0.0
  %1087 = vmatpush1.msra.mxu0 0.0
  %1088 = vmatprep.subr.mxu0 0.0
  %1089 = vmatpush1.msra.mxu0 0.0
  %1090 = vmatprep.subr.mxu0 0.0
  %1091 = vmatpush1.msra.mxu0 0.0
  %1092 = vmatprep.subr.mxu0 0.0
  %1093 = vmatpush1.msra.mxu0 0.0
  %1094 = vmatprep.mubr.f32.mxu0 0.0
  %1095 = vmatmul.mubr.f32.gmra.mrb[0].mxu0 %v1028
  %v1096 = vpop.f32.mrb[0].mxu0
  %v1097 = vadd.f32 %v1022, %v1096
  %v1098 = vpop.f32.mrb[0].mxu0
  %1099 = vdwg.mxu0
  %v1100 = vadd.f32 %v537, %v1097
  %v1101 = vld [vmem:[%s13] sm:$0x1]
  %v1102 = vld [vmem:[%s14] sm:$0x1]
  %v1103 = vsel %vm544, %v1100, 0.0
  %1104 = vadd.xlane.f32.xlu0 %v1103
  %v1105 = vpop.xlane.xlu0 %1104
  %v1106 = vrcp.pop 32.0
  %v1107 = vmul.f32 %v1105, %v1106
  %v1108 = vsub.f32 %v1100, %v1107
  %v1109 = vmul.f32 %v1108, %v1108
  %v1110 = vsel %vm544, %v1109, 0.0
  %1111 = vadd.xlane.f32.xlu0 %v1110
  %v1112 = vpop.xlane.xlu0 %1111
  %v1113 = vmul.f32 %v1112, %v1106
  %v1114 = vadd.f32 %v1113, 1e-05
  %v1115 = vrsqrt.pop %v1114
  %v1116 = vmul.f32 %v1108, %v1115
  %v1118 = vlaneseq
  %v1119 = vshrl.u32 %v1118, 7
  %v1120 = vsub.s32 0, %v1119
  %v1121 = vrot.slane %v1101, %v1120
  %v1123 = vmul.f32 %v1116, %v1121
  %v1125 = vlaneseq
  %v1126 = vshrl.u32 %v1125, 7
  %v1127 = vsub.s32 0, %v1126
  %v1128 = vrot.slane %v1102, %v1127
  %v1130 = vadd.f32 %v1123, %v1128
  %v1131 = vld [vmem:[%s11] sm:$0xff]
  %v1132 = vld [vmem:[%s11 + $0x8] sm:$0xff]
  %v1133 = vld [vmem:[%s11 + $0x10] sm:$0xff]
  %v1134 = vld [vmem:[%s11 + $0x18] sm:$0xff]
  %v1135 = vld [vmem:[%s12] sm:$0x1]
  %v1137 = vlaneseq
  %v1138 = vshrl.u32 %v1137, 7
  %v1139 = vsub.s32 0, %v1138
  %v1140 = vrot.slane %v1135, %v1139
  %v1143 = vsel %vm559, %v1130, 0
  %1145 = vmatprep.subr.mxu0 0.0
  %1146 = vmatpush1.msra.mxu0 %v1131
  %1147 = vmatprep.subr.mxu0 0.0
  %1148 = vmatpush1.msra.mxu0 %v1132
  %1149 = vmatprep.subr.mxu0 0.0
  %1150 = vmatpush1.msra.mxu0 %v1133
  %1151 = vmatprep.subr.mxu0 0.0
  %1152 = vmatpush1.msra.mxu0 %v1134
  %1153 = vmatprep.subr.mxu0 0.0
  %1154 = vmatpush1.msra.mxu0 0.0
  %1155 = vmatprep.subr.mxu0 0.0
  %1156 = vmatpush1.msra.mxu0 0.0
  %1157 = vmatprep.subr.mxu0 0.0
  %1158 = vmatpush1.msra.mxu0 0.0
  %1159 = vmatprep.subr.mxu0 0.0
  %1160 = vmatpush1.msra.mxu0 0.0
  %1161 = vmatprep.subr.mxu0 0.0
  %1162 = vmatpush1.msra.mxu0 0.0
  %1163 = vmatprep.subr.mxu0 0.0
  %1164 = vmatpush1.msra.mxu0 0.0
  %1165 = vmatprep.subr.mxu0 0.0
  %1166 = vmatpush1.msra.mxu0 0.0
  %1167 = vmatprep.subr.mxu0 0.0
  %1168 = vmatpush1.msra.mxu0 0.0
  %1169 = vmatprep.subr.mxu0 0.0
  %1170 = vmatpush1.msra.mxu0 0.0
  %1171 = vmatprep.subr.mxu0 0.0
  %1172 = vmatpush1.msra.mxu0 0.0
  %1173 = vmatprep.subr.mxu0 0.0
  %1174 = vmatpush1.msra.mxu0 0.0
  %1175 = vmatprep.subr.mxu0 0.0
  %1176 = vmatpush1.msra.mxu0 0.0
  %1177 = vmatprep.subr.mxu0 0.0
  %1178 = vmatpush1.msra.mxu0 0.0
  %1179 = vmatprep.subr.mxu0 0.0
  %1180 = vmatpush1.msra.mxu0 0.0
  %1181 = vmatprep.subr.mxu0 0.0
  %1182 = vmatpush1.msra.mxu0 0.0
  %1183 = vmatprep.subr.mxu0 0.0
  %1184 = vmatpush1.msra.mxu0 0.0
  %1185 = vmatprep.subr.mxu0 0.0
  %1186 = vmatpush1.msra.mxu0 0.0
  %1187 = vmatprep.subr.mxu0 0.0
  %1188 = vmatpush1.msra.mxu0 0.0
  %1189 = vmatprep.subr.mxu0 0.0
  %1190 = vmatpush1.msra.mxu0 0.0
  %1191 = vmatprep.subr.mxu0 0.0
  %1192 = vmatpush1.msra.mxu0 0.0
  %1193 = vmatprep.subr.mxu0 0.0
  %1194 = vmatpush1.msra.mxu0 0.0
  %1195 = vmatprep.subr.mxu0 0.0
  %1196 = vmatpush1.msra.mxu0 0.0
  %1197 = vmatprep.subr.mxu0 0.0
  %1198 = vmatpush1.msra.mxu0 0.0
  %1199 = vmatprep.subr.mxu0 0.0
  %1200 = vmatpush1.msra.mxu0 0.0
  %1201 = vmatprep.subr.mxu0 0.0
  %1202 = vmatpush1.msra.mxu0 0.0
  %1203 = vmatprep.subr.mxu0 0.0
  %1204 = vmatpush1.msra.mxu0 0.0
  %1205 = vmatprep.subr.mxu0 0.0
  %1206 = vmatpush1.msra.mxu0 0.0
  %1207 = vmatprep.subr.mxu0 0.0
  %1208 = vmatpush1.msra.mxu0 0.0
  %1209 = vmatprep.mubr.f32.mxu0 0.0
  %1210 = vmatmul.mubr.f32.gmra.mrb[0].mxu0 %v1143
  %v1211 = vpop.f32.mrb[0].mxu0
  %v1212 = vadd.f32 %v1140, %v1211
  %v1213 = vpop.f32.mrb[0].mxu0
  %1214 = vdwg.mxu0
  %v1215 = vmax.f32 %v1212, 0.0
  %v1216 = vadd.f32 %v1130, %v1215
  %v1217 = vld [vmem:[%s15] sm:$0x1]
  %v1218 = vld [vmem:[%s16] sm:$0x1]
  %v1219 = vsel %vm544, %v1216, 0.0
  %1220 = vadd.xlane.f32.xlu0 %v1219
  %v1221 = vpop.xlane.xlu0 %1220
  %v1222 = vmul.f32 %v1221, %v1106
  %v1223 = vsub.f32 %v1216, %v1222
  %v1224 = vmul.f32 %v1223, %v1223
  %v1225 = vsel %vm544, %v1224, 0.0
  %1226 = vadd.xlane.f32.xlu0 %v1225
  %v1227 = vpop.xlane.xlu0 %1226
  %v1228 = vmul.f32 %v1227, %v1106
  %v1229 = vadd.f32 %v1228, 1e-05
  %v1230 = vrsqrt.pop %v1229
  %v1231 = vmul.f32 %v1223, %v1230
  %v1233 = vlaneseq
  %v1234 = vshrl.u32 %v1233, 7
  %v1235 = vsub.s32 0, %v1234
  %v1236 = vrot.slane %v1217, %v1235
  %v1238 = vmul.f32 %v1231, %v1236
  %v1240 = vlaneseq
  %v1241 = vshrl.u32 %v1240, 7
  %v1242 = vsub.s32 0, %v1241
  %v1243 = vrot.slane %v1218, %v1242
  %v1245 = vadd.f32 %v1238, %v1243
  %s1246 = scalar_lea.vmem %s24, 2
  %1247 = vst.msk [vmem:[%s1246] sm:$0x3] %vm544, %v1245
  %s1248 = scalar_lea.vmem %s3, 16
  %v1249 = vld [vmem:[%s1248] sm:$0xff]
  %v1250 = vld [vmem:[%s1248 + $0x8] sm:$0xff]
  %s1251 = scalar_lea.vmem %s5, 32
  %v1252 = vld [vmem:[%s1251] sm:$0xff]
  %v1253 = vld [vmem:[%s1251 + $0x8] sm:$0xff]
  %v1254 = vld [vmem:[%s1251 + $0x10] sm:$0xff]
  %v1255 = vld [vmem:[%s1251 + $0x18] sm:$0xff]
  %s1256 = scalar_lea.vmem %s6, 1
  %v1257 = vld [vmem:[%s1256] sm:$0x1]
  %v1259 = vlaneseq
  %v1260 = vshrl.u32 %v1259, 7
  %v1261 = vsub.s32 0, %v1260
  %v1262 = vrot.slane %v1257, %v1261
  %v1265 = vsel %vm559, %v1245, 0
  %1267 = vmatprep.subr.mxu0 0.0
  %1268 = vmatpush1.msra.mxu0 %v1252
  %1269 = vmatprep.subr.mxu0 0.0
  %1270 = vmatpush1.msra.mxu0 %v1253
  %1271 = vmatprep.subr.mxu0 0.0
  %1272 = vmatpush1.msra.mxu0 %v1254
  %1273 = vmatprep.subr.mxu0 0.0
  %1274 = vmatpush1.msra.mxu0 %v1255
  %1275 = vmatprep.subr.mxu0 0.0
  %1276 = vmatpush1.msra.mxu0 0.0
  %1277 = vmatprep.subr.mxu0 0.0
  %1278 = vmatpush1.msra.mxu0 0.0
  %1279 = vmatprep.subr.mxu0 0.0
  %1280 = vmatpush1.msra.mxu0 0.0
  %1281 = vmatprep.subr.mxu0 0.0
  %1282 = vmatpush1.msra.mxu0 0.0
  %1283 = vmatprep.subr.mxu0 0.0
  %1284 = vmatpush1.msra.mxu0 0.0
  %1285 = vmatprep.subr.mxu0 0.0
  %1286 = vmatpush1.msra.mxu0 0.0
  %1287 = vmatprep.subr.mxu0 0.0
  %1288 = vmatpush1.msra.mxu0 0.0
  %1289 = vmatprep.subr.mxu0 0.0
  %1290 = vmatpush1.msra.mxu0 0.0
  %1291 = vmatprep.subr.mxu0 0.0
  %1292 = vmatpush1.msra.mxu0 0.0
  %1293 = vmatprep.subr.mxu0 0.0
  %1294 = vmatpush1.msra.mxu0 0.0
  %1295 = vmatprep.subr.mxu0 0.0
  %1296 = vmatpush1.msra.mxu0 0.0
  %1297 = vmatprep.subr.mxu0 0.0
  %1298 = vmatpush1.msra.mxu0 0.0
  %1299 = vmatprep.subr.mxu0 0.0
  %1300 = vmatpush1.msra.mxu0 0.0
  %1301 = vmatprep.subr.mxu0 0.0
  %1302 = vmatpush1.msra.mxu0 0.0
  %1303 = vmatprep.subr.mxu0 0.0
  %1304 = vmatpush1.msra.mxu0 0.0
  %1305 = vmatprep.subr.mxu0 0.0
  %1306 = vmatpush1.msra.mxu0 0.0
  %1307 = vmatprep.subr.mxu0 0.0
  %1308 = vmatpush1.msra.mxu0 0.0
  %1309 = vmatprep.subr.mxu0 0.0
  %1310 = vmatpush1.msra.mxu0 0.0
  %1311 = vmatprep.subr.mxu0 0.0
  %1312 = vmatpush1.msra.mxu0 0.0
  %1313 = vmatprep.subr.mxu0 0.0
  %1314 = vmatpush1.msra.mxu0 0.0
  %1315 = vmatprep.subr.mxu0 0.0
  %1316 = vmatpush1.msra.mxu0 0.0
  %1317 = vmatprep.subr.mxu0 0.0
  %1318 = vmatpush1.msra.mxu0 0.0
  %1319 = vmatprep.subr.mxu0 0.0
  %1320 = vmatpush1.msra.mxu0 0.0
  %1321 = vmatprep.subr.mxu0 0.0
  %1322 = vmatpush1.msra.mxu0 0.0
  %1323 = vmatprep.subr.mxu0 0.0
  %1324 = vmatpush1.msra.mxu0 0.0
  %1325 = vmatprep.subr.mxu0 0.0
  %1326 = vmatpush1.msra.mxu0 0.0
  %1327 = vmatprep.subr.mxu0 0.0
  %1328 = vmatpush1.msra.mxu0 0.0
  %1329 = vmatprep.subr.mxu0 0.0
  %1330 = vmatpush1.msra.mxu0 0.0
  %1331 = vmatprep.mubr.f32.mxu0 0.0
  %1332 = vmatmul.mubr.f32.gmra.mrb[0].mxu0 %v1265
  %v1333 = vpop.f32.mrb[0].mxu0
  %v1334 = vadd.f32 %v1262, %v1333
  %v1335 = vpop.f32.mrb[0].mxu0
  %1336 = vdwg.mxu0
  %s1337 = scalar_lea.vmem %s7, 32
  %v1338 = vld [vmem:[%s1337] sm:$0xff]
  %v1339 = vld [vmem:[%s1337 + $0x8] sm:$0xff]
  %v1340 = vld [vmem:[%s1337 + $0x10] sm:$0xff]
  %v1341 = vld [vmem:[%s1337 + $0x18] sm:$0xff]
  %s1342 = scalar_lea.vmem %s8, 1
  %v1343 = vld [vmem:[%s1342] sm:$0x1]
  %v1345 = vlaneseq
  %v1346 = vshrl.u32 %v1345, 7
  %v1347 = vsub.s32 0, %v1346
  %v1348 = vrot.slane %v1343, %v1347
  %v1351 = vsel %vm559, %v1249, 0
  %v1354 = vsel %vm559, %v1250, 0
  %1356 = vmatprep.subr.mxu0 0.0
  %1357 = vmatpush1.msra.mxu0 %v1338
  %1358 = vmatprep.subr.mxu0 0.0
  %1359 = vmatpush1.msra.mxu0 %v1339
  %1360 = vmatprep.subr.mxu0 0.0
  %1361 = vmatpush1.msra.mxu0 %v1340
  %1362 = vmatprep.subr.mxu0 0.0
  %1363 = vmatpush1.msra.mxu0 %v1341
  %1364 = vmatprep.subr.mxu0 0.0
  %1365 = vmatpush1.msra.mxu0 0.0
  %1366 = vmatprep.subr.mxu0 0.0
  %1367 = vmatpush1.msra.mxu0 0.0
  %1368 = vmatprep.subr.mxu0 0.0
  %1369 = vmatpush1.msra.mxu0 0.0
  %1370 = vmatprep.subr.mxu0 0.0
  %1371 = vmatpush1.msra.mxu0 0.0
  %1372 = vmatprep.subr.mxu0 0.0
  %1373 = vmatpush1.msra.mxu0 0.0
  %1374 = vmatprep.subr.mxu0 0.0
  %1375 = vmatpush1.msra.mxu0 0.0
  %1376 = vmatprep.subr.mxu0 0.0
  %1377 = vmatpush1.msra.mxu0 0.0
  %1378 = vmatprep.subr.mxu0 0.0
  %1379 = vmatpush1.msra.mxu0 0.0
  %1380 = vmatprep.subr.mxu0 0.0
  %1381 = vmatpush1.msra.mxu0 0.0
  %1382 = vmatprep.subr.mxu0 0.0
  %1383 = vmatpush1.msra.mxu0 0.0
  %1384 = vmatprep.subr.mxu0 0.0
  %1385 = vmatpush1.msra.mxu0 0.0
  %1386 = vmatprep.subr.mxu0 0.0
  %1387 = vmatpush1.msra.mxu0 0.0
  %1388 = vmatprep.subr.mxu0 0.0
  %1389 = vmatpush1.msra.mxu0 0.0
  %1390 = vmatprep.subr.mxu0 0.0
  %1391 = vmatpush1.msra.mxu0 0.0
  %1392 = vmatprep.subr.mxu0 0.0
  %1393 = vmatpush1.msra.mxu0 0.0
  %1394 = vmatprep.subr.mxu0 0.0
  %1395 = vmatpush1.msra.mxu0 0.0
  %1396 = vmatprep.subr.mxu0 0.0
  %1397 = vmatpush1.msra.mxu0 0.0
  %1398 = vmatprep.subr.mxu0 0.0
  %1399 = vmatpush1.msra.mxu0 0.0
  %1400 = vmatprep.subr.mxu0 0.0
  %1401 = vmatpush1.msra.mxu0 0.0
  %1402 = vmatprep.subr.mxu0 0.0
  %1403 = vmatpush1.msra.mxu0 0.0
  %1404 = vmatprep.subr.mxu0 0.0
  %1405 = vmatpush1.msra.mxu0 0.0
  %1406 = vmatprep.subr.mxu0 0.0
  %1407 = vmatpush1.msra.mxu0 0.0
  %1408 = vmatprep.subr.mxu0 0.0
  %1409 = vmatpush1.msra.mxu0 0.0
  %1410 = vmatprep.subr.mxu0 0.0
  %1411 = vmatpush1.msra.mxu0 0.0
  %1412 = vmatprep.subr.mxu0 0.0
  %1413 = vmatpush1.msra.mxu0 0.0
  %1414 = vmatprep.subr.mxu0 0.0
  %1415 = vmatpush1.msra.mxu0 0.0
  %1416 = vmatprep.subr.mxu0 0.0
  %1417 = vmatpush1.msra.mxu0 0.0
  %1418 = vmatprep.subr.mxu0 0.0
  %1419 = vmatpush1.msra.mxu0 0.0
  %1420 = vmatprep.mubr.f32.mxu0 0.0
  %1421 = vmatmul.mubr.f32.gmra.mrb[0].mxu0 %v1351
  %v1422 = vpop.f32.mrb[0].mxu0
  %v1423 = vadd.f32 %v1348, %v1422
  %v1424 = vpop.f32.mrb[0].mxu0
  %1425 = vmatprep.mubr.f32.mxu0 0.0
  %1426 = vmatmul.mubr.f32.gmra.mrb[0].mxu0 %v1354
  %v1427 = vpop.f32.mrb[0].mxu0
  %v1428 = vadd.f32 %v1348, %v1427
  %v1429 = vpop.f32.mrb[0].mxu0
  %1430 = vdwg.mxu0
  %v1433 = vunpack.c.l.s4 1966171168
  %v1434 = vunpack.c.0.s8 %v1433
  %v1435 = vlaneseq
  %v1436 = vshrl.u32 %v1435, 7
  %v1437 = vsub.s32 %v1434, %v1436
  %v1438 = vrot.slane %v1334, %v1437
  %v1439 = vcombine.high %v1438, %v1438
  %v1441 = vunpack.c.l.s4 1966171168
  %v1442 = vunpack.c.0.s8 %v1441
  %v1443 = vlaneseq
  %v1444 = vshrl.u32 %v1443, 7
  %v1445 = vsub.s32 %v1442, %v1444
  %v1446 = vrot.slane %v1438, %v1445
  %v1448 = vunpack.c.l.s4 1966171168
  %v1449 = vunpack.c.0.s8 %v1448
  %v1450 = vlaneseq
  %v1451 = vshrl.u32 %v1450, 7
  %v1452 = vsub.s32 %v1449, %v1451
  %v1453 = vrot.slane %v1439, %v1452
  %v1454 = vlaneseq
  %v1455 = vshrl.u32 %v1454, 7
  %v1456 = vsub.s32 0, %v1455
  %v1457 = vrot.slane %v1446, %v1456
  %v1458 = vlaneseq
  %v1459 = vshrl.u32 %v1458, 7
  %v1460 = vsub.s32 0, %v1459
  %v1461 = vrot.slane %v1453, %v1460
  %v1464 = vmul.f32 %v1457, %v1423
  %v1465 = vmul.f32 %v1461, %v1428
  %v1467 = vsel %vm559, %v1464, 0
  %v1470 = vsel %vm559, %v1465, 0
  %1472 = vmatprep.subr.mxu0 0.0
  %1473 = vmatpush1.msra.mxu0 %v539
  %1474 = vmatprep.subr.mxu0 0.0
  %1475 = vmatpush1.msra.mxu0 %v540
  %1476 = vmatprep.subr.mxu0 0.0
  %1477 = vmatpush1.msra.mxu0 %v541
  %1478 = vmatprep.subr.mxu0 0.0
  %1479 = vmatpush1.msra.mxu0 %v542
  %1480 = vmatprep.subr.mxu0 0.0
  %1481 = vmatpush1.msra.mxu0 0.0
  %1482 = vmatprep.subr.mxu0 0.0
  %1483 = vmatpush1.msra.mxu0 0.0
  %1484 = vmatprep.subr.mxu0 0.0
  %1485 = vmatpush1.msra.mxu0 0.0
  %1486 = vmatprep.subr.mxu0 0.0
  %1487 = vmatpush1.msra.mxu0 0.0
  %1488 = vmatprep.subr.mxu0 0.0
  %1489 = vmatpush1.msra.mxu0 0.0
  %1490 = vmatprep.subr.mxu0 0.0
  %1491 = vmatpush1.msra.mxu0 0.0
  %1492 = vmatprep.subr.mxu0 0.0
  %1493 = vmatpush1.msra.mxu0 0.0
  %1494 = vmatprep.subr.mxu0 0.0
  %1495 = vmatpush1.msra.mxu0 0.0
  %1496 = vmatprep.subr.mxu0 0.0
  %1497 = vmatpush1.msra.mxu0 0.0
  %1498 = vmatprep.subr.mxu0 0.0
  %1499 = vmatpush1.msra.mxu0 0.0
  %1500 = vmatprep.subr.mxu0 0.0
  %1501 = vmatpush1.msra.mxu0 0.0
  %1502 = vmatprep.subr.mxu0 0.0
  %1503 = vmatpush1.msra.mxu0 0.0
  %1504 = vmatprep.subr.mxu0 0.0
  %1505 = vmatpush1.msra.mxu0 0.0
  %1506 = vmatprep.subr.mxu0 0.0
  %1507 = vmatpush1.msra.mxu0 0.0
  %1508 = vmatprep.subr.mxu0 0.0
  %1509 = vmatpush1.msra.mxu0 0.0
  %1510 = vmatprep.subr.mxu0 0.0
  %1511 = vmatpush1.msra.mxu0 0.0
  %1512 = vmatprep.subr.mxu0 0.0
  %1513 = vmatpush1.msra.mxu0 0.0
  %1514 = vmatprep.subr.mxu0 0.0
  %1515 = vmatpush1.msra.mxu0 0.0
  %1516 = vmatprep.subr.mxu0 0.0
  %1517 = vmatpush1.msra.mxu0 0.0
  %1518 = vmatprep.subr.mxu0 0.0
  %1519 = vmatpush1.msra.mxu0 0.0
  %1520 = vmatprep.subr.mxu0 0.0
  %1521 = vmatpush1.msra.mxu0 0.0
  %1522 = vmatprep.subr.mxu0 0.0
  %1523 = vmatpush1.msra.mxu0 0.0
  %1524 = vmatprep.subr.mxu0 0.0
  %1525 = vmatpush1.msra.mxu0 0.0
  %1526 = vmatprep.subr.mxu0 0.0
  %1527 = vmatpush1.msra.mxu0 0.0
  %1528 = vmatprep.subr.mxu0 0.0
  %1529 = vmatpush1.msra.mxu0 0.0
  %1530 = vmatprep.subr.mxu0 0.0
  %1531 = vmatpush1.msra.mxu0 0.0
  %1532 = vmatprep.subr.mxu0 0.0
  %1533 = vmatpush1.msra.mxu0 0.0
  %1534 = vmatprep.subr.mxu0 0.0
  %1535 = vmatpush1.msra.mxu0 0.0
  %1536 = vmatprep.mubr.f32.mxu0 0.0
  %1537 = vmatmul.mubr.f32.gmra.mrb[0].mxu0 %v1467
  %v1538 = vpop.f32.mrb[0].mxu0
  %v1539 = vadd.f32 0.0, %v1538
  %v1540 = vpop.f32.mrb[0].mxu0
  %1541 = vmatprep.mubr.f32.mxu0 0.0
  %1542 = vmatmul.mubr.f32.gmra.mrb[0].mxu0 %v1470
  %v1543 = vpop.f32.mrb[0].mxu0
  %v1544 = vadd.f32 0.0, %v1543
  %v1545 = vpop.f32.mrb[0].mxu0
  %1546 = vdwg.mxu0
  %v1547 = vmul.f32 %v1539, 0.17677669
  %v1548 = vmul.f32 %v1544, 0.17677669
  %v1549 = vsel %vm861, %v1547, -1e+30
  %v1550 = vsel %vm862, %v1548, -1e+30
  %v1551 = vsel %vm865, %v1549, -inf
  %v1552 = vrot.slane %v1551, 4
  %v1553 = vmax.f32 %v1551, %v1552
  %v1554 = vrot.slane %v1553, 2
  %v1555 = vmax.f32 %v1553, %v1554
  %v1556 = vrot.slane %v1555, 1
  %v1557 = vmax.f32 %v1555, %v1556
  %v1558 = vsel %vm865, %v1550, -inf
  %v1559 = vrot.slane %v1558, 4
  %v1560 = vmax.f32 %v1558, %v1559
  %v1561 = vrot.slane %v1560, 2
  %v1562 = vmax.f32 %v1560, %v1561
  %v1563 = vrot.slane %v1562, 1
  %v1564 = vmax.f32 %v1562, %v1563
  %v1565 = vsub.f32 %v1549, %v1557
  %v1566 = vsub.f32 %v1550, %v1564
  %v1567 = vmul.f32 %v1565, 1.442695
  %v1568 = vpow.pop %v1567
  %v1569 = vmul.f32 %v1566, 1.442695
  %v1570 = vpow.pop %v1569
  %v1571 = vsel %vm865, %v1568, 0.0
  %v1572 = vrot.slane %v1571, 4
  %v1573 = vadd.f32 %v1571, %v1572
  %v1574 = vrot.slane %v1573, 2
  %v1575 = vadd.f32 %v1573, %v1574
  %v1576 = vrot.slane %v1575, 1
  %v1577 = vadd.f32 %v1575, %v1576
  %v1578 = vsel %vm865, %v1570, 0.0
  %v1579 = vrot.slane %v1578, 4
  %v1580 = vadd.f32 %v1578, %v1579
  %v1581 = vrot.slane %v1580, 2
  %v1582 = vadd.f32 %v1580, %v1581
  %v1583 = vrot.slane %v1582, 1
  %v1584 = vadd.f32 %v1582, %v1583
  %v1585 = vrcp.pop %v1577
  %v1586 = vrcp.pop %v1584
  %v1587 = vmul.f32 %v1568, %v1585
  %v1588 = vmul.f32 %v1570, %v1586
  %v1590 = vsel %vm865, %v1587, 0
  %v1593 = vsel %vm865, %v1588, 0
  %1595 = vmatprep.subr.mxu0 0.0
  %1596 = vmatpush1.msra.mxu0 %v912
  %1597 = vmatprep.subr.mxu0 0.0
  %1598 = vmatpush1.msra.mxu0 0.0
  %1599 = vmatprep.subr.mxu0 0.0
  %1600 = vmatpush1.msra.mxu0 0.0
  %1601 = vmatprep.subr.mxu0 0.0
  %1602 = vmatpush1.msra.mxu0 0.0
  %1603 = vmatprep.subr.mxu0 0.0
  %1604 = vmatpush1.msra.mxu0 0.0
  %1605 = vmatprep.subr.mxu0 0.0
  %1606 = vmatpush1.msra.mxu0 0.0
  %1607 = vmatprep.subr.mxu0 0.0
  %1608 = vmatpush1.msra.mxu0 0.0
  %1609 = vmatprep.subr.mxu0 0.0
  %1610 = vmatpush1.msra.mxu0 0.0
  %1611 = vmatprep.subr.mxu0 0.0
  %1612 = vmatpush1.msra.mxu0 0.0
  %1613 = vmatprep.subr.mxu0 0.0
  %1614 = vmatpush1.msra.mxu0 0.0
  %1615 = vmatprep.subr.mxu0 0.0
  %1616 = vmatpush1.msra.mxu0 0.0
  %1617 = vmatprep.subr.mxu0 0.0
  %1618 = vmatpush1.msra.mxu0 0.0
  %1619 = vmatprep.subr.mxu0 0.0
  %1620 = vmatpush1.msra.mxu0 0.0
  %1621 = vmatprep.subr.mxu0 0.0
  %1622 = vmatpush1.msra.mxu0 0.0
  %1623 = vmatprep.subr.mxu0 0.0
  %1624 = vmatpush1.msra.mxu0 0.0
  %1625 = vmatprep.subr.mxu0 0.0
  %1626 = vmatpush1.msra.mxu0 0.0
  %1627 = vmatprep.subr.mxu0 0.0
  %1628 = vmatpush1.msra.mxu0 0.0
  %1629 = vmatprep.subr.mxu0 0.0
  %1630 = vmatpush1.msra.mxu0 0.0
  %1631 = vmatprep.subr.mxu0 0.0
  %1632 = vmatpush1.msra.mxu0 0.0
  %1633 = vmatprep.subr.mxu0 0.0
  %1634 = vmatpush1.msra.mxu0 0.0
  %1635 = vmatprep.subr.mxu0 0.0
  %1636 = vmatpush1.msra.mxu0 0.0
  %1637 = vmatprep.subr.mxu0 0.0
  %1638 = vmatpush1.msra.mxu0 0.0
  %1639 = vmatprep.subr.mxu0 0.0
  %1640 = vmatpush1.msra.mxu0 0.0
  %1641 = vmatprep.subr.mxu0 0.0
  %1642 = vmatpush1.msra.mxu0 0.0
  %1643 = vmatprep.subr.mxu0 0.0
  %1644 = vmatpush1.msra.mxu0 0.0
  %1645 = vmatprep.subr.mxu0 0.0
  %1646 = vmatpush1.msra.mxu0 0.0
  %1647 = vmatprep.subr.mxu0 0.0
  %1648 = vmatpush1.msra.mxu0 0.0
  %1649 = vmatprep.subr.mxu0 0.0
  %1650 = vmatpush1.msra.mxu0 0.0
  %1651 = vmatprep.subr.mxu0 0.0
  %1652 = vmatpush1.msra.mxu0 0.0
  %1653 = vmatprep.subr.mxu0 0.0
  %1654 = vmatpush1.msra.mxu0 0.0
  %1655 = vmatprep.subr.mxu0 0.0
  %1656 = vmatpush1.msra.mxu0 0.0
  %1657 = vmatprep.subr.mxu0 0.0
  %1658 = vmatpush1.msra.mxu0 0.0
  %1659 = vmatprep.mubr.f32.mxu0 0.0
  %1660 = vmatmul.mubr.f32.gmra.mrb[0].mxu0 %v1590
  %v1661 = vpop.f32.mrb[0].mxu0
  %v1662 = vadd.f32 0.0, %v1661
  %v1663 = vpop.f32.mrb[0].mxu0
  %1664 = vmatprep.mubr.f32.mxu0 0.0
  %1665 = vmatmul.mubr.f32.gmra.mrb[0].mxu0 %v1593
  %v1666 = vpop.f32.mrb[0].mxu0
  %v1667 = vadd.f32 0.0, %v1666
  %v1668 = vpop.f32.mrb[0].mxu0
  %1669 = vdwg.mxu0
  %1672 = vrot.lane.b32.xlu0 %v1423, 96
  %v1673 = vpop.permute.xlu0 %1672
  %1674 = vrot.lane.b32.xlu0 %v1428, 96
  %v1675 = vpop.permute.xlu0 %1674
  %v1678 = vmul.f32 %v1662, %v1673
  %v1679 = vmul.f32 %v1667, %v1675
  %v1680 = vsel %vm559, %v1678, 0.0
  %v1681 = vrot.slane %v1680, 4
  %v1682 = vadd.f32 %v1680, %v1681
  %v1683 = vrot.slane %v1682, 2
  %v1684 = vadd.f32 %v1682, %v1683
  %v1685 = vrot.slane %v1684, 1
  %v1686 = vadd.f32 %v1684, %v1685
  %v1687 = vsel %vm559, %v1679, 0.0
  %v1688 = vrot.slane %v1687, 4
  %v1689 = vadd.f32 %v1687, %v1688
  %v1690 = vrot.slane %v1689, 2
  %v1691 = vadd.f32 %v1689, %v1690
  %v1692 = vrot.slane %v1691, 1
  %v1693 = vadd.f32 %v1691, %v1692
  %s1694 = scalar_lea.vmem %s9, 32
  %v1695 = vld [vmem:[%s1694] sm:$0xff]
  %v1696 = vld [vmem:[%s1694 + $0x8] sm:$0xff]
  %v1697 = vld [vmem:[%s1694 + $0x10] sm:$0xff]
  %v1698 = vld [vmem:[%s1694 + $0x18] sm:$0xff]
  %s1699 = scalar_lea.vmem %s10, 1
  %v1700 = vld [vmem:[%s1699] sm:$0x1]
  %v1702 = vlaneseq
  %v1703 = vshrl.u32 %v1702, 7
  %v1704 = vsub.s32 0, %v1703
  %v1705 = vrot.slane %v1700, %v1704
  %v1709 = vsel %vm1026, %v1693, %v1686
  %v1710 = vsel %vm559, %v1709, 0
  %1712 = vmatprep.subr.mxu0 0.0
  %1713 = vmatpush1.msra.mxu0 %v1695
  %1714 = vmatprep.subr.mxu0 0.0
  %1715 = vmatpush1.msra.mxu0 %v1696
  %1716 = vmatprep.subr.mxu0 0.0
  %1717 = vmatpush1.msra.mxu0 %v1697
  %1718 = vmatprep.subr.mxu0 0.0
  %1719 = vmatpush1.msra.mxu0 %v1698
  %1720 = vmatprep.subr.mxu0 0.0
  %1721 = vmatpush1.msra.mxu0 0.0
  %1722 = vmatprep.subr.mxu0 0.0
  %1723 = vmatpush1.msra.mxu0 0.0
  %1724 = vmatprep.subr.mxu0 0.0
  %1725 = vmatpush1.msra.mxu0 0.0
  %1726 = vmatprep.subr.mxu0 0.0
  %1727 = vmatpush1.msra.mxu0 0.0
  %1728 = vmatprep.subr.mxu0 0.0
  %1729 = vmatpush1.msra.mxu0 0.0
  %1730 = vmatprep.subr.mxu0 0.0
  %1731 = vmatpush1.msra.mxu0 0.0
  %1732 = vmatprep.subr.mxu0 0.0
  %1733 = vmatpush1.msra.mxu0 0.0
  %1734 = vmatprep.subr.mxu0 0.0
  %1735 = vmatpush1.msra.mxu0 0.0
  %1736 = vmatprep.subr.mxu0 0.0
  %1737 = vmatpush1.msra.mxu0 0.0
  %1738 = vmatprep.subr.mxu0 0.0
  %1739 = vmatpush1.msra.mxu0 0.0
  %1740 = vmatprep.subr.mxu0 0.0
  %1741 = vmatpush1.msra.mxu0 0.0
  %1742 = vmatprep.subr.mxu0 0.0
  %1743 = vmatpush1.msra.mxu0 0.0
  %1744 = vmatprep.subr.mxu0 0.0
  %1745 = vmatpush1.msra.mxu0 0.0
  %1746 = vmatprep.subr.mxu0 0.0
  %1747 = vmatpush1.msra.mxu0 0.0
  %1748 = vmatprep.subr.mxu0 0.0
  %1749 = vmatpush1.msra.mxu0 0.0
  %1750 = vmatprep.subr.mxu0 0.0
  %1751 = vmatpush1.msra.mxu0 0.0
  %1752 = vmatprep.subr.mxu0 0.0
  %1753 = vmatpush1.msra.mxu0 0.0
  %1754 = vmatprep.subr.mxu0 0.0
  %1755 = vmatpush1.msra.mxu0 0.0
  %1756 = vmatprep.subr.mxu0 0.0
  %1757 = vmatpush1.msra.mxu0 0.0
  %1758 = vmatprep.subr.mxu0 0.0
  %1759 = vmatpush1.msra.mxu0 0.0
  %1760 = vmatprep.subr.mxu0 0.0
  %1761 = vmatpush1.msra.mxu0 0.0
  %1762 = vmatprep.subr.mxu0 0.0
  %1763 = vmatpush1.msra.mxu0 0.0
  %1764 = vmatprep.subr.mxu0 0.0
  %1765 = vmatpush1.msra.mxu0 0.0
  %1766 = vmatprep.subr.mxu0 0.0
  %1767 = vmatpush1.msra.mxu0 0.0
  %1768 = vmatprep.subr.mxu0 0.0
  %1769 = vmatpush1.msra.mxu0 0.0
  %1770 = vmatprep.subr.mxu0 0.0
  %1771 = vmatpush1.msra.mxu0 0.0
  %1772 = vmatprep.subr.mxu0 0.0
  %1773 = vmatpush1.msra.mxu0 0.0
  %1774 = vmatprep.subr.mxu0 0.0
  %1775 = vmatpush1.msra.mxu0 0.0
  %1776 = vmatprep.mubr.f32.mxu0 0.0
  %1777 = vmatmul.mubr.f32.gmra.mrb[0].mxu0 %v1710
  %v1778 = vpop.f32.mrb[0].mxu0
  %v1779 = vadd.f32 %v1705, %v1778
  %v1780 = vpop.f32.mrb[0].mxu0
  %1781 = vdwg.mxu0
  %v1782 = vadd.f32 %v1245, %v1779
  %s1783 = scalar_lea.vmem %s13, 1
  %v1784 = vld [vmem:[%s1783] sm:$0x1]
  %s1785 = scalar_lea.vmem %s14, 1
  %v1786 = vld [vmem:[%s1785] sm:$0x1]
  %v1787 = vsel %vm544, %v1782, 0.0
  %1788 = vadd.xlane.f32.xlu0 %v1787
  %v1789 = vpop.xlane.xlu0 %1788
  %v1790 = vmul.f32 %v1789, %v1106
  %v1791 = vsub.f32 %v1782, %v1790
  %v1792 = vmul.f32 %v1791, %v1791
  %v1793 = vsel %vm544, %v1792, 0.0
  %1794 = vadd.xlane.f32.xlu0 %v1793
  %v1795 = vpop.xlane.xlu0 %1794
  %v1796 = vmul.f32 %v1795, %v1106
  %v1797 = vadd.f32 %v1796, 1e-05
  %v1798 = vrsqrt.pop %v1797
  %v1799 = vmul.f32 %v1791, %v1798
  %v1801 = vlaneseq
  %v1802 = vshrl.u32 %v1801, 7
  %v1803 = vsub.s32 0, %v1802
  %v1804 = vrot.slane %v1784, %v1803
  %v1806 = vmul.f32 %v1799, %v1804
  %v1808 = vlaneseq
  %v1809 = vshrl.u32 %v1808, 7
  %v1810 = vsub.s32 0, %v1809
  %v1811 = vrot.slane %v1786, %v1810
  %v1813 = vadd.f32 %v1806, %v1811
  %s1814 = scalar_lea.vmem %s11, 32
  %v1815 = vld [vmem:[%s1814] sm:$0xff]
  %v1816 = vld [vmem:[%s1814 + $0x8] sm:$0xff]
  %v1817 = vld [vmem:[%s1814 + $0x10] sm:$0xff]
  %v1818 = vld [vmem:[%s1814 + $0x18] sm:$0xff]
  %s1819 = scalar_lea.vmem %s12, 1
  %v1820 = vld [vmem:[%s1819] sm:$0x1]
  %v1822 = vlaneseq
  %v1823 = vshrl.u32 %v1822, 7
  %v1824 = vsub.s32 0, %v1823
  %v1825 = vrot.slane %v1820, %v1824
  %v1828 = vsel %vm559, %v1813, 0
  %1830 = vmatprep.subr.mxu0 0.0
  %1831 = vmatpush1.msra.mxu0 %v1815
  %1832 = vmatprep.subr.mxu0 0.0
  %1833 = vmatpush1.msra.mxu0 %v1816
  %1834 = vmatprep.subr.mxu0 0.0
  %1835 = vmatpush1.msra.mxu0 %v1817
  %1836 = vmatprep.subr.mxu0 0.0
  %1837 = vmatpush1.msra.mxu0 %v1818
  %1838 = vmatprep.subr.mxu0 0.0
  %1839 = vmatpush1.msra.mxu0 0.0
  %1840 = vmatprep.subr.mxu0 0.0
  %1841 = vmatpush1.msra.mxu0 0.0
  %1842 = vmatprep.subr.mxu0 0.0
  %1843 = vmatpush1.msra.mxu0 0.0
  %1844 = vmatprep.subr.mxu0 0.0
  %1845 = vmatpush1.msra.mxu0 0.0
  %1846 = vmatprep.subr.mxu0 0.0
  %1847 = vmatpush1.msra.mxu0 0.0
  %1848 = vmatprep.subr.mxu0 0.0
  %1849 = vmatpush1.msra.mxu0 0.0
  %1850 = vmatprep.subr.mxu0 0.0
  %1851 = vmatpush1.msra.mxu0 0.0
  %1852 = vmatprep.subr.mxu0 0.0
  %1853 = vmatpush1.msra.mxu0 0.0
  %1854 = vmatprep.subr.mxu0 0.0
  %1855 = vmatpush1.msra.mxu0 0.0
  %1856 = vmatprep.subr.mxu0 0.0
  %1857 = vmatpush1.msra.mxu0 0.0
  %1858 = vmatprep.subr.mxu0 0.0
  %1859 = vmatpush1.msra.mxu0 0.0
  %1860 = vmatprep.subr.mxu0 0.0
  %1861 = vmatpush1.msra.mxu0 0.0
  %1862 = vmatprep.subr.mxu0 0.0
  %1863 = vmatpush1.msra.mxu0 0.0
  %1864 = vmatprep.subr.mxu0 0.0
  %1865 = vmatpush1.msra.mxu0 0.0
  %1866 = vmatprep.subr.mxu0 0.0
  %1867 = vmatpush1.msra.mxu0 0.0
  %1868 = vmatprep.subr.mxu0 0.0
  %1869 = vmatpush1.msra.mxu0 0.0
  %1870 = vmatprep.subr.mxu0 0.0
  %1871 = vmatpush1.msra.mxu0 0.0
  %1872 = vmatprep.subr.mxu0 0.0
  %1873 = vmatpush1.msra.mxu0 0.0
  %1874 = vmatprep.subr.mxu0 0.0
  %1875 = vmatpush1.msra.mxu0 0.0
  %1876 = vmatprep.subr.mxu0 0.0
  %1877 = vmatpush1.msra.mxu0 0.0
  %1878 = vmatprep.subr.mxu0 0.0
  %1879 = vmatpush1.msra.mxu0 0.0
  %1880 = vmatprep.subr.mxu0 0.0
  %1881 = vmatpush1.msra.mxu0 0.0
  %1882 = vmatprep.subr.mxu0 0.0
  %1883 = vmatpush1.msra.mxu0 0.0
  %1884 = vmatprep.subr.mxu0 0.0
  %1885 = vmatpush1.msra.mxu0 0.0
  %1886 = vmatprep.subr.mxu0 0.0
  %1887 = vmatpush1.msra.mxu0 0.0
  %1888 = vmatprep.subr.mxu0 0.0
  %1889 = vmatpush1.msra.mxu0 0.0
  %1890 = vmatprep.subr.mxu0 0.0
  %1891 = vmatpush1.msra.mxu0 0.0
  %1892 = vmatprep.subr.mxu0 0.0
  %1893 = vmatpush1.msra.mxu0 0.0
  %1894 = vmatprep.mubr.f32.mxu0 0.0
  %1895 = vmatmul.mubr.f32.gmra.mrb[0].mxu0 %v1828
  %v1896 = vpop.f32.mrb[0].mxu0
  %v1897 = vadd.f32 %v1825, %v1896
  %v1898 = vpop.f32.mrb[0].mxu0
  %1899 = vdwg.mxu0
  %v1900 = vmax.f32 %v1897, 0.0
  %v1901 = vadd.f32 %v1813, %v1900
  %s1902 = scalar_lea.vmem %s15, 1
  %v1903 = vld [vmem:[%s1902] sm:$0x1]
  %s1904 = scalar_lea.vmem %s16, 1
  %v1905 = vld [vmem:[%s1904] sm:$0x1]
  %v1906 = vsel %vm544, %v1901, 0.0
  %1907 = vadd.xlane.f32.xlu0 %v1906
  %v1908 = vpop.xlane.xlu0 %1907
  %v1909 = vmul.f32 %v1908, %v1106
  %v1910 = vsub.f32 %v1901, %v1909
  %v1911 = vmul.f32 %v1910, %v1910
  %v1912 = vsel %vm544, %v1911, 0.0
  %1913 = vadd.xlane.f32.xlu0 %v1912
  %v1914 = vpop.xlane.xlu0 %1913
  %v1915 = vmul.f32 %v1914, %v1106
  %v1916 = vadd.f32 %v1915, 1e-05
  %v1917 = vrsqrt.pop %v1916
  %v1918 = vmul.f32 %v1910, %v1917
  %v1920 = vlaneseq
  %v1921 = vshrl.u32 %v1920, 7
  %v1922 = vsub.s32 0, %v1921
  %v1923 = vrot.slane %v1903, %v1922
  %v1925 = vmul.f32 %v1918, %v1923
  %v1927 = vlaneseq
  %v1928 = vshrl.u32 %v1927, 7
  %v1929 = vsub.s32 0, %v1928
  %v1930 = vrot.slane %v1905, %v1929
  %v1932 = vadd.f32 %v1925, %v1930
  %v1933 = vld [vmem:[%s19] sm:$0xff]
  %v1934 = vld [vmem:[%s19 + $0x8] sm:$0xff]
  %v1935 = vld [vmem:[%s19 + $0x10] sm:$0xff]
  %v1936 = vld [vmem:[%s19 + $0x18] sm:$0xff]
  %v1937 = vld [vmem:[%s20] sm:$0x1]
  %v1939 = vlaneseq
  %v1940 = vshrl.u32 %v1939, 7
  %v1941 = vsub.s32 0, %v1940
  %v1942 = vrot.slane %v1937, %v1941
  %v1945 = vsel %vm559, %v1932, 0
  %1947 = vmatprep.subr.mxu0 0.0
  %1948 = vmatpush1.msra.mxu0 %v1933
  %1949 = vmatprep.subr.mxu0 0.0
  %1950 = vmatpush1.msra.mxu0 %v1934
  %1951 = vmatprep.subr.mxu0 0.0
  %1952 = vmatpush1.msra.mxu0 %v1935
  %1953 = vmatprep.subr.mxu0 0.0
  %1954 = vmatpush1.msra.mxu0 %v1936
  %1955 = vmatprep.subr.mxu0 0.0
  %1956 = vmatpush1.msra.mxu0 0.0
  %1957 = vmatprep.subr.mxu0 0.0
  %1958 = vmatpush1.msra.mxu0 0.0
  %1959 = vmatprep.subr.mxu0 0.0
  %1960 = vmatpush1.msra.mxu0 0.0
  %1961 = vmatprep.subr.mxu0 0.0
  %1962 = vmatpush1.msra.mxu0 0.0
  %1963 = vmatprep.subr.mxu0 0.0
  %1964 = vmatpush1.msra.mxu0 0.0
  %1965 = vmatprep.subr.mxu0 0.0
  %1966 = vmatpush1.msra.mxu0 0.0
  %1967 = vmatprep.subr.mxu0 0.0
  %1968 = vmatpush1.msra.mxu0 0.0
  %1969 = vmatprep.subr.mxu0 0.0
  %1970 = vmatpush1.msra.mxu0 0.0
  %1971 = vmatprep.subr.mxu0 0.0
  %1972 = vmatpush1.msra.mxu0 0.0
  %1973 = vmatprep.subr.mxu0 0.0
  %1974 = vmatpush1.msra.mxu0 0.0
  %1975 = vmatprep.subr.mxu0 0.0
  %1976 = vmatpush1.msra.mxu0 0.0
  %1977 = vmatprep.subr.mxu0 0.0
  %1978 = vmatpush1.msra.mxu0 0.0
  %1979 = vmatprep.subr.mxu0 0.0
  %1980 = vmatpush1.msra.mxu0 0.0
  %1981 = vmatprep.subr.mxu0 0.0
  %1982 = vmatpush1.msra.mxu0 0.0
  %1983 = vmatprep.subr.mxu0 0.0
  %1984 = vmatpush1.msra.mxu0 0.0
  %1985 = vmatprep.subr.mxu0 0.0
  %1986 = vmatpush1.msra.mxu0 0.0
  %1987 = vmatprep.subr.mxu0 0.0
  %1988 = vmatpush1.msra.mxu0 0.0
  %1989 = vmatprep.subr.mxu0 0.0
  %1990 = vmatpush1.msra.mxu0 0.0
  %1991 = vmatprep.subr.mxu0 0.0
  %1992 = vmatpush1.msra.mxu0 0.0
  %1993 = vmatprep.subr.mxu0 0.0
  %1994 = vmatpush1.msra.mxu0 0.0
  %1995 = vmatprep.subr.mxu0 0.0
  %1996 = vmatpush1.msra.mxu0 0.0
  %1997 = vmatprep.subr.mxu0 0.0
  %1998 = vmatpush1.msra.mxu0 0.0
  %1999 = vmatprep.subr.mxu0 0.0
  %2000 = vmatpush1.msra.mxu0 0.0
  %2001 = vmatprep.subr.mxu0 0.0
  %2002 = vmatpush1.msra.mxu0 0.0
  %2003 = vmatprep.subr.mxu0 0.0
  %2004 = vmatpush1.msra.mxu0 0.0
  %2005 = vmatprep.subr.mxu0 0.0
  %2006 = vmatpush1.msra.mxu0 0.0
  %2007 = vmatprep.subr.mxu0 0.0
  %2008 = vmatpush1.msra.mxu0 0.0
  %2009 = vmatprep.subr.mxu0 0.0
  %2010 = vmatpush1.msra.mxu0 0.0
  %2011 = vmatprep.mubr.f32.mxu0 0.0
  %2012 = vmatmul.mubr.f32.gmra.mrb[0].mxu0 %v1945
  %v2013 = vpop.f32.mrb[0].mxu0
  %v2014 = vadd.f32 %v1942, %v2013
  %v2015 = vpop.f32.mrb[0].mxu0
  %2016 = vdwg.mxu0
  %v2017 = vmax.f32 %v2014, 0.0
  %v2018 = vld [vmem:[%s21] sm:$0xff]
  %v2019 = vld [vmem:[%s21 + $0x8] sm:$0xff]
  %v2020 = vld [vmem:[%s21 + $0x10] sm:$0xff]
  %v2021 = vld [vmem:[%s21 + $0x18] sm:$0xff]
  %v2022 = vld [vmem:[%s21 + $0x20] sm:$0xff]
  %v2023 = vld [vmem:[%s21 + $0x28] sm:$0xff]
  %v2024 = vld [vmem:[%s21 + $0x30] sm:$0xff]
  %v2025 = vld [vmem:[%s21 + $0x38] sm:$0xff]
  %v2026 = vld [vmem:[%s22] sm:$0x1]
  %v2028 = vlaneseq
  %v2029 = vshrl.u32 %v2028, 7
  %v2030 = vsub.s32 0, %v2029
  %v2031 = vrot.slane %v2026, %v2030
  %vm2033 = vcmask 523264
  %v2035 = vsel %vm2033, %v2017, 0
  %2037 = vmatprep.subr.mxu0 0.0
  %2038 = vmatpush1.msra.mxu0 %v2018
  %2039 = vmatprep.subr.mxu0 0.0
  %2040 = vmatpush1.msra.mxu0 %v2019
  %2041 = vmatprep.subr.mxu0 0.0
  %2042 = vmatpush1.msra.mxu0 %v2020
  %2043 = vmatprep.subr.mxu0 0.0
  %2044 = vmatpush1.msra.mxu0 %v2021
  %2045 = vmatprep.subr.mxu0 0.0
  %2046 = vmatpush1.msra.mxu0 %v2022
  %2047 = vmatprep.subr.mxu0 0.0
  %2048 = vmatpush1.msra.mxu0 %v2023
  %2049 = vmatprep.subr.mxu0 0.0
  %2050 = vmatpush1.msra.mxu0 %v2024
  %2051 = vmatprep.subr.mxu0 0.0
  %2052 = vmatpush1.msra.mxu0 %v2025
  %2053 = vmatprep.subr.mxu0 0.0
  %2054 = vmatpush1.msra.mxu0 0.0
  %2055 = vmatprep.subr.mxu0 0.0
  %2056 = vmatpush1.msra.mxu0 0.0
  %2057 = vmatprep.subr.mxu0 0.0
  %2058 = vmatpush1.msra.mxu0 0.0
  %2059 = vmatprep.subr.mxu0 0.0
  %2060 = vmatpush1.msra.mxu0 0.0
  %2061 = vmatprep.subr.mxu0 0.0
  %2062 = vmatpush1.msra.mxu0 0.0
  %2063 = vmatprep.subr.mxu0 0.0
  %2064 = vmatpush1.msra.mxu0 0.0
  %2065 = vmatprep.subr.mxu0 0.0
  %2066 = vmatpush1.msra.mxu0 0.0
  %2067 = vmatprep.subr.mxu0 0.0
  %2068 = vmatpush1.msra.mxu0 0.0
  %2069 = vmatprep.subr.mxu0 0.0
  %2070 = vmatpush1.msra.mxu0 0.0
  %2071 = vmatprep.subr.mxu0 0.0
  %2072 = vmatpush1.msra.mxu0 0.0
  %2073 = vmatprep.subr.mxu0 0.0
  %2074 = vmatpush1.msra.mxu0 0.0
  %2075 = vmatprep.subr.mxu0 0.0
  %2076 = vmatpush1.msra.mxu0 0.0
  %2077 = vmatprep.subr.mxu0 0.0
  %2078 = vmatpush1.msra.mxu0 0.0
  %2079 = vmatprep.subr.mxu0 0.0
  %2080 = vmatpush1.msra.mxu0 0.0
  %2081 = vmatprep.subr.mxu0 0.0
  %2082 = vmatpush1.msra.mxu0 0.0
  %2083 = vmatprep.subr.mxu0 0.0
  %2084 = vmatpush1.msra.mxu0 0.0
  %2085 = vmatprep.subr.mxu0 0.0
  %2086 = vmatpush1.msra.mxu0 0.0
  %2087 = vmatprep.subr.mxu0 0.0
  %2088 = vmatpush1.msra.mxu0 0.0
  %2089 = vmatprep.subr.mxu0 0.0
  %2090 = vmatpush1.msra.mxu0 0.0
  %2091 = vmatprep.subr.mxu0 0.0
  %2092 = vmatpush1.msra.mxu0 0.0
  %2093 = vmatprep.subr.mxu0 0.0
  %2094 = vmatpush1.msra.mxu0 0.0
  %2095 = vmatprep.subr.mxu0 0.0
  %2096 = vmatpush1.msra.mxu0 0.0
  %2097 = vmatprep.subr.mxu0 0.0
  %2098 = vmatpush1.msra.mxu0 0.0
  %2099 = vmatprep.subr.mxu0 0.0
  %2100 = vmatpush1.msra.mxu0 0.0
  %2101 = vmatprep.mubr.f32.mxu0 0.0
  %2102 = vmatmul.mubr.f32.gmra.mrb[0].mxu0 %v2035
  %v2103 = vpop.f32.mrb[0].mxu0
  %v2104 = vadd.f32 %v2031, %v2103
  %v2105 = vpop.f32.mrb[0].mxu0
  %2106 = vdwg.mxu0
  %2107 = vst [vmem:[%s23] sm:$0x3] %v2104
  // Predicated region
  $region94: #{actor_critic_forward.7} parent=0 // pred_check
    _
  $region95: #{actor_critic_forward.7} parent=0 // pred_check_branch
    %2109 = sbr.rel (0) target = $region97
  $region96: #{actor_critic_forward.7} parent=0 // pred_region
    _
  $region97: #{actor_critic_forward.7} parent=0 // pred_fallthru
    _
  // Predicated region
  $region98: #{actor_critic_forward.7} parent=0 // pred_check
    _
  $region99: #{actor_critic_forward.7} parent=0 // pred_check_branch
    %2111 = sbr.rel (0) target = $region101
  $region100: #{actor_critic_forward.7} parent=0 // pred_region
    _
  $region101: #{actor_critic_forward.7} parent=0 // pred_fallthru
    _
  // Predicated region
  $region102: #{actor_critic_forward.7} parent=0 // pred_check
    _
  $region103: #{actor_critic_forward.7} parent=0 // pred_check_branch
    %2113 = sbr.rel (0) target = $region105
  $region104: #{actor_critic_forward.7} parent=0 // pred_region
    _
  $region105: #{actor_critic_forward.7} parent=0 // pred_fallthru
    _
  // Predicated region
  $region106: #{actor_critic_forward.7} parent=0 // pred_check
    _
  $region107: #{actor_critic_forward.7} parent=0 // pred_check_branch
    %2115 = sbr.rel (0) target = $region109
  $region108: #{actor_critic_forward.7} parent=0 // pred_region
    _
  $region109: #{actor_critic_forward.7} parent=0 // pred_fallthru
    _

</llo_original>
